<compile_context>
chip_gen: v7x
topology: tpu7x:2x2x1
jax: 0.10.0
libtpu: 0.0.40
codegen_flags: <defaults>
</compile_context>

<pallas_src>
import jax
import jax.numpy as jnp
from jax.experimental import pallas as pl
from jax.experimental.pallas import tpu as pltpu

# ---------------- small, module-consistent shapes ----------------
B = 2          # batch
N = 64         # input points
D = 3          # extra feature channels (rgb)
NPOINT = 8     # S  (sampled centroids)
NSAMPLE = 16   # ns (neighbors per centroid)
RADIUS = 0.4
L = NSAMPLE * NPOINT   # per-batch flattened CBAM spatial length = 128 (lane-aligned)
BM = B * L             # total lanes = 256

# ---- weight-slab row offsets (8-aligned); W^T at lanes [0:Cin], bias at lane Cin ----
R_F13 = 0      # 48 rows : fused [conv1a(10->16, zero-padded to Cin=13) ; conv3a(13->32)]
R_C1B = 48     # 28 rows : conv1b 16->28
R_C2A = 80     #  9 rows : conv2a 3->9   (shared for xyz & rgb)
R_C2B = 96     # 18 rows : conv2b 9->18  (shared for xyz & rgb)
R_C3B = 120    # 64 rows : conv3b 32->64
R_CW1 = 184    #  4 rows : CBAM fc1 64->4
R_CW2 = 192    # 64 rows : CBAM fc2 4->64
R_W4A = 256    # 64 rows : conv4, input channels 0:64 (max branch), bias b4 at lane 64
R_W4B = 320    # 64 rows : conv4, input channels 64:128 (sum branch)
R_CK = 384     #  1 row  : CBAM spatial conv: lanes 0:7 avg taps, 7:14 max taps, 14 bias
SLAB_ROWS = 392
SLAB_LANES = 128


# =========================================================
# One fused Pallas kernel (single invocation, whole batch):
#   rel-pos-encoding -> fused conv1a/conv3a -> conv1b/conv2/conv3b (BN folded, ReLU)
#   -> CBAM (shared weights, both branches) -> max/sum over nsample -> conv4
# =========================================================
def fused_sa_kernel(data_ref, w_ref, o_ref):
    C = 64

    # ---- inputs (channels-first, lane = b*L + n*S + s; matches torch reshape(b,c,ns*np)) ----
    gnorm = data_ref[0]      # [3, BM] centered neighbor coords (grouped_xyz_norm)
    grgb = data_ref[1]       # [3, BM] neighbor rgb features
    xyzt = data_ref[2]       # [3, BM] absolute centroid coords, tiled to every neighbor

    def wb(r0, cout, cin):
        return w_ref[r0:r0 + cout, 0:cin], w_ref[r0:r0 + cout, cin:cin + 1]

    def small_mm(w, x):
        # w [cout, k], x [k, n], k <= 3 -> broadcast-FMA accumulation on the VPU
        acc = w[:, 0:1] * x[0:1, :]
        for i in range(1, w.shape[1]):
            acc = acc + w[:, i:i + 1] * x[i:i + 1, :]
        return acc

    def dense(x, r0, cout, cin, relu=True):
        # conv1x1 (W^T @ x) + folded-BN bias (+ ReLU)
        w, b = wb(r0, cout, cin)
        y = jnp.dot(w, x, preferred_element_type=jnp.float32) + b
        return jnp.maximum(y, 0.0) if relu else y

    # ---- relative_pos_encoding: channels [dis | rel | xyz_tile | gnorm] ----
    rel = xyzt - gnorm
    dis = jnp.sqrt(jnp.sum(rel * rel, axis=0, keepdims=True))          # [1, BM]

    # ---- fused first layers: conv1a(10->16) ++ conv3a(13->32) as one 13->48 map,
    #      split over the natural input blocks (no activation concat) ----
    wf, bf = wb(R_F13, 48, 13)
    h48 = (wf[:, 0:1] * dis
           + small_mm(wf[:, 1:4], rel)
           + small_mm(wf[:, 4:7], xyzt)
           + small_mm(wf[:, 7:10], gnorm)
           + small_mm(wf[:, 10:13], grgb)
           + bf)
    h48 = jnp.maximum(h48, 0.0)
    h16 = h48[0:16, :]                                                 # conv1a output
    h32 = h48[16:48, :]                                                # conv3a output

    pe28 = dense(h16, R_C1B, 28, 16)                                   # [28, BM]

    # ---- conv_layers2 (shared weights): xyz & rgb batched along lanes (tile-aligned) ----
    w2a, b2a = wb(R_C2A, 9, 3)
    x6 = jnp.concatenate([gnorm, grgb], axis=1)                        # [3, 2*BM]
    h9 = jnp.maximum(small_mm(w2a, x6) + b2a, 0.0)                     # [9, 2*BM]
    f18 = dense(h9, R_C2B, 18, 9)                                      # [18, 2*BM]

    # branch A features (channel order matches torch cat): pe28 | xyz18 | rgb18
    featA = jnp.concatenate([pe28, f18[:, 0:BM], f18[:, BM:2 * BM]], axis=0)   # [64, BM]
    # branch B: conv_layers3 second layer
    featB = dense(h32, R_C3B, 64, 32)                                  # [64, BM]

    # ---- CBAM (shared weights) + fused per-branch reduction over nsample ----
    cw1, cb1 = wb(R_CW1, 4, 64)
    cw2, cb2 = wb(R_CW2, 64, 4)
    ckrow = w_ref[R_CK:R_CK + 1, 0:15]                                 # [1, 15] spatial taps + bias
    lane = jax.lax.broadcasted_iota(jnp.int32, (1, BM), 1) & (L - 1)   # position inside batch block

    def cbam_reduce(x, is_max):
        # channel attention (pool over the L spatial positions of each batch element)
        cols = []
        for b in range(B):
            xb = x[:, b * L:(b + 1) * L]
            cols.append(jnp.mean(xb, axis=1, keepdims=True))
            cols.append(jnp.max(xb, axis=1, keepdims=True))
        pooled = jnp.concatenate(cols, axis=1)                         # [64, 2B]
        h = jnp.maximum(jnp.dot(cw1, pooled,
                                preferred_element_type=jnp.float32) + cb1, 0.0)
        z = jnp.dot(cw2, h, preferred_element_type=jnp.float32) + cb2  # [64, 2B]
        ca_blocks = [
            jnp.broadcast_to(
                jax.nn.sigmoid(z[:, 2 * b:2 * b + 1] + z[:, 2 * b + 1:2 * b + 2]), (C, L))
            for b in range(B)
        ]
        x_ca = x * jnp.concatenate(ca_blocks, axis=1)                  # [64, BM]

        # spatial attention: 7-tap conv1d (padding=3, zero pad) over the flattened
        # (nsample, npoint) axis -- lane rolls (XLU) + iota edge masks, no unaligned slices.
        avg_s = jnp.mean(x_ca, axis=0, keepdims=True)                  # [1, BM]
        max_s = jnp.max(x_ca, axis=0, keepdims=True)
        y = jnp.zeros((1, BM), jnp.float32) + ckrow[:, 14:15]
        for t in range(7):
            dd = t - 3
            wa = ckrow[:, t:t + 1]
            wm = ckrow[:, 7 + t:8 + t]
            if dd == 0:
                y = y + wa * avg_s + wm * max_s
            else:
                a_sh = pltpu.roll(avg_s, shift=(-dd) % BM, axis=1)     # a_sh[l] = avg_s[l+dd]
                m_sh = pltpu.roll(max_s, shift=(-dd) % BM, axis=1)
                ok = jnp.logical_and(lane + dd >= 0, lane + dd < L)    # zero pad at block edges
                y = y + jnp.where(ok, wa * a_sh + wm * m_sh, 0.0)
        xf = x_ca * jax.nn.sigmoid(y)                                  # [64, BM]

        # reduce over nsample (lane stride = NPOINT) via a lane-roll tree; only lanes
        # [b*L : b*L + NPOINT] are read afterwards, so circular wrap never leaks batches.
        r = xf
        step = NSAMPLE // 2
        while step >= 1:
            off = step * NPOINT
            sh = pltpu.roll(r, shift=BM - off, axis=1)                 # sh[l] = r[l+off]
            r = jnp.maximum(r, sh) if is_max else r + sh
            step //= 2
        return r

    rA = cbam_reduce(featA, True)     # branch A -> max over nsample
    rB = cbam_reduce(featB, False)    # branch B -> sum over nsample

    # ---- conv_layers4 (128 -> 64), split over the two 64-channel input blocks ----
    w4a, b4 = wb(R_W4A, 64, 64)
    w4b = w_ref[R_W4B:R_W4B + 64, 0:64]
    out = jnp.maximum(jnp.dot(w4a, rA, preferred_element_type=jnp.float32)
                      + jnp.dot(w4b, rB, preferred_element_type=jnp.float32)
                      + b4, 0.0)                                       # [64, BM]
    for b in range(B):
        o_ref[b, :, :] = out[:, b * L:b * L + NPOINT]                  # [B, 64, S]


# =========================================================
# plain-JAX glue: sampling / grouping (data-dependent gather & sort)
# =========================================================
def square_distance(src, dst):
    d = -2.0 * jnp.einsum('bnc,bmc->bnm', src, dst)
    d = d + jnp.sum(src ** 2, -1)[:, :, None]
    d = d + jnp.sum(dst ** 2, -1)[:, None, :]
    return d


def farthest_point_sample(xyz, npoint):
    Bb, Nn, _ = xyz.shape
    distance = jnp.full((Bb, Nn), 1e10, jnp.float32)
    farthest = jnp.zeros((Bb,), jnp.int32)   # deterministic start
    bidx = jnp.arange(Bb)
    cents = []
    for _ in range(npoint):
        cents.append(farthest)
        centroid = xyz[bidx, farthest, :][:, None, :]
        dist = jnp.sum((xyz - centroid) ** 2, -1)
        distance = jnp.minimum(distance, dist)
        farthest = jnp.argmax(distance, -1).astype(jnp.int32)
    return jnp.stack(cents, 1)


def query_ball_point(radius, nsample, xyz, new_xyz):
    Bb, Nn, _ = xyz.shape
    S = new_xyz.shape[1]
    sqr = square_distance(new_xyz, xyz)
    gidx = jnp.broadcast_to(jnp.arange(Nn, dtype=jnp.int32)[None, None, :], (Bb, S, Nn))
    gidx = jnp.where(sqr > radius ** 2, Nn, gidx)
    gidx = jnp.sort(gidx, axis=-1)[:, :, :nsample]
    first = jnp.broadcast_to(gidx[:, :, :1], gidx.shape)
    return jnp.where(gidx == Nn, first, gidx)


def index_points2(points, idx):   # idx [B,S]
    return points[jnp.arange(points.shape[0])[:, None], idx]


def index_points3(points, idx):   # idx [B,S,ns]
    return points[jnp.arange(points.shape[0])[:, None, None], idx]


# =========================================================
# full forward: glue + ONE fused pallas_call (no grid, whole-array VMEM specs)
# =========================================================
def forward(xyz, points, params):
    S, ns = NPOINT, NSAMPLE

    xyz_t = jnp.transpose(xyz, (0, 2, 1))        # [B,N,3]
    pts_t = jnp.transpose(points, (0, 2, 1))     # [B,N,D]

    # sample_and_group (data-dependent, plain JAX)
    fps_idx = farthest_point_sample(xyz_t, S)
    new_xyz = index_points2(xyz_t, fps_idx)              # [B,S,3]
    idx = query_ball_point(RADIUS, ns, xyz_t, new_xyz)   # [B,S,ns]
    grouped_xyz = index_points3(xyz_t, idx)              # [B,S,ns,3]
    grouped_norm = grouped_xyz - new_xyz[:, :, None, :]
    grouped_rgb = index_points3(pts_t, idx)[..., :3]     # [B,S,ns,3]

    # channels-first data slab: [3 tensors, 3 channels, B*ns*S lanes]
    def cf(x):   # [B,S,ns,3] -> [3, BM], lane = b*L + n*S + s
        return jnp.transpose(x, (3, 0, 2, 1)).reshape(3, BM)

    xyz_tile = jnp.broadcast_to(new_xyz[:, :, None, :], (B, S, ns, 3))
    data = jnp.stack([cf(grouped_norm), cf(grouped_rgb), cf(xyz_tile)], axis=0)  # [3,3,BM]

    feat = pl.pallas_call(
        fused_sa_kernel,
        out_shape=jax.ShapeDtypeStruct((B, 64, S), jnp.float32),
    )(data, params['wslab'])

    return jnp.transpose(new_xyz, (0, 2, 1)), feat


# =========================================================
# deterministic synthetic parameters (BN eval-mode folded, packed into one slab)
# =========================================================
def init_conv_bn(key, cin, cout):
    ks = jax.random.split(key, 6)
    w = jax.random.normal(ks[0], (cin, cout), jnp.float32) / jnp.sqrt(float(cin))
    bconv = 0.05 * jax.random.normal(ks[1], (cout,), jnp.float32)
    gamma = 1.0 + 0.1 * jax.random.normal(ks[2], (cout,), jnp.float32)
    beta = 0.1 * jax.random.normal(ks[3], (cout,), jnp.float32)
    mean = 0.05 * jax.random.normal(ks[4], (cout,), jnp.float32)
    var = 1.0 + 0.1 * jax.random.uniform(ks[5], (cout,), jnp.float32)
    scale = gamma / jnp.sqrt(var + 1e-5)
    return w * scale[None, :], (bconv - mean) * scale + beta


def init_params(key):
    keys = jax.random.split(key, 14)
    w1a, b1a = init_conv_bn(keys[0], 10, 16)
    w1b, b1b = init_conv_bn(keys[1], 16, 28)
    w2a, b2a = init_conv_bn(keys[2], 3, 9)
    w2b, b2b = init_conv_bn(keys[3], 9, 18)
    w3a, b3a = init_conv_bn(keys[4], 13, 32)
    w3b, b3b = init_conv_bn(keys[5], 32, 64)
    w4, b4 = init_conv_bn(keys[6], 128, 64)
    C, Cr = 64, 4                                  # CBAM(64), reduction ratio 16
    cw1 = jax.random.normal(keys[7], (C, Cr), jnp.float32) / jnp.sqrt(float(C))
    cb1 = 0.05 * jax.random.normal(keys[8], (Cr,), jnp.float32)
    cw2 = jax.random.normal(keys[9], (Cr, C), jnp.float32) / jnp.sqrt(float(Cr))
    cb2 = 0.05 * jax.random.normal(keys[10], (C,), jnp.float32)
    wk = 0.2 * jax.random.normal(keys[11], (2, 7), jnp.float32)
    bk = 0.05 * jax.random.normal(keys[12], (1,), jnp.float32)

    slab = jnp.zeros((SLAB_ROWS, SLAB_LANES), jnp.float32)

    def put(s, r0, wT, bias=None):
        cout, cin = wT.shape
        s = s.at[r0:r0 + cout, 0:cin].set(wT)
        if bias is not None:
            s = s.at[r0:r0 + cout, cin].set(bias)
        return s

    # fused first layer: conv1a^T zero-padded from 10 -> 13 input cols, stacked with conv3a^T
    wf13 = jnp.concatenate([jnp.pad(w1a.T, ((0, 0), (0, 3))), w3a.T], axis=0)   # [48, 13]
    bf13 = jnp.concatenate([b1a, b3a])
    slab = put(slab, R_F13, wf13, bf13)
    slab = put(slab, R_C1B, w1b.T, b1b)
    slab = put(slab, R_C2A, w2a.T, b2a)
    slab = put(slab, R_C2B, w2b.T, b2b)
    slab = put(slab, R_C3B, w3b.T, b3b)
    slab = put(slab, R_CW1, cw1.T, cb1)
    slab = put(slab, R_CW2, cw2.T, cb2)
    w4T = w4.T                                      # [64, 128]
    slab = put(slab, R_W4A, w4T[:, 0:64], b4)
    slab = put(slab, R_W4B, w4T[:, 64:128])
    ck = jnp.concatenate([wk[0], wk[1], bk]).astype(jnp.float32)        # (15,)
    slab = slab.at[R_CK, 0:15].set(ck)

    return {'wslab': slab}


if __name__ == "__main__":
    key = jax.random.PRNGKey(0)
    k1, k2, k3 = jax.random.split(key, 3)
    xyz = jax.random.uniform(k1, (B, 3, N), jnp.float32)      # [B, 3, N]
    points = jax.random.uniform(k2, (B, D, N), jnp.float32)   # [B, D, N]
    params = init_params(k3)

    fwd = jax.jit(lambda a, b: forward(a, b, params))
    new_xyz_out, feat_out = fwd(xyz, points)
    jax.block_until_ready((new_xyz_out, feat_out))

    assert new_xyz_out.shape == (B, 3, NPOINT)
    assert feat_out.shape == (B, 64, NPOINT)
    assert bool(jnp.all(jnp.isfinite(new_xyz_out))) and bool(jnp.all(jnp.isfinite(feat_out)))
    print("KERNEL_OK")
</pallas_src>

<mosaic_0001>
module attributes {stable_mosaic.version = 11 : i64} {
  func.func @fused_sa_kernel(%arg0: memref<3x3x256xf32, #tpu.memory_space<vmem>>, %arg1: memref<392x128xf32, #tpu.memory_space<vmem>>, %arg2: memref<2x64x8xf32, #tpu.memory_space<vmem>>) attributes {dimension_semantics = [], scalar_prefetch = 0 : i64, scratch_operands = 0 : i64, tpu.core_type = #tpu.core_type<tc>} {
    %c0 = arith.constant 0 : index
    %c0_0 = arith.constant 0 : index
    %c0_1 = arith.constant 0 : index
    %0 = vector.load %arg0[%c0, %c0_0, %c0_1] : memref<3x3x256xf32, #tpu.memory_space<vmem>>, vector<1x3x256xf32>
    %1 = vector.shape_cast %0 : vector<1x3x256xf32> to vector<3x256xf32>
    %c1 = arith.constant 1 : index
    %c0_2 = arith.constant 0 : index
    %c0_3 = arith.constant 0 : index
    %2 = vector.load %arg0[%c1, %c0_2, %c0_3] : memref<3x3x256xf32, #tpu.memory_space<vmem>>, vector<1x3x256xf32>
    %3 = vector.shape_cast %2 : vector<1x3x256xf32> to vector<3x256xf32>
    %c2 = arith.constant 2 : index
    %c0_4 = arith.constant 0 : index
    %c0_5 = arith.constant 0 : index
    %4 = vector.load %arg0[%c2, %c0_4, %c0_5] : memref<3x3x256xf32, #tpu.memory_space<vmem>>, vector<1x3x256xf32>
    %5 = vector.shape_cast %4 : vector<1x3x256xf32> to vector<3x256xf32>
    %6 = arith.subf %5, %1 : vector<3x256xf32>
    %7 = arith.mulf %6, %6 : vector<3x256xf32>
    %cst = arith.constant dense<0.000000e+00> : vector<256xf32>
    %8 = vector.multi_reduction <add>, %7, %cst [0] : vector<3x256xf32> to vector<256xf32>
    %9 = vector.shape_cast %8 : vector<256xf32> to vector<1x256xf32>
    %10 = math.sqrt %9 : vector<1x256xf32>
    %c0_6 = arith.constant 0 : index
    %c0_7 = arith.constant 0 : index
    %11 = vector.load %arg1[%c0_6, %c0_7] : memref<392x128xf32, #tpu.memory_space<vmem>>, vector<48x13xf32>
    %c0_8 = arith.constant 0 : index
    %c13 = arith.constant 13 : index
    %12 = vector.load %arg1[%c0_8, %c13] : memref<392x128xf32, #tpu.memory_space<vmem>>, vector<48x1xf32>
    %13 = vector.extract_strided_slice %11 {offsets = [0, 0], sizes = [48, 1], strides = [1, 1]} : vector<48x13xf32> to vector<48x1xf32>
    %14 = vector.broadcast %13 : vector<48x1xf32> to vector<48x256xf32>
    %15 = vector.broadcast %10 : vector<1x256xf32> to vector<48x256xf32>
    %16 = arith.mulf %14, %15 : vector<48x256xf32>
    %17 = vector.extract_strided_slice %11 {offsets = [0, 1], sizes = [48, 3], strides = [1, 1]} : vector<48x13xf32> to vector<48x3xf32>
    %18 = vector.extract_strided_slice %17 {offsets = [0, 0], sizes = [48, 1], strides = [1, 1]} : vector<48x3xf32> to vector<48x1xf32>
    %19 = vector.extract_strided_slice %6 {offsets = [0, 0], sizes = [1, 256], strides = [1, 1]} : vector<3x256xf32> to vector<1x256xf32>
    %20 = vector.broadcast %18 : vector<48x1xf32> to vector<48x256xf32>
    %21 = vector.broadcast %19 : vector<1x256xf32> to vector<48x256xf32>
    %22 = arith.mulf %20, %21 : vector<48x256xf32>
    %23 = vector.extract_strided_slice %17 {offsets = [0, 1], sizes = [48, 1], strides = [1, 1]} : vector<48x3xf32> to vector<48x1xf32>
    %24 = vector.extract_strided_slice %6 {offsets = [1, 0], sizes = [1, 256], strides = [1, 1]} : vector<3x256xf32> to vector<1x256xf32>
    %25 = vector.broadcast %23 : vector<48x1xf32> to vector<48x256xf32>
    %26 = vector.broadcast %24 : vector<1x256xf32> to vector<48x256xf32>
    %27 = arith.mulf %25, %26 : vector<48x256xf32>
    %28 = arith.addf %22, %27 : vector<48x256xf32>
    %29 = vector.extract_strided_slice %17 {offsets = [0, 2], sizes = [48, 1], strides = [1, 1]} : vector<48x3xf32> to vector<48x1xf32>
    %30 = vector.extract_strided_slice %6 {offsets = [2, 0], sizes = [1, 256], strides = [1, 1]} : vector<3x256xf32> to vector<1x256xf32>
    %31 = vector.broadcast %29 : vector<48x1xf32> to vector<48x256xf32>
    %32 = vector.broadcast %30 : vector<1x256xf32> to vector<48x256xf32>
    %33 = arith.mulf %31, %32 : vector<48x256xf32>
    %34 = arith.addf %28, %33 : vector<48x256xf32>
    %35 = arith.addf %16, %34 : vector<48x256xf32>
    %36 = vector.extract_strided_slice %11 {offsets = [0, 4], sizes = [48, 3], strides = [1, 1]} : vector<48x13xf32> to vector<48x3xf32>
    %37 = vector.extract_strided_slice %36 {offsets = [0, 0], sizes = [48, 1], strides = [1, 1]} : vector<48x3xf32> to vector<48x1xf32>
    %38 = vector.extract_strided_slice %5 {offsets = [0, 0], sizes = [1, 256], strides = [1, 1]} : vector<3x256xf32> to vector<1x256xf32>
    %39 = vector.broadcast %37 : vector<48x1xf32> to vector<48x256xf32>
    %40 = vector.broadcast %38 : vector<1x256xf32> to vector<48x256xf32>
    %41 = arith.mulf %39, %40 : vector<48x256xf32>
    %42 = vector.extract_strided_slice %36 {offsets = [0, 1], sizes = [48, 1], strides = [1, 1]} : vector<48x3xf32> to vector<48x1xf32>
    %43 = vector.extract_strided_slice %5 {offsets = [1, 0], sizes = [1, 256], strides = [1, 1]} : vector<3x256xf32> to vector<1x256xf32>
    %44 = vector.broadcast %42 : vector<48x1xf32> to vector<48x256xf32>
    %45 = vector.broadcast %43 : vector<1x256xf32> to vector<48x256xf32>
    %46 = arith.mulf %44, %45 : vector<48x256xf32>
    %47 = arith.addf %41, %46 : vector<48x256xf32>
    %48 = vector.extract_strided_slice %36 {offsets = [0, 2], sizes = [48, 1], strides = [1, 1]} : vector<48x3xf32> to vector<48x1xf32>
    %49 = vector.extract_strided_slice %5 {offsets = [2, 0], sizes = [1, 256], strides = [1, 1]} : vector<3x256xf32> to vector<1x256xf32>
    %50 = vector.broadcast %48 : vector<48x1xf32> to vector<48x256xf32>
    %51 = vector.broadcast %49 : vector<1x256xf32> to vector<48x256xf32>
    %52 = arith.mulf %50, %51 : vector<48x256xf32>
    %53 = arith.addf %47, %52 : vector<48x256xf32>
    %54 = arith.addf %35, %53 : vector<48x256xf32>
    %55 = vector.extract_strided_slice %11 {offsets = [0, 7], sizes = [48, 3], strides = [1, 1]} : vector<48x13xf32> to vector<48x3xf32>
    %56 = vector.extract_strided_slice %55 {offsets = [0, 0], sizes = [48, 1], strides = [1, 1]} : vector<48x3xf32> to vector<48x1xf32>
    %57 = vector.extract_strided_slice %1 {offsets = [0, 0], sizes = [1, 256], strides = [1, 1]} : vector<3x256xf32> to vector<1x256xf32>
    %58 = vector.broadcast %56 : vector<48x1xf32> to vector<48x256xf32>
    %59 = vector.broadcast %57 : vector<1x256xf32> to vector<48x256xf32>
    %60 = arith.mulf %58, %59 : vector<48x256xf32>
    %61 = vector.extract_strided_slice %55 {offsets = [0, 1], sizes = [48, 1], strides = [1, 1]} : vector<48x3xf32> to vector<48x1xf32>
    %62 = vector.extract_strided_slice %1 {offsets = [1, 0], sizes = [1, 256], strides = [1, 1]} : vector<3x256xf32> to vector<1x256xf32>
    %63 = vector.broadcast %61 : vector<48x1xf32> to vector<48x256xf32>
    %64 = vector.broadcast %62 : vector<1x256xf32> to vector<48x256xf32>
    %65 = arith.mulf %63, %64 : vector<48x256xf32>
    %66 = arith.addf %60, %65 : vector<48x256xf32>
    %67 = vector.extract_strided_slice %55 {offsets = [0, 2], sizes = [48, 1], strides = [1, 1]} : vector<48x3xf32> to vector<48x1xf32>
    %68 = vector.extract_strided_slice %1 {offsets = [2, 0], sizes = [1, 256], strides = [1, 1]} : vector<3x256xf32> to vector<1x256xf32>
    %69 = vector.broadcast %67 : vector<48x1xf32> to vector<48x256xf32>
    %70 = vector.broadcast %68 : vector<1x256xf32> to vector<48x256xf32>
    %71 = arith.mulf %69, %70 : vector<48x256xf32>
    %72 = arith.addf %66, %71 : vector<48x256xf32>
    %73 = arith.addf %54, %72 : vector<48x256xf32>
    %74 = vector.extract_strided_slice %11 {offsets = [0, 10], sizes = [48, 3], strides = [1, 1]} : vector<48x13xf32> to vector<48x3xf32>
    %75 = vector.extract_strided_slice %74 {offsets = [0, 0], sizes = [48, 1], strides = [1, 1]} : vector<48x3xf32> to vector<48x1xf32>
    %76 = vector.extract_strided_slice %3 {offsets = [0, 0], sizes = [1, 256], strides = [1, 1]} : vector<3x256xf32> to vector<1x256xf32>
    %77 = vector.broadcast %75 : vector<48x1xf32> to vector<48x256xf32>
    %78 = vector.broadcast %76 : vector<1x256xf32> to vector<48x256xf32>
    %79 = arith.mulf %77, %78 : vector<48x256xf32>
    %80 = vector.extract_strided_slice %74 {offsets = [0, 1], sizes = [48, 1], strides = [1, 1]} : vector<48x3xf32> to vector<48x1xf32>
    %81 = vector.extract_strided_slice %3 {offsets = [1, 0], sizes = [1, 256], strides = [1, 1]} : vector<3x256xf32> to vector<1x256xf32>
    %82 = vector.broadcast %80 : vector<48x1xf32> to vector<48x256xf32>
    %83 = vector.broadcast %81 : vector<1x256xf32> to vector<48x256xf32>
    %84 = arith.mulf %82, %83 : vector<48x256xf32>
    %85 = arith.addf %79, %84 : vector<48x256xf32>
    %86 = vector.extract_strided_slice %74 {offsets = [0, 2], sizes = [48, 1], strides = [1, 1]} : vector<48x3xf32> to vector<48x1xf32>
    %87 = vector.extract_strided_slice %3 {offsets = [2, 0], sizes = [1, 256], strides = [1, 1]} : vector<3x256xf32> to vector<1x256xf32>
    %88 = vector.broadcast %86 : vector<48x1xf32> to vector<48x256xf32>
    %89 = vector.broadcast %87 : vector<1x256xf32> to vector<48x256xf32>
    %90 = arith.mulf %88, %89 : vector<48x256xf32>
    %91 = arith.addf %85, %90 : vector<48x256xf32>
    %92 = arith.addf %73, %91 : vector<48x256xf32>
    %93 = vector.broadcast %12 : vector<48x1xf32> to vector<48x256xf32>
    %94 = arith.addf %92, %93 : vector<48x256xf32>
    %cst_9 = arith.constant 0.000000e+00 : f32
    %95 = vector.broadcast %cst_9 : f32 to vector<48x256xf32>
    %96 = arith.maximumf %94, %95 : vector<48x256xf32>
    %97 = vector.extract_strided_slice %96 {offsets = [0, 0], sizes = [16, 256], strides = [1, 1]} : vector<48x256xf32> to vector<16x256xf32>
    %98 = vector.extract_strided_slice %96 {offsets = [16, 0], sizes = [32, 256], strides = [1, 1]} : vector<48x256xf32> to vector<32x256xf32>
    %c48 = arith.constant 48 : index
    %c0_10 = arith.constant 0 : index
    %99 = vector.load %arg1[%c48, %c0_10] : memref<392x128xf32, #tpu.memory_space<vmem>>, vector<28x16xf32>
    %c48_11 = arith.constant 48 : index
    %c16 = arith.constant 16 : index
    %100 = vector.load %arg1[%c48_11, %c16] : memref<392x128xf32, #tpu.memory_space<vmem>>, vector<28x1xf32>
    %cst_12 = arith.constant dense<0.000000e+00> : vector<28x256xf32>
    %101 = tpu.matmul %99, %97, %cst_12 {dimension_numbers = #tpu.dot_dimension_numbers<[1], [0], [0], [1], [0, 0, 1, 1], [], []>} : vector<28x16xf32>, vector<16x256xf32>, vector<28x256xf32> -> vector<28x256xf32>
    %102 = vector.broadcast %100 : vector<28x1xf32> to vector<28x256xf32>
    %103 = arith.addf %101, %102 : vector<28x256xf32>
    %cst_13 = arith.constant 0.000000e+00 : f32
    %104 = vector.broadcast %cst_13 : f32 to vector<28x256xf32>
    %105 = arith.maximumf %103, %104 : vector<28x256xf32>
    %c80 = arith.constant 80 : index
    %c0_14 = arith.constant 0 : index
    %106 = vector.load %arg1[%c80, %c0_14] : memref<392x128xf32, #tpu.memory_space<vmem>>, vector<9x3xf32>
    %c80_15 = arith.constant 80 : index
    %c3 = arith.constant 3 : index
    %107 = vector.load %arg1[%c80_15, %c3] : memref<392x128xf32, #tpu.memory_space<vmem>>, vector<9x1xf32>
    %108 = tpu.concatenate %1, %3 in 1 : vector<3x256xf32>, vector<3x256xf32> -> vector<3x512xf32>
    %109 = vector.extract_strided_slice %106 {offsets = [0, 0], sizes = [9, 1], strides = [1, 1]} : vector<9x3xf32> to vector<9x1xf32>
    %110 = vector.extract_strided_slice %108 {offsets = [0, 0], sizes = [1, 512], strides = [1, 1]} : vector<3x512xf32> to vector<1x512xf32>
    %111 = vector.broadcast %109 : vector<9x1xf32> to vector<9x512xf32>
    %112 = vector.broadcast %110 : vector<1x512xf32> to vector<9x512xf32>
    %113 = arith.mulf %111, %112 : vector<9x512xf32>
    %114 = vector.extract_strided_slice %106 {offsets = [0, 1], sizes = [9, 1], strides = [1, 1]} : vector<9x3xf32> to vector<9x1xf32>
    %115 = vector.extract_strided_slice %108 {offsets = [1, 0], sizes = [1, 512], strides = [1, 1]} : vector<3x512xf32> to vector<1x512xf32>
    %116 = vector.broadcast %114 : vector<9x1xf32> to vector<9x512xf32>
    %117 = vector.broadcast %115 : vector<1x512xf32> to vector<9x512xf32>
    %118 = arith.mulf %116, %117 : vector<9x512xf32>
    %119 = arith.addf %113, %118 : vector<9x512xf32>
    %120 = vector.extract_strided_slice %106 {offsets = [0, 2], sizes = [9, 1], strides = [1, 1]} : vector<9x3xf32> to vector<9x1xf32>
    %121 = vector.extract_strided_slice %108 {offsets = [2, 0], sizes = [1, 512], strides = [1, 1]} : vector<3x512xf32> to vector<1x512xf32>
    %122 = vector.broadcast %120 : vector<9x1xf32> to vector<9x512xf32>
    %123 = vector.broadcast %121 : vector<1x512xf32> to vector<9x512xf32>
    %124 = arith.mulf %122, %123 : vector<9x512xf32>
    %125 = arith.addf %119, %124 : vector<9x512xf32>
    %126 = vector.broadcast %107 : vector<9x1xf32> to vector<9x512xf32>
    %127 = arith.addf %125, %126 : vector<9x512xf32>
    %cst_16 = arith.constant 0.000000e+00 : f32
    %128 = vector.broadcast %cst_16 : f32 to vector<9x512xf32>
    %129 = arith.maximumf %127, %128 : vector<9x512xf32>
    %c96 = arith.constant 96 : index
    %c0_17 = arith.constant 0 : index
    %130 = vector.load %arg1[%c96, %c0_17] : memref<392x128xf32, #tpu.memory_space<vmem>>, vector<18x9xf32>
    %c96_18 = arith.constant 96 : index
    %c9 = arith.constant 9 : index
    %131 = vector.load %arg1[%c96_18, %c9] : memref<392x128xf32, #tpu.memory_space<vmem>>, vector<18x1xf32>
    %cst_19 = arith.constant dense<0.000000e+00> : vector<18x512xf32>
    %132 = tpu.matmul %130, %129, %cst_19 {dimension_numbers = #tpu.dot_dimension_numbers<[1], [0], [0], [1], [0, 0, 1, 1], [], []>} : vector<18x9xf32>, vector<9x512xf32>, vector<18x512xf32> -> vector<18x512xf32>
    %133 = vector.broadcast %131 : vector<18x1xf32> to vector<18x512xf32>
    %134 = arith.addf %132, %133 : vector<18x512xf32>
    %cst_20 = arith.constant 0.000000e+00 : f32
    %135 = vector.broadcast %cst_20 : f32 to vector<18x512xf32>
    %136 = arith.maximumf %134, %135 : vector<18x512xf32>
    %137 = vector.extract_strided_slice %136 {offsets = [0, 0], sizes = [18, 256], strides = [1, 1]} : vector<18x512xf32> to vector<18x256xf32>
    %138 = vector.extract_strided_slice %136 {offsets = [0, 256], sizes = [18, 256], strides = [1, 1]} : vector<18x512xf32> to vector<18x256xf32>
    %139 = tpu.concatenate %105, %137, %138 in 0 : vector<28x256xf32>, vector<18x256xf32>, vector<18x256xf32> -> vector<64x256xf32>
    %c120 = arith.constant 120 : index
    %c0_21 = arith.constant 0 : index
    %140 = vector.load %arg1[%c120, %c0_21] : memref<392x128xf32, #tpu.memory_space<vmem>>, vector<64x32xf32>
    %c120_22 = arith.constant 120 : index
    %c32 = arith.constant 32 : index
    %141 = vector.load %arg1[%c120_22, %c32] : memref<392x128xf32, #tpu.memory_space<vmem>>, vector<64x1xf32>
    %cst_23 = arith.constant dense<0.000000e+00> : vector<64x256xf32>
    %142 = tpu.matmul %140, %98, %cst_23 {dimension_numbers = #tpu.dot_dimension_numbers<[1], [0], [0], [1], [0, 0, 1, 1], [], []>} : vector<64x32xf32>, vector<32x256xf32>, vector<64x256xf32> -> vector<64x256xf32>
    %143 = vector.broadcast %141 : vector<64x1xf32> to vector<64x256xf32>
    %144 = arith.addf %142, %143 : vector<64x256xf32>
    %cst_24 = arith.constant 0.000000e+00 : f32
    %145 = vector.broadcast %cst_24 : f32 to vector<64x256xf32>
    %146 = arith.maximumf %144, %145 : vector<64x256xf32>
    %c184 = arith.constant 184 : index
    %c0_25 = arith.constant 0 : index
    %147 = vector.load %arg1[%c184, %c0_25] : memref<392x128xf32, #tpu.memory_space<vmem>>, vector<4x64xf32>
    %c184_26 = arith.constant 184 : index
    %c64 = arith.constant 64 : index
    %148 = vector.load %arg1[%c184_26, %c64] : memref<392x128xf32, #tpu.memory_space<vmem>>, vector<4x1xf32>
    %c192 = arith.constant 192 : index
    %c0_27 = arith.constant 0 : index
    %149 = vector.load %arg1[%c192, %c0_27] : memref<392x128xf32, #tpu.memory_space<vmem>>, vector<64x4xf32>
    %c192_28 = arith.constant 192 : index
    %c4 = arith.constant 4 : index
    %150 = vector.load %arg1[%c192_28, %c4] : memref<392x128xf32, #tpu.memory_space<vmem>>, vector<64x1xf32>
    %c384 = arith.constant 384 : index
    %c0_29 = arith.constant 0 : index
    %151 = vector.load %arg1[%c384, %c0_29] : memref<392x128xf32, #tpu.memory_space<vmem>>, vector<1x15xf32>
    %152 = tpu.iota {dimensions = array<i32: 1>} : vector<1x256xi32>
    %c127_i32 = arith.constant 127 : i32
    %153 = vector.broadcast %c127_i32 : i32 to vector<1x256xi32>
    %154 = arith.andi %152, %153 : vector<1x256xi32>
    %155 = vector.extract_strided_slice %139 {offsets = [0, 0], sizes = [64, 128], strides = [1, 1]} : vector<64x256xf32> to vector<64x128xf32>
    %cst_30 = arith.constant dense<0.000000e+00> : vector<64xf32>
    %156 = vector.multi_reduction <add>, %155, %cst_30 [1] : vector<64x128xf32> to vector<64xf32>
    %157 = vector.shape_cast %156 : vector<64xf32> to vector<64x1xf32>
    %cst_31 = arith.constant 1.280000e+02 : f32
    %158 = vector.broadcast %cst_31 : f32 to vector<64x1xf32>
    %159 = arith.divf %157, %158 : vector<64x1xf32>
    %cst_32 = arith.constant dense<0xFF800000> : vector<64xf32>
    %160 = vector.multi_reduction <maximumf>, %155, %cst_32 [1] : vector<64x128xf32> to vector<64xf32>
    %161 = vector.shape_cast %160 : vector<64xf32> to vector<64x1xf32>
    %162 = vector.extract_strided_slice %139 {offsets = [0, 128], sizes = [64, 128], strides = [1, 1]} : vector<64x256xf32> to vector<64x128xf32>
    %cst_33 = arith.constant dense<0.000000e+00> : vector<64xf32>
    %163 = vector.multi_reduction <add>, %162, %cst_33 [1] : vector<64x128xf32> to vector<64xf32>
    %164 = vector.shape_cast %163 : vector<64xf32> to vector<64x1xf32>
    %cst_34 = arith.constant 1.280000e+02 : f32
    %165 = vector.broadcast %cst_34 : f32 to vector<64x1xf32>
    %166 = arith.divf %164, %165 : vector<64x1xf32>
    %cst_35 = arith.constant dense<0xFF800000> : vector<64xf32>
    %167 = vector.multi_reduction <maximumf>, %162, %cst_35 [1] : vector<64x128xf32> to vector<64xf32>
    %168 = vector.shape_cast %167 : vector<64xf32> to vector<64x1xf32>
    %169 = tpu.concatenate %159, %161, %166, %168 in 1 : vector<64x1xf32>, vector<64x1xf32>, vector<64x1xf32>, vector<64x1xf32> -> vector<64x4xf32>
    %cst_36 = arith.constant dense<0.000000e+00> : vector<4x4xf32>
    %170 = tpu.matmul %147, %169, %cst_36 {dimension_numbers = #tpu.dot_dimension_numbers<[1], [0], [0], [1], [0, 0, 1, 1], [], []>} : vector<4x64xf32>, vector<64x4xf32>, vector<4x4xf32> -> vector<4x4xf32>
    %171 = vector.broadcast %148 : vector<4x1xf32> to vector<4x4xf32>
    %172 = arith.addf %170, %171 : vector<4x4xf32>
    %cst_37 = arith.constant 0.000000e+00 : f32
    %173 = vector.broadcast %cst_37 : f32 to vector<4x4xf32>
    %174 = arith.maximumf %172, %173 : vector<4x4xf32>
    %cst_38 = arith.constant dense<0.000000e+00> : vector<64x4xf32>
    %175 = tpu.matmul %149, %174, %cst_38 {dimension_numbers = #tpu.dot_dimension_numbers<[1], [0], [0], [1], [0, 0, 1, 1], [], []>} : vector<64x4xf32>, vector<4x4xf32>, vector<64x4xf32> -> vector<64x4xf32>
    %176 = vector.broadcast %150 : vector<64x1xf32> to vector<64x4xf32>
    %177 = arith.addf %175, %176 : vector<64x4xf32>
    %178 = vector.extract_strided_slice %177 {offsets = [0, 0], sizes = [64, 1], strides = [1, 1]} : vector<64x4xf32> to vector<64x1xf32>
    %179 = vector.extract_strided_slice %177 {offsets = [0, 1], sizes = [64, 1], strides = [1, 1]} : vector<64x4xf32> to vector<64x1xf32>
    %180 = arith.addf %178, %179 : vector<64x1xf32>
    %181 = arith.negf %180 : vector<64x1xf32>
    %182 = math.exp %181 : vector<64x1xf32>
    %cst_39 = arith.constant 1.000000e+00 : f32
    %183 = vector.broadcast %cst_39 : f32 to vector<64x1xf32>
    %184 = arith.addf %183, %182 : vector<64x1xf32>
    %185 = arith.divf %183, %184 : vector<64x1xf32>
    %186 = vector.shape_cast %185 : vector<64x1xf32> to vector<64x1xf32>
    %187 = vector.broadcast %186 : vector<64x1xf32> to vector<64x128xf32>
    %188 = vector.extract_strided_slice %177 {offsets = [0, 2], sizes = [64, 1], strides = [1, 1]} : vector<64x4xf32> to vector<64x1xf32>
    %189 = vector.extract_strided_slice %177 {offsets = [0, 3], sizes = [64, 1], strides = [1, 1]} : vector<64x4xf32> to vector<64x1xf32>
    %190 = arith.addf %188, %189 : vector<64x1xf32>
    %191 = arith.negf %190 : vector<64x1xf32>
    %192 = math.exp %191 : vector<64x1xf32>
    %cst_40 = arith.constant 1.000000e+00 : f32
    %193 = vector.broadcast %cst_40 : f32 to vector<64x1xf32>
    %194 = arith.addf %193, %192 : vector<64x1xf32>
    %195 = arith.divf %193, %194 : vector<64x1xf32>
    %196 = vector.shape_cast %195 : vector<64x1xf32> to vector<64x1xf32>
    %197 = vector.broadcast %196 : vector<64x1xf32> to vector<64x128xf32>
    %198 = tpu.concatenate %187, %197 in 1 : vector<64x128xf32>, vector<64x128xf32> -> vector<64x256xf32>
    %199 = arith.mulf %139, %198 : vector<64x256xf32>
    %cst_41 = arith.constant dense<0.000000e+00> : vector<256xf32>
    %200 = vector.multi_reduction <add>, %199, %cst_41 [0] : vector<64x256xf32> to vector<256xf32>
    %201 = vector.shape_cast %200 : vector<256xf32> to vector<1x256xf32>
    %cst_42 = arith.constant 6.400000e+01 : f32
    %202 = vector.broadcast %cst_42 : f32 to vector<1x256xf32>
    %203 = arith.divf %201, %202 : vector<1x256xf32>
    %cst_43 = arith.constant dense<0xFF800000> : vector<256xf32>
    %204 = vector.multi_reduction <maximumf>, %199, %cst_43 [0] : vector<64x256xf32> to vector<256xf32>
    %205 = vector.shape_cast %204 : vector<256xf32> to vector<1x256xf32>
    %cst_44 = arith.constant 0.000000e+00 : f32
    %206 = vector.broadcast %cst_44 : f32 to vector<1x256xf32>
    %207 = vector.extract_strided_slice %151 {offsets = [0, 14], sizes = [1, 1], strides = [1, 1]} : vector<1x15xf32> to vector<1x1xf32>
    %208 = vector.broadcast %207 : vector<1x1xf32> to vector<1x256xf32>
    %209 = arith.addf %206, %208 : vector<1x256xf32>
    %210 = vector.extract_strided_slice %151 {offsets = [0, 0], sizes = [1, 1], strides = [1, 1]} : vector<1x15xf32> to vector<1x1xf32>
    %211 = vector.extract_strided_slice %151 {offsets = [0, 7], sizes = [1, 1], strides = [1, 1]} : vector<1x15xf32> to vector<1x1xf32>
    %c3_i32 = arith.constant 3 : i32
    %212 = tpu.dynamic_rotate %203 by %c3_i32 dim 1 : vector<1x256xf32>, i32 -> vector<1x256xf32>
    %c3_i32_45 = arith.constant 3 : i32
    %213 = tpu.dynamic_rotate %205 by %c3_i32_45 dim 1 : vector<1x256xf32>, i32 -> vector<1x256xf32>
    %c-3_i32 = arith.constant -3 : i32
    %214 = vector.broadcast %c-3_i32 : i32 to vector<1x256xi32>
    %215 = arith.addi %154, %214 : vector<1x256xi32>
    %c0_i32 = arith.constant 0 : i32
    %216 = vector.broadcast %c0_i32 : i32 to vector<1x256xi32>
    %217 = arith.cmpi sge, %215, %216 : vector<1x256xi32>
    %c-3_i32_46 = arith.constant -3 : i32
    %218 = vector.broadcast %c-3_i32_46 : i32 to vector<1x256xi32>
    %219 = arith.addi %154, %218 : vector<1x256xi32>
    %c128_i32 = arith.constant 128 : i32
    %220 = vector.broadcast %c128_i32 : i32 to vector<1x256xi32>
    %221 = arith.cmpi slt, %219, %220 : vector<1x256xi32>
    %222 = arith.andi %217, %221 : vector<1x256xi1>
    %223 = vector.broadcast %210 : vector<1x1xf32> to vector<1x256xf32>
    %224 = arith.mulf %223, %212 : vector<1x256xf32>
    %225 = vector.broadcast %211 : vector<1x1xf32> to vector<1x256xf32>
    %226 = arith.mulf %225, %213 : vector<1x256xf32>
    %227 = arith.addf %224, %226 : vector<1x256xf32>
    %cst_47 = arith.constant 0.000000e+00 : f32
    %228 = vector.broadcast %cst_47 : f32 to vector<1x256xf32>
    %229 = arith.select %222, %227, %228 : vector<1x256xi1>, vector<1x256xf32>
    %230 = arith.addf %209, %229 : vector<1x256xf32>
    %231 = vector.extract_strided_slice %151 {offsets = [0, 1], sizes = [1, 1], strides = [1, 1]} : vector<1x15xf32> to vector<1x1xf32>
    %232 = vector.extract_strided_slice %151 {offsets = [0, 8], sizes = [1, 1], strides = [1, 1]} : vector<1x15xf32> to vector<1x1xf32>
    %c2_i32 = arith.constant 2 : i32
    %233 = tpu.dynamic_rotate %203 by %c2_i32 dim 1 : vector<1x256xf32>, i32 -> vector<1x256xf32>
    %c2_i32_48 = arith.constant 2 : i32
    %234 = tpu.dynamic_rotate %205 by %c2_i32_48 dim 1 : vector<1x256xf32>, i32 -> vector<1x256xf32>
    %c-2_i32 = arith.constant -2 : i32
    %235 = vector.broadcast %c-2_i32 : i32 to vector<1x256xi32>
    %236 = arith.addi %154, %235 : vector<1x256xi32>
    %c0_i32_49 = arith.constant 0 : i32
    %237 = vector.broadcast %c0_i32_49 : i32 to vector<1x256xi32>
    %238 = arith.cmpi sge, %236, %237 : vector<1x256xi32>
    %c-2_i32_50 = arith.constant -2 : i32
    %239 = vector.broadcast %c-2_i32_50 : i32 to vector<1x256xi32>
    %240 = arith.addi %154, %239 : vector<1x256xi32>
    %c128_i32_51 = arith.constant 128 : i32
    %241 = vector.broadcast %c128_i32_51 : i32 to vector<1x256xi32>
    %242 = arith.cmpi slt, %240, %241 : vector<1x256xi32>
    %243 = arith.andi %238, %242 : vector<1x256xi1>
    %244 = vector.broadcast %231 : vector<1x1xf32> to vector<1x256xf32>
    %245 = arith.mulf %244, %233 : vector<1x256xf32>
    %246 = vector.broadcast %232 : vector<1x1xf32> to vector<1x256xf32>
    %247 = arith.mulf %246, %234 : vector<1x256xf32>
    %248 = arith.addf %245, %247 : vector<1x256xf32>
    %cst_52 = arith.constant 0.000000e+00 : f32
    %249 = vector.broadcast %cst_52 : f32 to vector<1x256xf32>
    %250 = arith.select %243, %248, %249 : vector<1x256xi1>, vector<1x256xf32>
    %251 = arith.addf %230, %250 : vector<1x256xf32>
    %252 = vector.extract_strided_slice %151 {offsets = [0, 2], sizes = [1, 1], strides = [1, 1]} : vector<1x15xf32> to vector<1x1xf32>
    %253 = vector.extract_strided_slice %151 {offsets = [0, 9], sizes = [1, 1], strides = [1, 1]} : vector<1x15xf32> to vector<1x1xf32>
    %c1_i32 = arith.constant 1 : i32
    %254 = tpu.dynamic_rotate %203 by %c1_i32 dim 1 : vector<1x256xf32>, i32 -> vector<1x256xf32>
    %c1_i32_53 = arith.constant 1 : i32
    %255 = tpu.dynamic_rotate %205 by %c1_i32_53 dim 1 : vector<1x256xf32>, i32 -> vector<1x256xf32>
    %c-1_i32 = arith.constant -1 : i32
    %256 = vector.broadcast %c-1_i32 : i32 to vector<1x256xi32>
    %257 = arith.addi %154, %256 : vector<1x256xi32>
    %c0_i32_54 = arith.constant 0 : i32
    %258 = vector.broadcast %c0_i32_54 : i32 to vector<1x256xi32>
    %259 = arith.cmpi sge, %257, %258 : vector<1x256xi32>
    %c-1_i32_55 = arith.constant -1 : i32
    %260 = vector.broadcast %c-1_i32_55 : i32 to vector<1x256xi32>
    %261 = arith.addi %154, %260 : vector<1x256xi32>
    %c128_i32_56 = arith.constant 128 : i32
    %262 = vector.broadcast %c128_i32_56 : i32 to vector<1x256xi32>
    %263 = arith.cmpi slt, %261, %262 : vector<1x256xi32>
    %264 = arith.andi %259, %263 : vector<1x256xi1>
    %265 = vector.broadcast %252 : vector<1x1xf32> to vector<1x256xf32>
    %266 = arith.mulf %265, %254 : vector<1x256xf32>
    %267 = vector.broadcast %253 : vector<1x1xf32> to vector<1x256xf32>
    %268 = arith.mulf %267, %255 : vector<1x256xf32>
    %269 = arith.addf %266, %268 : vector<1x256xf32>
    %cst_57 = arith.constant 0.000000e+00 : f32
    %270 = vector.broadcast %cst_57 : f32 to vector<1x256xf32>
    %271 = arith.select %264, %269, %270 : vector<1x256xi1>, vector<1x256xf32>
    %272 = arith.addf %251, %271 : vector<1x256xf32>
    %273 = vector.extract_strided_slice %151 {offsets = [0, 3], sizes = [1, 1], strides = [1, 1]} : vector<1x15xf32> to vector<1x1xf32>
    %274 = vector.extract_strided_slice %151 {offsets = [0, 10], sizes = [1, 1], strides = [1, 1]} : vector<1x15xf32> to vector<1x1xf32>
    %275 = vector.broadcast %273 : vector<1x1xf32> to vector<1x256xf32>
    %276 = arith.mulf %275, %203 : vector<1x256xf32>
    %277 = arith.addf %272, %276 : vector<1x256xf32>
    %278 = vector.broadcast %274 : vector<1x1xf32> to vector<1x256xf32>
    %279 = arith.mulf %278, %205 : vector<1x256xf32>
    %280 = arith.addf %277, %279 : vector<1x256xf32>
    %281 = vector.extract_strided_slice %151 {offsets = [0, 4], sizes = [1, 1], strides = [1, 1]} : vector<1x15xf32> to vector<1x1xf32>
    %282 = vector.extract_strided_slice %151 {offsets = [0, 11], sizes = [1, 1], strides = [1, 1]} : vector<1x15xf32> to vector<1x1xf32>
    %c255_i32 = arith.constant 255 : i32
    %283 = tpu.dynamic_rotate %203 by %c255_i32 dim 1 : vector<1x256xf32>, i32 -> vector<1x256xf32>
    %c255_i32_58 = arith.constant 255 : i32
    %284 = tpu.dynamic_rotate %205 by %c255_i32_58 dim 1 : vector<1x256xf32>, i32 -> vector<1x256xf32>
    %c1_i32_59 = arith.constant 1 : i32
    %285 = vector.broadcast %c1_i32_59 : i32 to vector<1x256xi32>
    %286 = arith.addi %154, %285 : vector<1x256xi32>
    %c0_i32_60 = arith.constant 0 : i32
    %287 = vector.broadcast %c0_i32_60 : i32 to vector<1x256xi32>
    %288 = arith.cmpi sge, %286, %287 : vector<1x256xi32>
    %c1_i32_61 = arith.constant 1 : i32
    %289 = vector.broadcast %c1_i32_61 : i32 to vector<1x256xi32>
    %290 = arith.addi %154, %289 : vector<1x256xi32>
    %c128_i32_62 = arith.constant 128 : i32
    %291 = vector.broadcast %c128_i32_62 : i32 to vector<1x256xi32>
    %292 = arith.cmpi slt, %290, %291 : vector<1x256xi32>
    %293 = arith.andi %288, %292 : vector<1x256xi1>
    %294 = vector.broadcast %281 : vector<1x1xf32> to vector<1x256xf32>
    %295 = arith.mulf %294, %283 : vector<1x256xf32>
    %296 = vector.broadcast %282 : vector<1x1xf32> to vector<1x256xf32>
    %297 = arith.mulf %296, %284 : vector<1x256xf32>
    %298 = arith.addf %295, %297 : vector<1x256xf32>
    %cst_63 = arith.constant 0.000000e+00 : f32
    %299 = vector.broadcast %cst_63 : f32 to vector<1x256xf32>
    %300 = arith.select %293, %298, %299 : vector<1x256xi1>, vector<1x256xf32>
    %301 = arith.addf %280, %300 : vector<1x256xf32>
    %302 = vector.extract_strided_slice %151 {offsets = [0, 5], sizes = [1, 1], strides = [1, 1]} : vector<1x15xf32> to vector<1x1xf32>
    %303 = vector.extract_strided_slice %151 {offsets = [0, 12], sizes = [1, 1], strides = [1, 1]} : vector<1x15xf32> to vector<1x1xf32>
    %c254_i32 = arith.constant 254 : i32
    %304 = tpu.dynamic_rotate %203 by %c254_i32 dim 1 : vector<1x256xf32>, i32 -> vector<1x256xf32>
    %c254_i32_64 = arith.constant 254 : i32
    %305 = tpu.dynamic_rotate %205 by %c254_i32_64 dim 1 : vector<1x256xf32>, i32 -> vector<1x256xf32>
    %c2_i32_65 = arith.constant 2 : i32
    %306 = vector.broadcast %c2_i32_65 : i32 to vector<1x256xi32>
    %307 = arith.addi %154, %306 : vector<1x256xi32>
    %c0_i32_66 = arith.constant 0 : i32
    %308 = vector.broadcast %c0_i32_66 : i32 to vector<1x256xi32>
    %309 = arith.cmpi sge, %307, %308 : vector<1x256xi32>
    %c2_i32_67 = arith.constant 2 : i32
    %310 = vector.broadcast %c2_i32_67 : i32 to vector<1x256xi32>
    %311 = arith.addi %154, %310 : vector<1x256xi32>
    %c128_i32_68 = arith.constant 128 : i32
    %312 = vector.broadcast %c128_i32_68 : i32 to vector<1x256xi32>
    %313 = arith.cmpi slt, %311, %312 : vector<1x256xi32>
    %314 = arith.andi %309, %313 : vector<1x256xi1>
    %315 = vector.broadcast %302 : vector<1x1xf32> to vector<1x256xf32>
    %316 = arith.mulf %315, %304 : vector<1x256xf32>
    %317 = vector.broadcast %303 : vector<1x1xf32> to vector<1x256xf32>
    %318 = arith.mulf %317, %305 : vector<1x256xf32>
    %319 = arith.addf %316, %318 : vector<1x256xf32>
    %cst_69 = arith.constant 0.000000e+00 : f32
    %320 = vector.broadcast %cst_69 : f32 to vector<1x256xf32>
    %321 = arith.select %314, %319, %320 : vector<1x256xi1>, vector<1x256xf32>
    %322 = arith.addf %301, %321 : vector<1x256xf32>
    %323 = vector.extract_strided_slice %151 {offsets = [0, 6], sizes = [1, 1], strides = [1, 1]} : vector<1x15xf32> to vector<1x1xf32>
    %324 = vector.extract_strided_slice %151 {offsets = [0, 13], sizes = [1, 1], strides = [1, 1]} : vector<1x15xf32> to vector<1x1xf32>
    %c253_i32 = arith.constant 253 : i32
    %325 = tpu.dynamic_rotate %203 by %c253_i32 dim 1 : vector<1x256xf32>, i32 -> vector<1x256xf32>
    %c253_i32_70 = arith.constant 253 : i32
    %326 = tpu.dynamic_rotate %205 by %c253_i32_70 dim 1 : vector<1x256xf32>, i32 -> vector<1x256xf32>
    %c3_i32_71 = arith.constant 3 : i32
    %327 = vector.broadcast %c3_i32_71 : i32 to vector<1x256xi32>
    %328 = arith.addi %154, %327 : vector<1x256xi32>
    %c0_i32_72 = arith.constant 0 : i32
    %329 = vector.broadcast %c0_i32_72 : i32 to vector<1x256xi32>
    %330 = arith.cmpi sge, %328, %329 : vector<1x256xi32>
    %c3_i32_73 = arith.constant 3 : i32
    %331 = vector.broadcast %c3_i32_73 : i32 to vector<1x256xi32>
    %332 = arith.addi %154, %331 : vector<1x256xi32>
    %c128_i32_74 = arith.constant 128 : i32
    %333 = vector.broadcast %c128_i32_74 : i32 to vector<1x256xi32>
    %334 = arith.cmpi slt, %332, %333 : vector<1x256xi32>
    %335 = arith.andi %330, %334 : vector<1x256xi1>
    %336 = vector.broadcast %323 : vector<1x1xf32> to vector<1x256xf32>
    %337 = arith.mulf %336, %325 : vector<1x256xf32>
    %338 = vector.broadcast %324 : vector<1x1xf32> to vector<1x256xf32>
    %339 = arith.mulf %338, %326 : vector<1x256xf32>
    %340 = arith.addf %337, %339 : vector<1x256xf32>
    %cst_75 = arith.constant 0.000000e+00 : f32
    %341 = vector.broadcast %cst_75 : f32 to vector<1x256xf32>
    %342 = arith.select %335, %340, %341 : vector<1x256xi1>, vector<1x256xf32>
    %343 = arith.addf %322, %342 : vector<1x256xf32>
    %344 = arith.negf %343 : vector<1x256xf32>
    %345 = math.exp %344 : vector<1x256xf32>
    %cst_76 = arith.constant 1.000000e+00 : f32
    %346 = vector.broadcast %cst_76 : f32 to vector<1x256xf32>
    %347 = arith.addf %346, %345 : vector<1x256xf32>
    %348 = arith.divf %346, %347 : vector<1x256xf32>
    %349 = vector.broadcast %348 : vector<1x256xf32> to vector<64x256xf32>
    %350 = arith.mulf %199, %349 : vector<64x256xf32>
    %c192_i32 = arith.constant 192 : i32
    %351 = tpu.dynamic_rotate %350 by %c192_i32 dim 1 : vector<64x256xf32>, i32 -> vector<64x256xf32>
    %352 = arith.maximumf %350, %351 : vector<64x256xf32>
    %c224_i32 = arith.constant 224 : i32
    %353 = tpu.dynamic_rotate %352 by %c224_i32 dim 1 : vector<64x256xf32>, i32 -> vector<64x256xf32>
    %354 = arith.maximumf %352, %353 : vector<64x256xf32>
    %c240_i32 = arith.constant 240 : i32
    %355 = tpu.dynamic_rotate %354 by %c240_i32 dim 1 : vector<64x256xf32>, i32 -> vector<64x256xf32>
    %356 = arith.maximumf %354, %355 : vector<64x256xf32>
    %c248_i32 = arith.constant 248 : i32
    %357 = tpu.dynamic_rotate %356 by %c248_i32 dim 1 : vector<64x256xf32>, i32 -> vector<64x256xf32>
    %358 = arith.maximumf %356, %357 : vector<64x256xf32>
    %359 = vector.extract_strided_slice %146 {offsets = [0, 0], sizes = [64, 128], strides = [1, 1]} : vector<64x256xf32> to vector<64x128xf32>
    %cst_77 = arith.constant dense<0.000000e+00> : vector<64xf32>
    %360 = vector.multi_reduction <add>, %359, %cst_77 [1] : vector<64x128xf32> to vector<64xf32>
    %361 = vector.shape_cast %360 : vector<64xf32> to vector<64x1xf32>
    %cst_78 = arith.constant 1.280000e+02 : f32
    %362 = vector.broadcast %cst_78 : f32 to vector<64x1xf32>
    %363 = arith.divf %361, %362 : vector<64x1xf32>
    %cst_79 = arith.constant dense<0xFF800000> : vector<64xf32>
    %364 = vector.multi_reduction <maximumf>, %359, %cst_79 [1] : vector<64x128xf32> to vector<64xf32>
    %365 = vector.shape_cast %364 : vector<64xf32> to vector<64x1xf32>
    %366 = vector.extract_strided_slice %146 {offsets = [0, 128], sizes = [64, 128], strides = [1, 1]} : vector<64x256xf32> to vector<64x128xf32>
    %cst_80 = arith.constant dense<0.000000e+00> : vector<64xf32>
    %367 = vector.multi_reduction <add>, %366, %cst_80 [1] : vector<64x128xf32> to vector<64xf32>
    %368 = vector.shape_cast %367 : vector<64xf32> to vector<64x1xf32>
    %cst_81 = arith.constant 1.280000e+02 : f32
    %369 = vector.broadcast %cst_81 : f32 to vector<64x1xf32>
    %370 = arith.divf %368, %369 : vector<64x1xf32>
    %cst_82 = arith.constant dense<0xFF800000> : vector<64xf32>
    %371 = vector.multi_reduction <maximumf>, %366, %cst_82 [1] : vector<64x128xf32> to vector<64xf32>
    %372 = vector.shape_cast %371 : vector<64xf32> to vector<64x1xf32>
    %373 = tpu.concatenate %363, %365, %370, %372 in 1 : vector<64x1xf32>, vector<64x1xf32>, vector<64x1xf32>, vector<64x1xf32> -> vector<64x4xf32>
    %cst_83 = arith.constant dense<0.000000e+00> : vector<4x4xf32>
    %374 = tpu.matmul %147, %373, %cst_83 {dimension_numbers = #tpu.dot_dimension_numbers<[1], [0], [0], [1], [0, 0, 1, 1], [], []>} : vector<4x64xf32>, vector<64x4xf32>, vector<4x4xf32> -> vector<4x4xf32>
    %375 = vector.broadcast %148 : vector<4x1xf32> to vector<4x4xf32>
    %376 = arith.addf %374, %375 : vector<4x4xf32>
    %cst_84 = arith.constant 0.000000e+00 : f32
    %377 = vector.broadcast %cst_84 : f32 to vector<4x4xf32>
    %378 = arith.maximumf %376, %377 : vector<4x4xf32>
    %cst_85 = arith.constant dense<0.000000e+00> : vector<64x4xf32>
    %379 = tpu.matmul %149, %378, %cst_85 {dimension_numbers = #tpu.dot_dimension_numbers<[1], [0], [0], [1], [0, 0, 1, 1], [], []>} : vector<64x4xf32>, vector<4x4xf32>, vector<64x4xf32> -> vector<64x4xf32>
    %380 = vector.broadcast %150 : vector<64x1xf32> to vector<64x4xf32>
    %381 = arith.addf %379, %380 : vector<64x4xf32>
    %382 = vector.extract_strided_slice %381 {offsets = [0, 0], sizes = [64, 1], strides = [1, 1]} : vector<64x4xf32> to vector<64x1xf32>
    %383 = vector.extract_strided_slice %381 {offsets = [0, 1], sizes = [64, 1], strides = [1, 1]} : vector<64x4xf32> to vector<64x1xf32>
    %384 = arith.addf %382, %383 : vector<64x1xf32>
    %385 = arith.negf %384 : vector<64x1xf32>
    %386 = math.exp %385 : vector<64x1xf32>
    %cst_86 = arith.constant 1.000000e+00 : f32
    %387 = vector.broadcast %cst_86 : f32 to vector<64x1xf32>
    %388 = arith.addf %387, %386 : vector<64x1xf32>
    %389 = arith.divf %387, %388 : vector<64x1xf32>
    %390 = vector.shape_cast %389 : vector<64x1xf32> to vector<64x1xf32>
    %391 = vector.broadcast %390 : vector<64x1xf32> to vector<64x128xf32>
    %392 = vector.extract_strided_slice %381 {offsets = [0, 2], sizes = [64, 1], strides = [1, 1]} : vector<64x4xf32> to vector<64x1xf32>
    %393 = vector.extract_strided_slice %381 {offsets = [0, 3], sizes = [64, 1], strides = [1, 1]} : vector<64x4xf32> to vector<64x1xf32>
    %394 = arith.addf %392, %393 : vector<64x1xf32>
    %395 = arith.negf %394 : vector<64x1xf32>
    %396 = math.exp %395 : vector<64x1xf32>
    %cst_87 = arith.constant 1.000000e+00 : f32
    %397 = vector.broadcast %cst_87 : f32 to vector<64x1xf32>
    %398 = arith.addf %397, %396 : vector<64x1xf32>
    %399 = arith.divf %397, %398 : vector<64x1xf32>
    %400 = vector.shape_cast %399 : vector<64x1xf32> to vector<64x1xf32>
    %401 = vector.broadcast %400 : vector<64x1xf32> to vector<64x128xf32>
    %402 = tpu.concatenate %391, %401 in 1 : vector<64x128xf32>, vector<64x128xf32> -> vector<64x256xf32>
    %403 = arith.mulf %146, %402 : vector<64x256xf32>
    %cst_88 = arith.constant dense<0.000000e+00> : vector<256xf32>
    %404 = vector.multi_reduction <add>, %403, %cst_88 [0] : vector<64x256xf32> to vector<256xf32>
    %405 = vector.shape_cast %404 : vector<256xf32> to vector<1x256xf32>
    %cst_89 = arith.constant 6.400000e+01 : f32
    %406 = vector.broadcast %cst_89 : f32 to vector<1x256xf32>
    %407 = arith.divf %405, %406 : vector<1x256xf32>
    %cst_90 = arith.constant dense<0xFF800000> : vector<256xf32>
    %408 = vector.multi_reduction <maximumf>, %403, %cst_90 [0] : vector<64x256xf32> to vector<256xf32>
    %409 = vector.shape_cast %408 : vector<256xf32> to vector<1x256xf32>
    %cst_91 = arith.constant 0.000000e+00 : f32
    %410 = vector.broadcast %cst_91 : f32 to vector<1x256xf32>
    %411 = vector.extract_strided_slice %151 {offsets = [0, 14], sizes = [1, 1], strides = [1, 1]} : vector<1x15xf32> to vector<1x1xf32>
    %412 = vector.broadcast %411 : vector<1x1xf32> to vector<1x256xf32>
    %413 = arith.addf %410, %412 : vector<1x256xf32>
    %414 = vector.extract_strided_slice %151 {offsets = [0, 0], sizes = [1, 1], strides = [1, 1]} : vector<1x15xf32> to vector<1x1xf32>
    %415 = vector.extract_strided_slice %151 {offsets = [0, 7], sizes = [1, 1], strides = [1, 1]} : vector<1x15xf32> to vector<1x1xf32>
    %c3_i32_92 = arith.constant 3 : i32
    %416 = tpu.dynamic_rotate %407 by %c3_i32_92 dim 1 : vector<1x256xf32>, i32 -> vector<1x256xf32>
    %c3_i32_93 = arith.constant 3 : i32
    %417 = tpu.dynamic_rotate %409 by %c3_i32_93 dim 1 : vector<1x256xf32>, i32 -> vector<1x256xf32>
    %c-3_i32_94 = arith.constant -3 : i32
    %418 = vector.broadcast %c-3_i32_94 : i32 to vector<1x256xi32>
    %419 = arith.addi %154, %418 : vector<1x256xi32>
    %c0_i32_95 = arith.constant 0 : i32
    %420 = vector.broadcast %c0_i32_95 : i32 to vector<1x256xi32>
    %421 = arith.cmpi sge, %419, %420 : vector<1x256xi32>
    %c-3_i32_96 = arith.constant -3 : i32
    %422 = vector.broadcast %c-3_i32_96 : i32 to vector<1x256xi32>
    %423 = arith.addi %154, %422 : vector<1x256xi32>
    %c128_i32_97 = arith.constant 128 : i32
    %424 = vector.broadcast %c128_i32_97 : i32 to vector<1x256xi32>
    %425 = arith.cmpi slt, %423, %424 : vector<1x256xi32>
    %426 = arith.andi %421, %425 : vector<1x256xi1>
    %427 = vector.broadcast %414 : vector<1x1xf32> to vector<1x256xf32>
    %428 = arith.mulf %427, %416 : vector<1x256xf32>
    %429 = vector.broadcast %415 : vector<1x1xf32> to vector<1x256xf32>
    %430 = arith.mulf %429, %417 : vector<1x256xf32>
    %431 = arith.addf %428, %430 : vector<1x256xf32>
    %cst_98 = arith.constant 0.000000e+00 : f32
    %432 = vector.broadcast %cst_98 : f32 to vector<1x256xf32>
    %433 = arith.select %426, %431, %432 : vector<1x256xi1>, vector<1x256xf32>
    %434 = arith.addf %413, %433 : vector<1x256xf32>
    %435 = vector.extract_strided_slice %151 {offsets = [0, 1], sizes = [1, 1], strides = [1, 1]} : vector<1x15xf32> to vector<1x1xf32>
    %436 = vector.extract_strided_slice %151 {offsets = [0, 8], sizes = [1, 1], strides = [1, 1]} : vector<1x15xf32> to vector<1x1xf32>
    %c2_i32_99 = arith.constant 2 : i32
    %437 = tpu.dynamic_rotate %407 by %c2_i32_99 dim 1 : vector<1x256xf32>, i32 -> vector<1x256xf32>
    %c2_i32_100 = arith.constant 2 : i32
    %438 = tpu.dynamic_rotate %409 by %c2_i32_100 dim 1 : vector<1x256xf32>, i32 -> vector<1x256xf32>
    %c-2_i32_101 = arith.constant -2 : i32
    %439 = vector.broadcast %c-2_i32_101 : i32 to vector<1x256xi32>
    %440 = arith.addi %154, %439 : vector<1x256xi32>
    %c0_i32_102 = arith.constant 0 : i32
    %441 = vector.broadcast %c0_i32_102 : i32 to vector<1x256xi32>
    %442 = arith.cmpi sge, %440, %441 : vector<1x256xi32>
    %c-2_i32_103 = arith.constant -2 : i32
    %443 = vector.broadcast %c-2_i32_103 : i32 to vector<1x256xi32>
    %444 = arith.addi %154, %443 : vector<1x256xi32>
    %c128_i32_104 = arith.constant 128 : i32
    %445 = vector.broadcast %c128_i32_104 : i32 to vector<1x256xi32>
    %446 = arith.cmpi slt, %444, %445 : vector<1x256xi32>
    %447 = arith.andi %442, %446 : vector<1x256xi1>
    %448 = vector.broadcast %435 : vector<1x1xf32> to vector<1x256xf32>
    %449 = arith.mulf %448, %437 : vector<1x256xf32>
    %450 = vector.broadcast %436 : vector<1x1xf32> to vector<1x256xf32>
    %451 = arith.mulf %450, %438 : vector<1x256xf32>
    %452 = arith.addf %449, %451 : vector<1x256xf32>
    %cst_105 = arith.constant 0.000000e+00 : f32
    %453 = vector.broadcast %cst_105 : f32 to vector<1x256xf32>
    %454 = arith.select %447, %452, %453 : vector<1x256xi1>, vector<1x256xf32>
    %455 = arith.addf %434, %454 : vector<1x256xf32>
    %456 = vector.extract_strided_slice %151 {offsets = [0, 2], sizes = [1, 1], strides = [1, 1]} : vector<1x15xf32> to vector<1x1xf32>
    %457 = vector.extract_strided_slice %151 {offsets = [0, 9], sizes = [1, 1], strides = [1, 1]} : vector<1x15xf32> to vector<1x1xf32>
    %c1_i32_106 = arith.constant 1 : i32
    %458 = tpu.dynamic_rotate %407 by %c1_i32_106 dim 1 : vector<1x256xf32>, i32 -> vector<1x256xf32>
    %c1_i32_107 = arith.constant 1 : i32
    %459 = tpu.dynamic_rotate %409 by %c1_i32_107 dim 1 : vector<1x256xf32>, i32 -> vector<1x256xf32>
    %c-1_i32_108 = arith.constant -1 : i32
    %460 = vector.broadcast %c-1_i32_108 : i32 to vector<1x256xi32>
    %461 = arith.addi %154, %460 : vector<1x256xi32>
    %c0_i32_109 = arith.constant 0 : i32
    %462 = vector.broadcast %c0_i32_109 : i32 to vector<1x256xi32>
    %463 = arith.cmpi sge, %461, %462 : vector<1x256xi32>
    %c-1_i32_110 = arith.constant -1 : i32
    %464 = vector.broadcast %c-1_i32_110 : i32 to vector<1x256xi32>
    %465 = arith.addi %154, %464 : vector<1x256xi32>
    %c128_i32_111 = arith.constant 128 : i32
    %466 = vector.broadcast %c128_i32_111 : i32 to vector<1x256xi32>
    %467 = arith.cmpi slt, %465, %466 : vector<1x256xi32>
    %468 = arith.andi %463, %467 : vector<1x256xi1>
    %469 = vector.broadcast %456 : vector<1x1xf32> to vector<1x256xf32>
    %470 = arith.mulf %469, %458 : vector<1x256xf32>
    %471 = vector.broadcast %457 : vector<1x1xf32> to vector<1x256xf32>
    %472 = arith.mulf %471, %459 : vector<1x256xf32>
    %473 = arith.addf %470, %472 : vector<1x256xf32>
    %cst_112 = arith.constant 0.000000e+00 : f32
    %474 = vector.broadcast %cst_112 : f32 to vector<1x256xf32>
    %475 = arith.select %468, %473, %474 : vector<1x256xi1>, vector<1x256xf32>
    %476 = arith.addf %455, %475 : vector<1x256xf32>
    %477 = vector.extract_strided_slice %151 {offsets = [0, 3], sizes = [1, 1], strides = [1, 1]} : vector<1x15xf32> to vector<1x1xf32>
    %478 = vector.extract_strided_slice %151 {offsets = [0, 10], sizes = [1, 1], strides = [1, 1]} : vector<1x15xf32> to vector<1x1xf32>
    %479 = vector.broadcast %477 : vector<1x1xf32> to vector<1x256xf32>
    %480 = arith.mulf %479, %407 : vector<1x256xf32>
    %481 = arith.addf %476, %480 : vector<1x256xf32>
    %482 = vector.broadcast %478 : vector<1x1xf32> to vector<1x256xf32>
    %483 = arith.mulf %482, %409 : vector<1x256xf32>
    %484 = arith.addf %481, %483 : vector<1x256xf32>
    %485 = vector.extract_strided_slice %151 {offsets = [0, 4], sizes = [1, 1], strides = [1, 1]} : vector<1x15xf32> to vector<1x1xf32>
    %486 = vector.extract_strided_slice %151 {offsets = [0, 11], sizes = [1, 1], strides = [1, 1]} : vector<1x15xf32> to vector<1x1xf32>
    %c255_i32_113 = arith.constant 255 : i32
    %487 = tpu.dynamic_rotate %407 by %c255_i32_113 dim 1 : vector<1x256xf32>, i32 -> vector<1x256xf32>
    %c255_i32_114 = arith.constant 255 : i32
    %488 = tpu.dynamic_rotate %409 by %c255_i32_114 dim 1 : vector<1x256xf32>, i32 -> vector<1x256xf32>
    %c1_i32_115 = arith.constant 1 : i32
    %489 = vector.broadcast %c1_i32_115 : i32 to vector<1x256xi32>
    %490 = arith.addi %154, %489 : vector<1x256xi32>
    %c0_i32_116 = arith.constant 0 : i32
    %491 = vector.broadcast %c0_i32_116 : i32 to vector<1x256xi32>
    %492 = arith.cmpi sge, %490, %491 : vector<1x256xi32>
    %c1_i32_117 = arith.constant 1 : i32
    %493 = vector.broadcast %c1_i32_117 : i32 to vector<1x256xi32>
    %494 = arith.addi %154, %493 : vector<1x256xi32>
    %c128_i32_118 = arith.constant 128 : i32
    %495 = vector.broadcast %c128_i32_118 : i32 to vector<1x256xi32>
    %496 = arith.cmpi slt, %494, %495 : vector<1x256xi32>
    %497 = arith.andi %492, %496 : vector<1x256xi1>
    %498 = vector.broadcast %485 : vector<1x1xf32> to vector<1x256xf32>
    %499 = arith.mulf %498, %487 : vector<1x256xf32>
    %500 = vector.broadcast %486 : vector<1x1xf32> to vector<1x256xf32>
    %501 = arith.mulf %500, %488 : vector<1x256xf32>
    %502 = arith.addf %499, %501 : vector<1x256xf32>
    %cst_119 = arith.constant 0.000000e+00 : f32
    %503 = vector.broadcast %cst_119 : f32 to vector<1x256xf32>
    %504 = arith.select %497, %502, %503 : vector<1x256xi1>, vector<1x256xf32>
    %505 = arith.addf %484, %504 : vector<1x256xf32>
    %506 = vector.extract_strided_slice %151 {offsets = [0, 5], sizes = [1, 1], strides = [1, 1]} : vector<1x15xf32> to vector<1x1xf32>
    %507 = vector.extract_strided_slice %151 {offsets = [0, 12], sizes = [1, 1], strides = [1, 1]} : vector<1x15xf32> to vector<1x1xf32>
    %c254_i32_120 = arith.constant 254 : i32
    %508 = tpu.dynamic_rotate %407 by %c254_i32_120 dim 1 : vector<1x256xf32>, i32 -> vector<1x256xf32>
    %c254_i32_121 = arith.constant 254 : i32
    %509 = tpu.dynamic_rotate %409 by %c254_i32_121 dim 1 : vector<1x256xf32>, i32 -> vector<1x256xf32>
    %c2_i32_122 = arith.constant 2 : i32
    %510 = vector.broadcast %c2_i32_122 : i32 to vector<1x256xi32>
    %511 = arith.addi %154, %510 : vector<1x256xi32>
    %c0_i32_123 = arith.constant 0 : i32
    %512 = vector.broadcast %c0_i32_123 : i32 to vector<1x256xi32>
    %513 = arith.cmpi sge, %511, %512 : vector<1x256xi32>
    %c2_i32_124 = arith.constant 2 : i32
    %514 = vector.broadcast %c2_i32_124 : i32 to vector<1x256xi32>
    %515 = arith.addi %154, %514 : vector<1x256xi32>
    %c128_i32_125 = arith.constant 128 : i32
    %516 = vector.broadcast %c128_i32_125 : i32 to vector<1x256xi32>
    %517 = arith.cmpi slt, %515, %516 : vector<1x256xi32>
    %518 = arith.andi %513, %517 : vector<1x256xi1>
    %519 = vector.broadcast %506 : vector<1x1xf32> to vector<1x256xf32>
    %520 = arith.mulf %519, %508 : vector<1x256xf32>
    %521 = vector.broadcast %507 : vector<1x1xf32> to vector<1x256xf32>
    %522 = arith.mulf %521, %509 : vector<1x256xf32>
    %523 = arith.addf %520, %522 : vector<1x256xf32>
    %cst_126 = arith.constant 0.000000e+00 : f32
    %524 = vector.broadcast %cst_126 : f32 to vector<1x256xf32>
    %525 = arith.select %518, %523, %524 : vector<1x256xi1>, vector<1x256xf32>
    %526 = arith.addf %505, %525 : vector<1x256xf32>
    %527 = vector.extract_strided_slice %151 {offsets = [0, 6], sizes = [1, 1], strides = [1, 1]} : vector<1x15xf32> to vector<1x1xf32>
    %528 = vector.extract_strided_slice %151 {offsets = [0, 13], sizes = [1, 1], strides = [1, 1]} : vector<1x15xf32> to vector<1x1xf32>
    %c253_i32_127 = arith.constant 253 : i32
    %529 = tpu.dynamic_rotate %407 by %c253_i32_127 dim 1 : vector<1x256xf32>, i32 -> vector<1x256xf32>
    %c253_i32_128 = arith.constant 253 : i32
    %530 = tpu.dynamic_rotate %409 by %c253_i32_128 dim 1 : vector<1x256xf32>, i32 -> vector<1x256xf32>
    %c3_i32_129 = arith.constant 3 : i32
    %531 = vector.broadcast %c3_i32_129 : i32 to vector<1x256xi32>
    %532 = arith.addi %154, %531 : vector<1x256xi32>
    %c0_i32_130 = arith.constant 0 : i32
    %533 = vector.broadcast %c0_i32_130 : i32 to vector<1x256xi32>
    %534 = arith.cmpi sge, %532, %533 : vector<1x256xi32>
    %c3_i32_131 = arith.constant 3 : i32
    %535 = vector.broadcast %c3_i32_131 : i32 to vector<1x256xi32>
    %536 = arith.addi %154, %535 : vector<1x256xi32>
    %c128_i32_132 = arith.constant 128 : i32
    %537 = vector.broadcast %c128_i32_132 : i32 to vector<1x256xi32>
    %538 = arith.cmpi slt, %536, %537 : vector<1x256xi32>
    %539 = arith.andi %534, %538 : vector<1x256xi1>
    %540 = vector.broadcast %527 : vector<1x1xf32> to vector<1x256xf32>
    %541 = arith.mulf %540, %529 : vector<1x256xf32>
    %542 = vector.broadcast %528 : vector<1x1xf32> to vector<1x256xf32>
    %543 = arith.mulf %542, %530 : vector<1x256xf32>
    %544 = arith.addf %541, %543 : vector<1x256xf32>
    %cst_133 = arith.constant 0.000000e+00 : f32
    %545 = vector.broadcast %cst_133 : f32 to vector<1x256xf32>
    %546 = arith.select %539, %544, %545 : vector<1x256xi1>, vector<1x256xf32>
    %547 = arith.addf %526, %546 : vector<1x256xf32>
    %548 = arith.negf %547 : vector<1x256xf32>
    %549 = math.exp %548 : vector<1x256xf32>
    %cst_134 = arith.constant 1.000000e+00 : f32
    %550 = vector.broadcast %cst_134 : f32 to vector<1x256xf32>
    %551 = arith.addf %550, %549 : vector<1x256xf32>
    %552 = arith.divf %550, %551 : vector<1x256xf32>
    %553 = vector.broadcast %552 : vector<1x256xf32> to vector<64x256xf32>
    %554 = arith.mulf %403, %553 : vector<64x256xf32>
    %c192_i32_135 = arith.constant 192 : i32
    %555 = tpu.dynamic_rotate %554 by %c192_i32_135 dim 1 : vector<64x256xf32>, i32 -> vector<64x256xf32>
    %556 = arith.addf %554, %555 : vector<64x256xf32>
    %c224_i32_136 = arith.constant 224 : i32
    %557 = tpu.dynamic_rotate %556 by %c224_i32_136 dim 1 : vector<64x256xf32>, i32 -> vector<64x256xf32>
    %558 = arith.addf %556, %557 : vector<64x256xf32>
    %c240_i32_137 = arith.constant 240 : i32
    %559 = tpu.dynamic_rotate %558 by %c240_i32_137 dim 1 : vector<64x256xf32>, i32 -> vector<64x256xf32>
    %560 = arith.addf %558, %559 : vector<64x256xf32>
    %c248_i32_138 = arith.constant 248 : i32
    %561 = tpu.dynamic_rotate %560 by %c248_i32_138 dim 1 : vector<64x256xf32>, i32 -> vector<64x256xf32>
    %562 = arith.addf %560, %561 : vector<64x256xf32>
    %c256 = arith.constant 256 : index
    %c0_139 = arith.constant 0 : index
    %563 = vector.load %arg1[%c256, %c0_139] : memref<392x128xf32, #tpu.memory_space<vmem>>, vector<64x64xf32>
    %c256_140 = arith.constant 256 : index
    %c64_141 = arith.constant 64 : index
    %564 = vector.load %arg1[%c256_140, %c64_141] : memref<392x128xf32, #tpu.memory_space<vmem>>, vector<64x1xf32>
    %c320 = arith.constant 320 : index
    %c0_142 = arith.constant 0 : index
    %565 = vector.load %arg1[%c320, %c0_142] : memref<392x128xf32, #tpu.memory_space<vmem>>, vector<64x64xf32>
    %cst_143 = arith.constant dense<0.000000e+00> : vector<64x256xf32>
    %566 = tpu.matmul %563, %358, %cst_143 {dimension_numbers = #tpu.dot_dimension_numbers<[1], [0], [0], [1], [0, 0, 1, 1], [], []>} : vector<64x64xf32>, vector<64x256xf32>, vector<64x256xf32> -> vector<64x256xf32>
    %cst_144 = arith.constant dense<0.000000e+00> : vector<64x256xf32>
    %567 = tpu.matmul %565, %562, %cst_144 {dimension_numbers = #tpu.dot_dimension_numbers<[1], [0], [0], [1], [0, 0, 1, 1], [], []>} : vector<64x64xf32>, vector<64x256xf32>, vector<64x256xf32> -> vector<64x256xf32>
    %568 = arith.addf %566, %567 : vector<64x256xf32>
    %569 = vector.broadcast %564 : vector<64x1xf32> to vector<64x256xf32>
    %570 = arith.addf %568, %569 : vector<64x256xf32>
    %cst_145 = arith.constant 0.000000e+00 : f32
    %571 = vector.broadcast %cst_145 : f32 to vector<64x256xf32>
    %572 = arith.maximumf %570, %571 : vector<64x256xf32>
    %573 = vector.extract_strided_slice %572 {offsets = [0, 0], sizes = [64, 8], strides = [1, 1]} : vector<64x256xf32> to vector<64x8xf32>
    %c0_146 = arith.constant 0 : index
    %c0_147 = arith.constant 0 : index
    %c0_148 = arith.constant 0 : index
    %574 = vector.load %arg2[%c0_146, %c0_147, %c0_148] : memref<2x64x8xf32, #tpu.memory_space<vmem>>, vector<1x64x8xf32>
    %575 = vector.shape_cast %574 : vector<1x64x8xf32> to vector<64x8xf32>
    %576 = vector.shape_cast %573 : vector<64x8xf32> to vector<1x64x8xf32>
    tpu.vector_store %arg2[%c0_146, %c0_147, %c0_148], %576 {strides = array<i32>} : memref<2x64x8xf32, #tpu.memory_space<vmem>>, vector<1x64x8xf32>,
    %577 = vector.extract_strided_slice %572 {offsets = [0, 128], sizes = [64, 8], strides = [1, 1]} : vector<64x256xf32> to vector<64x8xf32>
    %c1_149 = arith.constant 1 : index
    %c0_150 = arith.constant 0 : index
    %c0_151 = arith.constant 0 : index
    %578 = vector.load %arg2[%c1_149, %c0_150, %c0_151] : memref<2x64x8xf32, #tpu.memory_space<vmem>>, vector<1x64x8xf32>
    %579 = vector.shape_cast %578 : vector<1x64x8xf32> to vector<64x8xf32>
    %580 = vector.shape_cast %577 : vector<64x8xf32> to vector<1x64x8xf32>
    tpu.vector_store %arg2[%c1_149, %c0_150, %c0_151], %580 {strides = array<i32>} : memref<2x64x8xf32, #tpu.memory_space<vmem>>, vector<1x64x8xf32>,
    return
  }
}

</mosaic_0001>

<llo_original>
// kernel: _lambda_.1
$region0: #{_lambda_.1}
  #allocation0 [shape = 'u32[]', space=smem, size = 0x4, offset = 0x4, fixed_abs, tag = 'smem constant byte address 0x4 - core index']
  #allocation1 [shape = 'u32[144,128]{1,0:T(1,128)}', space=vmem, size = 0x12000, scoped, tag = 'internal scratch']
  %s0 = inlined_call_operand.vmem [shape: f32[3,3,256], index: 0, kind: input, shape index: {}]
  %s1 = inlined_call_operand.vmem [shape: f32[392,128], index: 1, kind: input, shape index: {}]
  %s2 = inlined_call_operand.vmem [shape: f32[2,64,8], index: 2, kind: output, shape index: {}]
  %s3 = sld [smem:[#allocation0]]
  $region18: #{_lambda_.1} parent=0
    _
  %s5 = ssub.s32 1, %s3
  %s6 = scalar_select 0, %s5, %s3
  // Predicated region
  $region2: #{_lambda_.1} parent=0 // pred_check
    _
  $region3: #{_lambda_.1} parent=0 // pred_check_branch
    %8 = sbr.rel (0) target = $region5
  $region4: #{_lambda_.1} parent=0 // pred_region
    _
  $region5: #{_lambda_.1} parent=0 // pred_fallthru
    _
  // Predicated region
  $region6: #{_lambda_.1} parent=0 // pred_check
    _
  $region7: #{_lambda_.1} parent=0 // pred_check_branch
    %10 = sbr.rel (0) target = $region9
  $region8: #{_lambda_.1} parent=0 // pred_region
    _
  $region9: #{_lambda_.1} parent=0 // pred_fallthru
    _
  %v11 = vld [vmem:[%s0] sm:$0x77]
  %s12 = scalar_lea.vmem %s0, 8
  %v13 = vld [vmem:[%s12] sm:$0x77]
  %s14 = scalar_lea.vmem %s0, 16
  %v15 = vld [vmem:[%s14] sm:$0x77]
  %v16 = vsub.f32 %v15, %v11
  %v17 = vmul.f32 %v16, %v16
  %v19 = vcombine.high %v17, %v17
  %vm21 = vcmask 1042432
  %v22 = vsel %vm21, %v17, 0.0
  %v23 = vrot.slane %v22, 4
  %v24 = vadd.f32 %v22, %v23
  %v25 = vrot.slane %v24, 2
  %v26 = vadd.f32 %v24, %v25
  %v27 = vrot.slane %v26, 1
  %v28 = vadd.f32 %v26, %v27
  %v29 = vsel %vm21, %v19, 0.0
  %v30 = vrot.slane %v29, 4
  %v31 = vadd.f32 %v29, %v30
  %v32 = vrot.slane %v31, 2
  %v33 = vadd.f32 %v31, %v32
  %v34 = vrot.slane %v33, 1
  %v35 = vadd.f32 %v33, %v34
  %v36 = vrsqrt.pop %v28
  %v37 = vmul.f32 %v28, %v36
  %vm38 = vcmp.eq.f32.partialorder %v28, inf
  %v39 = vsel %vm38, %v28, %v37
  %vm40 = vcmp.eq.f32.partialorder %v28, 0.0
  %v41 = vand.u32 %v28, 2147483648
  %v42 = vsel %vm40, %v41, %v39
  %v43 = vrsqrt.pop %v35
  %v44 = vmul.f32 %v35, %v43
  %vm45 = vcmp.eq.f32.partialorder %v35, inf
  %v46 = vsel %vm45, %v35, %v44
  %vm47 = vcmp.eq.f32.partialorder %v35, 0.0
  %v48 = vand.u32 %v35, 2147483648
  %v49 = vsel %vm47, %v48, %v46
  %v50 = vld [vmem:[%s1] sm:$0xff]
  %v51 = vld [vmem:[%s1 + $0x8] sm:$0xff]
  %v52 = vld [vmem:[%s1 + $0x10] sm:$0xff]
  %v53 = vld [vmem:[%s1 + $0x18] sm:$0xff]
  %v54 = vld [vmem:[%s1 + $0x20] sm:$0xff]
  %v55 = vld [vmem:[%s1 + $0x28] sm:$0xff]
  %57 = vset.pattern.permute.xlu0 0
  %58 = vperm.xlu0 %57, %v50
  %v59 = vpop.permute.xlu0 %58
  %62 = vset.pattern.permute.xlu0 0
  %63 = vperm.xlu0 %62, %v51
  %v64 = vpop.permute.xlu0 %63
  %67 = vset.pattern.permute.xlu0 0
  %68 = vperm.xlu0 %67, %v52
  %v69 = vpop.permute.xlu0 %68
  %72 = vset.pattern.permute.xlu0 0
  %73 = vperm.xlu0 %72, %v53
  %v74 = vpop.permute.xlu0 %73
  %77 = vset.pattern.permute.xlu0 0
  %78 = vperm.xlu0 %77, %v54
  %v79 = vpop.permute.xlu0 %78
  %82 = vset.pattern.permute.xlu0 0
  %83 = vperm.xlu0 %82, %v55
  %v84 = vpop.permute.xlu0 %83
  %v86 = vmul.f32 %v59, %v42
  %v87 = vmul.f32 %v59, %v49
  %v88 = vmul.f32 %v64, %v42
  %v89 = vmul.f32 %v64, %v49
  %v90 = vmul.f32 %v69, %v42
  %v91 = vmul.f32 %v69, %v49
  %v92 = vmul.f32 %v74, %v42
  %v93 = vmul.f32 %v74, %v49
  %v94 = vmul.f32 %v79, %v42
  %v95 = vmul.f32 %v79, %v49
  %v96 = vmul.f32 %v84, %v42
  %v97 = vmul.f32 %v84, %v49
  %98 = vset.pattern.permute.xlu0 1
  %99 = vperm.xlu0 %98, %v50
  %v100 = vpop.permute.xlu0 %99
  %102 = vset.pattern.permute.xlu0 1
  %103 = vperm.xlu0 %102, %v51
  %v104 = vpop.permute.xlu0 %103
  %106 = vset.pattern.permute.xlu0 1
  %107 = vperm.xlu0 %106, %v52
  %v108 = vpop.permute.xlu0 %107
  %110 = vset.pattern.permute.xlu0 1
  %111 = vperm.xlu0 %110, %v53
  %v112 = vpop.permute.xlu0 %111
  %114 = vset.pattern.permute.xlu0 1
  %115 = vperm.xlu0 %114, %v54
  %v116 = vpop.permute.xlu0 %115
  %118 = vset.pattern.permute.xlu0 1
  %119 = vperm.xlu0 %118, %v55
  %v120 = vpop.permute.xlu0 %119
  %v123 = vlaneseq
  %v124 = vshrl.u32 %v123, 7
  %v125 = vsub.s32 0, %v124
  %v126 = vrot.slane %v16, %v125
  %v127 = vlaneseq
  %v128 = vshrl.u32 %v127, 7
  %v129 = vsub.s32 4, %v128
  %v130 = vrot.slane %v16, %v129
  %v133 = vlaneseq
  %v134 = vshrl.u32 %v133, 7
  %v135 = vsub.s32 0, %v134
  %v136 = vrot.slane %v126, %v135
  %v137 = vlaneseq
  %v138 = vshrl.u32 %v137, 7
  %v139 = vsub.s32 0, %v138
  %v140 = vrot.slane %v130, %v139
  %v141 = vmul.f32 %v100, %v136
  %v142 = vmul.f32 %v100, %v140
  %v143 = vmul.f32 %v104, %v136
  %v144 = vmul.f32 %v104, %v140
  %v145 = vmul.f32 %v108, %v136
  %v146 = vmul.f32 %v108, %v140
  %v147 = vmul.f32 %v112, %v136
  %v148 = vmul.f32 %v112, %v140
  %v149 = vmul.f32 %v116, %v136
  %v150 = vmul.f32 %v116, %v140
  %v151 = vmul.f32 %v120, %v136
  %v152 = vmul.f32 %v120, %v140
  %153 = vset.pattern.permute.xlu0 2
  %154 = vperm.xlu0 %153, %v50
  %v155 = vpop.permute.xlu0 %154
  %157 = vset.pattern.permute.xlu0 2
  %158 = vperm.xlu0 %157, %v51
  %v159 = vpop.permute.xlu0 %158
  %161 = vset.pattern.permute.xlu0 2
  %162 = vperm.xlu0 %161, %v52
  %v163 = vpop.permute.xlu0 %162
  %165 = vset.pattern.permute.xlu0 2
  %166 = vperm.xlu0 %165, %v53
  %v167 = vpop.permute.xlu0 %166
  %169 = vset.pattern.permute.xlu0 2
  %170 = vperm.xlu0 %169, %v54
  %v171 = vpop.permute.xlu0 %170
  %173 = vset.pattern.permute.xlu0 2
  %174 = vperm.xlu0 %173, %v55
  %v175 = vpop.permute.xlu0 %174
  %v177 = vlaneseq
  %v178 = vshrl.u32 %v177, 7
  %v179 = vsub.s32 1, %v178
  %v180 = vrot.slane %v16, %v179
  %v181 = vlaneseq
  %v182 = vshrl.u32 %v181, 7
  %v183 = vsub.s32 5, %v182
  %v184 = vrot.slane %v16, %v183
  %v187 = vlaneseq
  %v188 = vshrl.u32 %v187, 7
  %v189 = vsub.s32 1, %v188
  %v190 = vrot.slane %v180, %v189
  %v191 = vlaneseq
  %v192 = vshrl.u32 %v191, 7
  %v193 = vsub.s32 1, %v192
  %v194 = vrot.slane %v184, %v193
  %v195 = vmul.f32 %v155, %v190
  %v196 = vmul.f32 %v155, %v194
  %v197 = vmul.f32 %v159, %v190
  %v198 = vmul.f32 %v159, %v194
  %v199 = vmul.f32 %v163, %v190
  %v200 = vmul.f32 %v163, %v194
  %v201 = vmul.f32 %v167, %v190
  %v202 = vmul.f32 %v167, %v194
  %v203 = vmul.f32 %v171, %v190
  %v204 = vmul.f32 %v171, %v194
  %v205 = vmul.f32 %v175, %v190
  %v206 = vmul.f32 %v175, %v194
  %v207 = vadd.f32 %v141, %v195
  %v208 = vadd.f32 %v142, %v196
  %v209 = vadd.f32 %v143, %v197
  %v210 = vadd.f32 %v144, %v198
  %v211 = vadd.f32 %v145, %v199
  %v212 = vadd.f32 %v146, %v200
  %v213 = vadd.f32 %v147, %v201
  %v214 = vadd.f32 %v148, %v202
  %v215 = vadd.f32 %v149, %v203
  %v216 = vadd.f32 %v150, %v204
  %v217 = vadd.f32 %v151, %v205
  %v218 = vadd.f32 %v152, %v206
  %219 = vset.pattern.permute.xlu0 3
  %220 = vperm.xlu0 %219, %v50
  %v221 = vpop.permute.xlu0 %220
  %223 = vset.pattern.permute.xlu0 3
  %224 = vperm.xlu0 %223, %v51
  %v225 = vpop.permute.xlu0 %224
  %227 = vset.pattern.permute.xlu0 3
  %228 = vperm.xlu0 %227, %v52
  %v229 = vpop.permute.xlu0 %228
  %231 = vset.pattern.permute.xlu0 3
  %232 = vperm.xlu0 %231, %v53
  %v233 = vpop.permute.xlu0 %232
  %235 = vset.pattern.permute.xlu0 3
  %236 = vperm.xlu0 %235, %v54
  %v237 = vpop.permute.xlu0 %236
  %239 = vset.pattern.permute.xlu0 3
  %240 = vperm.xlu0 %239, %v55
  %v241 = vpop.permute.xlu0 %240
  %v243 = vlaneseq
  %v244 = vshrl.u32 %v243, 7
  %v245 = vsub.s32 2, %v244
  %v246 = vrot.slane %v16, %v245
  %v247 = vlaneseq
  %v248 = vshrl.u32 %v247, 7
  %v249 = vsub.s32 6, %v248
  %v250 = vrot.slane %v16, %v249
  %v253 = vlaneseq
  %v254 = vshrl.u32 %v253, 7
  %v255 = vsub.s32 2, %v254
  %v256 = vrot.slane %v246, %v255
  %v257 = vlaneseq
  %v258 = vshrl.u32 %v257, 7
  %v259 = vsub.s32 2, %v258
  %v260 = vrot.slane %v250, %v259
  %v261 = vmul.f32 %v221, %v256
  %v262 = vmul.f32 %v221, %v260
  %v263 = vmul.f32 %v225, %v256
  %v264 = vmul.f32 %v225, %v260
  %v265 = vmul.f32 %v229, %v256
  %v266 = vmul.f32 %v229, %v260
  %v267 = vmul.f32 %v233, %v256
  %v268 = vmul.f32 %v233, %v260
  %v269 = vmul.f32 %v237, %v256
  %v270 = vmul.f32 %v237, %v260
  %v271 = vmul.f32 %v241, %v256
  %v272 = vmul.f32 %v241, %v260
  %v273 = vadd.f32 %v207, %v261
  %v274 = vadd.f32 %v208, %v262
  %v275 = vadd.f32 %v209, %v263
  %v276 = vadd.f32 %v210, %v264
  %v277 = vadd.f32 %v211, %v265
  %v278 = vadd.f32 %v212, %v266
  %v279 = vadd.f32 %v213, %v267
  %v280 = vadd.f32 %v214, %v268
  %v281 = vadd.f32 %v215, %v269
  %v282 = vadd.f32 %v216, %v270
  %v283 = vadd.f32 %v217, %v271
  %v284 = vadd.f32 %v218, %v272
  %v285 = vadd.f32 %v86, %v273
  %v286 = vadd.f32 %v87, %v274
  %v287 = vadd.f32 %v88, %v275
  %v288 = vadd.f32 %v89, %v276
  %v289 = vadd.f32 %v90, %v277
  %v290 = vadd.f32 %v91, %v278
  %v291 = vadd.f32 %v92, %v279
  %v292 = vadd.f32 %v93, %v280
  %v293 = vadd.f32 %v94, %v281
  %v294 = vadd.f32 %v95, %v282
  %v295 = vadd.f32 %v96, %v283
  %v296 = vadd.f32 %v97, %v284
  %297 = vset.pattern.permute.xlu0 4
  %298 = vperm.xlu0 %297, %v50
  %v299 = vpop.permute.xlu0 %298
  %301 = vset.pattern.permute.xlu0 4
  %302 = vperm.xlu0 %301, %v51
  %v303 = vpop.permute.xlu0 %302
  %305 = vset.pattern.permute.xlu0 4
  %306 = vperm.xlu0 %305, %v52
  %v307 = vpop.permute.xlu0 %306
  %309 = vset.pattern.permute.xlu0 4
  %310 = vperm.xlu0 %309, %v53
  %v311 = vpop.permute.xlu0 %310
  %313 = vset.pattern.permute.xlu0 4
  %314 = vperm.xlu0 %313, %v54
  %v315 = vpop.permute.xlu0 %314
  %317 = vset.pattern.permute.xlu0 4
  %318 = vperm.xlu0 %317, %v55
  %v319 = vpop.permute.xlu0 %318
  %v322 = vlaneseq
  %v323 = vshrl.u32 %v322, 7
  %v324 = vsub.s32 0, %v323
  %v325 = vrot.slane %v15, %v324
  %v326 = vlaneseq
  %v327 = vshrl.u32 %v326, 7
  %v328 = vsub.s32 4, %v327
  %v329 = vrot.slane %v15, %v328
  %v332 = vlaneseq
  %v333 = vshrl.u32 %v332, 7
  %v334 = vsub.s32 0, %v333
  %v335 = vrot.slane %v325, %v334
  %v336 = vlaneseq
  %v337 = vshrl.u32 %v336, 7
  %v338 = vsub.s32 0, %v337
  %v339 = vrot.slane %v329, %v338
  %v340 = vmul.f32 %v299, %v335
  %v341 = vmul.f32 %v299, %v339
  %v342 = vmul.f32 %v303, %v335
  %v343 = vmul.f32 %v303, %v339
  %v344 = vmul.f32 %v307, %v335
  %v345 = vmul.f32 %v307, %v339
  %v346 = vmul.f32 %v311, %v335
  %v347 = vmul.f32 %v311, %v339
  %v348 = vmul.f32 %v315, %v335
  %v349 = vmul.f32 %v315, %v339
  %v350 = vmul.f32 %v319, %v335
  %v351 = vmul.f32 %v319, %v339
  %352 = vset.pattern.permute.xlu0 5
  %353 = vperm.xlu0 %352, %v50
  %v354 = vpop.permute.xlu0 %353
  %356 = vset.pattern.permute.xlu0 5
  %357 = vperm.xlu0 %356, %v51
  %v358 = vpop.permute.xlu0 %357
  %360 = vset.pattern.permute.xlu0 5
  %361 = vperm.xlu0 %360, %v52
  %v362 = vpop.permute.xlu0 %361
  %364 = vset.pattern.permute.xlu0 5
  %365 = vperm.xlu0 %364, %v53
  %v366 = vpop.permute.xlu0 %365
  %368 = vset.pattern.permute.xlu0 5
  %369 = vperm.xlu0 %368, %v54
  %v370 = vpop.permute.xlu0 %369
  %372 = vset.pattern.permute.xlu0 5
  %373 = vperm.xlu0 %372, %v55
  %v374 = vpop.permute.xlu0 %373
  %v376 = vlaneseq
  %v377 = vshrl.u32 %v376, 7
  %v378 = vsub.s32 1, %v377
  %v379 = vrot.slane %v15, %v378
  %v380 = vlaneseq
  %v381 = vshrl.u32 %v380, 7
  %v382 = vsub.s32 5, %v381
  %v383 = vrot.slane %v15, %v382
  %v386 = vlaneseq
  %v387 = vshrl.u32 %v386, 7
  %v388 = vsub.s32 1, %v387
  %v389 = vrot.slane %v379, %v388
  %v390 = vlaneseq
  %v391 = vshrl.u32 %v390, 7
  %v392 = vsub.s32 1, %v391
  %v393 = vrot.slane %v383, %v392
  %v394 = vmul.f32 %v354, %v389
  %v395 = vmul.f32 %v354, %v393
  %v396 = vmul.f32 %v358, %v389
  %v397 = vmul.f32 %v358, %v393
  %v398 = vmul.f32 %v362, %v389
  %v399 = vmul.f32 %v362, %v393
  %v400 = vmul.f32 %v366, %v389
  %v401 = vmul.f32 %v366, %v393
  %v402 = vmul.f32 %v370, %v389
  %v403 = vmul.f32 %v370, %v393
  %v404 = vmul.f32 %v374, %v389
  %v405 = vmul.f32 %v374, %v393
  %v406 = vadd.f32 %v340, %v394
  %v407 = vadd.f32 %v341, %v395
  %v408 = vadd.f32 %v342, %v396
  %v409 = vadd.f32 %v343, %v397
  %v410 = vadd.f32 %v344, %v398
  %v411 = vadd.f32 %v345, %v399
  %v412 = vadd.f32 %v346, %v400
  %v413 = vadd.f32 %v347, %v401
  %v414 = vadd.f32 %v348, %v402
  %v415 = vadd.f32 %v349, %v403
  %v416 = vadd.f32 %v350, %v404
  %v417 = vadd.f32 %v351, %v405
  %418 = vset.pattern.permute.xlu0 6
  %419 = vperm.xlu0 %418, %v50
  %v420 = vpop.permute.xlu0 %419
  %422 = vset.pattern.permute.xlu0 6
  %423 = vperm.xlu0 %422, %v51
  %v424 = vpop.permute.xlu0 %423
  %426 = vset.pattern.permute.xlu0 6
  %427 = vperm.xlu0 %426, %v52
  %v428 = vpop.permute.xlu0 %427
  %430 = vset.pattern.permute.xlu0 6
  %431 = vperm.xlu0 %430, %v53
  %v432 = vpop.permute.xlu0 %431
  %434 = vset.pattern.permute.xlu0 6
  %435 = vperm.xlu0 %434, %v54
  %v436 = vpop.permute.xlu0 %435
  %438 = vset.pattern.permute.xlu0 6
  %439 = vperm.xlu0 %438, %v55
  %v440 = vpop.permute.xlu0 %439
  %v442 = vlaneseq
  %v443 = vshrl.u32 %v442, 7
  %v444 = vsub.s32 2, %v443
  %v445 = vrot.slane %v15, %v444
  %v446 = vlaneseq
  %v447 = vshrl.u32 %v446, 7
  %v448 = vsub.s32 6, %v447
  %v449 = vrot.slane %v15, %v448
  %v452 = vlaneseq
  %v453 = vshrl.u32 %v452, 7
  %v454 = vsub.s32 2, %v453
  %v455 = vrot.slane %v445, %v454
  %v456 = vlaneseq
  %v457 = vshrl.u32 %v456, 7
  %v458 = vsub.s32 2, %v457
  %v459 = vrot.slane %v449, %v458
  %v460 = vmul.f32 %v420, %v455
  %v461 = vmul.f32 %v420, %v459
  %v462 = vmul.f32 %v424, %v455
  %v463 = vmul.f32 %v424, %v459
  %v464 = vmul.f32 %v428, %v455
  %v465 = vmul.f32 %v428, %v459
  %v466 = vmul.f32 %v432, %v455
  %v467 = vmul.f32 %v432, %v459
  %v468 = vmul.f32 %v436, %v455
  %v469 = vmul.f32 %v436, %v459
  %v470 = vmul.f32 %v440, %v455
  %v471 = vmul.f32 %v440, %v459
  %v472 = vadd.f32 %v406, %v460
  %v473 = vadd.f32 %v407, %v461
  %v474 = vadd.f32 %v408, %v462
  %v475 = vadd.f32 %v409, %v463
  %v476 = vadd.f32 %v410, %v464
  %v477 = vadd.f32 %v411, %v465
  %v478 = vadd.f32 %v412, %v466
  %v479 = vadd.f32 %v413, %v467
  %v480 = vadd.f32 %v414, %v468
  %v481 = vadd.f32 %v415, %v469
  %v482 = vadd.f32 %v416, %v470
  %v483 = vadd.f32 %v417, %v471
  %v484 = vadd.f32 %v285, %v472
  %v485 = vadd.f32 %v286, %v473
  %v486 = vadd.f32 %v287, %v474
  %v487 = vadd.f32 %v288, %v475
  %v488 = vadd.f32 %v289, %v476
  %v489 = vadd.f32 %v290, %v477
  %v490 = vadd.f32 %v291, %v478
  %v491 = vadd.f32 %v292, %v479
  %v492 = vadd.f32 %v293, %v480
  %v493 = vadd.f32 %v294, %v481
  %v494 = vadd.f32 %v295, %v482
  %v495 = vadd.f32 %v296, %v483
  %496 = vset.pattern.permute.xlu0 7
  %497 = vperm.xlu0 %496, %v50
  %v498 = vpop.permute.xlu0 %497
  %500 = vset.pattern.permute.xlu0 7
  %501 = vperm.xlu0 %500, %v51
  %v502 = vpop.permute.xlu0 %501
  %504 = vset.pattern.permute.xlu0 7
  %505 = vperm.xlu0 %504, %v52
  %v506 = vpop.permute.xlu0 %505
  %508 = vset.pattern.permute.xlu0 7
  %509 = vperm.xlu0 %508, %v53
  %v510 = vpop.permute.xlu0 %509
  %512 = vset.pattern.permute.xlu0 7
  %513 = vperm.xlu0 %512, %v54
  %v514 = vpop.permute.xlu0 %513
  %516 = vset.pattern.permute.xlu0 7
  %517 = vperm.xlu0 %516, %v55
  %v518 = vpop.permute.xlu0 %517
  %v521 = vlaneseq
  %v522 = vshrl.u32 %v521, 7
  %v523 = vsub.s32 0, %v522
  %v524 = vrot.slane %v11, %v523
  %v525 = vlaneseq
  %v526 = vshrl.u32 %v525, 7
  %v527 = vsub.s32 4, %v526
  %v528 = vrot.slane %v11, %v527
  %v531 = vlaneseq
  %v532 = vshrl.u32 %v531, 7
  %v533 = vsub.s32 0, %v532
  %v534 = vrot.slane %v524, %v533
  %v535 = vlaneseq
  %v536 = vshrl.u32 %v535, 7
  %v537 = vsub.s32 0, %v536
  %v538 = vrot.slane %v528, %v537
  %v539 = vmul.f32 %v498, %v534
  %v540 = vmul.f32 %v498, %v538
  %v541 = vmul.f32 %v502, %v534
  %v542 = vmul.f32 %v502, %v538
  %v543 = vmul.f32 %v506, %v534
  %v544 = vmul.f32 %v506, %v538
  %v545 = vmul.f32 %v510, %v534
  %v546 = vmul.f32 %v510, %v538
  %v547 = vmul.f32 %v514, %v534
  %v548 = vmul.f32 %v514, %v538
  %v549 = vmul.f32 %v518, %v534
  %v550 = vmul.f32 %v518, %v538
  %551 = vset.pattern.permute.xlu0 8
  %552 = vperm.xlu0 %551, %v50
  %v553 = vpop.permute.xlu0 %552
  %555 = vset.pattern.permute.xlu0 8
  %556 = vperm.xlu0 %555, %v51
  %v557 = vpop.permute.xlu0 %556
  %559 = vset.pattern.permute.xlu0 8
  %560 = vperm.xlu0 %559, %v52
  %v561 = vpop.permute.xlu0 %560
  %563 = vset.pattern.permute.xlu0 8
  %564 = vperm.xlu0 %563, %v53
  %v565 = vpop.permute.xlu0 %564
  %567 = vset.pattern.permute.xlu0 8
  %568 = vperm.xlu0 %567, %v54
  %v569 = vpop.permute.xlu0 %568
  %571 = vset.pattern.permute.xlu0 8
  %572 = vperm.xlu0 %571, %v55
  %v573 = vpop.permute.xlu0 %572
  %v575 = vlaneseq
  %v576 = vshrl.u32 %v575, 7
  %v577 = vsub.s32 1, %v576
  %v578 = vrot.slane %v11, %v577
  %v579 = vlaneseq
  %v580 = vshrl.u32 %v579, 7
  %v581 = vsub.s32 5, %v580
  %v582 = vrot.slane %v11, %v581
  %v585 = vlaneseq
  %v586 = vshrl.u32 %v585, 7
  %v587 = vsub.s32 1, %v586
  %v588 = vrot.slane %v578, %v587
  %v589 = vlaneseq
  %v590 = vshrl.u32 %v589, 7
  %v591 = vsub.s32 1, %v590
  %v592 = vrot.slane %v582, %v591
  %v593 = vmul.f32 %v553, %v588
  %v594 = vmul.f32 %v553, %v592
  %v595 = vmul.f32 %v557, %v588
  %v596 = vmul.f32 %v557, %v592
  %v597 = vmul.f32 %v561, %v588
  %v598 = vmul.f32 %v561, %v592
  %v599 = vmul.f32 %v565, %v588
  %v600 = vmul.f32 %v565, %v592
  %v601 = vmul.f32 %v569, %v588
  %v602 = vmul.f32 %v569, %v592
  %v603 = vmul.f32 %v573, %v588
  %v604 = vmul.f32 %v573, %v592
  %v605 = vadd.f32 %v539, %v593
  %v606 = vadd.f32 %v540, %v594
  %v607 = vadd.f32 %v541, %v595
  %v608 = vadd.f32 %v542, %v596
  %v609 = vadd.f32 %v543, %v597
  %v610 = vadd.f32 %v544, %v598
  %v611 = vadd.f32 %v545, %v599
  %v612 = vadd.f32 %v546, %v600
  %v613 = vadd.f32 %v547, %v601
  %v614 = vadd.f32 %v548, %v602
  %v615 = vadd.f32 %v549, %v603
  %v616 = vadd.f32 %v550, %v604
  %617 = vset.pattern.permute.xlu0 9
  %618 = vperm.xlu0 %617, %v50
  %v619 = vpop.permute.xlu0 %618
  %621 = vset.pattern.permute.xlu0 9
  %622 = vperm.xlu0 %621, %v51
  %v623 = vpop.permute.xlu0 %622
  %625 = vset.pattern.permute.xlu0 9
  %626 = vperm.xlu0 %625, %v52
  %v627 = vpop.permute.xlu0 %626
  %629 = vset.pattern.permute.xlu0 9
  %630 = vperm.xlu0 %629, %v53
  %v631 = vpop.permute.xlu0 %630
  %633 = vset.pattern.permute.xlu0 9
  %634 = vperm.xlu0 %633, %v54
  %v635 = vpop.permute.xlu0 %634
  %637 = vset.pattern.permute.xlu0 9
  %638 = vperm.xlu0 %637, %v55
  %v639 = vpop.permute.xlu0 %638
  %v641 = vlaneseq
  %v642 = vshrl.u32 %v641, 7
  %v643 = vsub.s32 2, %v642
  %v644 = vrot.slane %v11, %v643
  %v645 = vlaneseq
  %v646 = vshrl.u32 %v645, 7
  %v647 = vsub.s32 6, %v646
  %v648 = vrot.slane %v11, %v647
  %v651 = vlaneseq
  %v652 = vshrl.u32 %v651, 7
  %v653 = vsub.s32 2, %v652
  %v654 = vrot.slane %v644, %v653
  %v655 = vlaneseq
  %v656 = vshrl.u32 %v655, 7
  %v657 = vsub.s32 2, %v656
  %v658 = vrot.slane %v648, %v657
  %v659 = vmul.f32 %v619, %v654
  %v660 = vmul.f32 %v619, %v658
  %v661 = vmul.f32 %v623, %v654
  %v662 = vmul.f32 %v623, %v658
  %v663 = vmul.f32 %v627, %v654
  %v664 = vmul.f32 %v627, %v658
  %v665 = vmul.f32 %v631, %v654
  %v666 = vmul.f32 %v631, %v658
  %v667 = vmul.f32 %v635, %v654
  %v668 = vmul.f32 %v635, %v658
  %v669 = vmul.f32 %v639, %v654
  %v670 = vmul.f32 %v639, %v658
  %v671 = vadd.f32 %v605, %v659
  %v672 = vadd.f32 %v606, %v660
  %v673 = vadd.f32 %v607, %v661
  %v674 = vadd.f32 %v608, %v662
  %v675 = vadd.f32 %v609, %v663
  %v676 = vadd.f32 %v610, %v664
  %v677 = vadd.f32 %v611, %v665
  %v678 = vadd.f32 %v612, %v666
  %v679 = vadd.f32 %v613, %v667
  %v680 = vadd.f32 %v614, %v668
  %v681 = vadd.f32 %v615, %v669
  %v682 = vadd.f32 %v616, %v670
  %v683 = vadd.f32 %v484, %v671
  %v684 = vadd.f32 %v485, %v672
  %v685 = vadd.f32 %v486, %v673
  %v686 = vadd.f32 %v487, %v674
  %v687 = vadd.f32 %v488, %v675
  %v688 = vadd.f32 %v489, %v676
  %v689 = vadd.f32 %v490, %v677
  %v690 = vadd.f32 %v491, %v678
  %v691 = vadd.f32 %v492, %v679
  %v692 = vadd.f32 %v493, %v680
  %v693 = vadd.f32 %v494, %v681
  %v694 = vadd.f32 %v495, %v682
  %695 = vset.pattern.permute.xlu0 10
  %696 = vperm.xlu0 %695, %v50
  %v697 = vpop.permute.xlu0 %696
  %699 = vset.pattern.permute.xlu0 10
  %700 = vperm.xlu0 %699, %v51
  %v701 = vpop.permute.xlu0 %700
  %703 = vset.pattern.permute.xlu0 10
  %704 = vperm.xlu0 %703, %v52
  %v705 = vpop.permute.xlu0 %704
  %707 = vset.pattern.permute.xlu0 10
  %708 = vperm.xlu0 %707, %v53
  %v709 = vpop.permute.xlu0 %708
  %711 = vset.pattern.permute.xlu0 10
  %712 = vperm.xlu0 %711, %v54
  %v713 = vpop.permute.xlu0 %712
  %715 = vset.pattern.permute.xlu0 10
  %716 = vperm.xlu0 %715, %v55
  %v717 = vpop.permute.xlu0 %716
  %v720 = vlaneseq
  %v721 = vshrl.u32 %v720, 7
  %v722 = vsub.s32 0, %v721
  %v723 = vrot.slane %v13, %v722
  %v724 = vlaneseq
  %v725 = vshrl.u32 %v724, 7
  %v726 = vsub.s32 4, %v725
  %v727 = vrot.slane %v13, %v726
  %v730 = vlaneseq
  %v731 = vshrl.u32 %v730, 7
  %v732 = vsub.s32 0, %v731
  %v733 = vrot.slane %v723, %v732
  %v734 = vlaneseq
  %v735 = vshrl.u32 %v734, 7
  %v736 = vsub.s32 0, %v735
  %v737 = vrot.slane %v727, %v736
  %v738 = vmul.f32 %v697, %v733
  %v739 = vmul.f32 %v697, %v737
  %v740 = vmul.f32 %v701, %v733
  %v741 = vmul.f32 %v701, %v737
  %v742 = vmul.f32 %v705, %v733
  %v743 = vmul.f32 %v705, %v737
  %v744 = vmul.f32 %v709, %v733
  %v745 = vmul.f32 %v709, %v737
  %v746 = vmul.f32 %v713, %v733
  %v747 = vmul.f32 %v713, %v737
  %v748 = vmul.f32 %v717, %v733
  %v749 = vmul.f32 %v717, %v737
  %750 = vset.pattern.permute.xlu0 11
  %751 = vperm.xlu0 %750, %v50
  %v752 = vpop.permute.xlu0 %751
  %754 = vset.pattern.permute.xlu0 11
  %755 = vperm.xlu0 %754, %v51
  %v756 = vpop.permute.xlu0 %755
  %758 = vset.pattern.permute.xlu0 11
  %759 = vperm.xlu0 %758, %v52
  %v760 = vpop.permute.xlu0 %759
  %762 = vset.pattern.permute.xlu0 11
  %763 = vperm.xlu0 %762, %v53
  %v764 = vpop.permute.xlu0 %763
  %766 = vset.pattern.permute.xlu0 11
  %767 = vperm.xlu0 %766, %v54
  %v768 = vpop.permute.xlu0 %767
  %770 = vset.pattern.permute.xlu0 11
  %771 = vperm.xlu0 %770, %v55
  %v772 = vpop.permute.xlu0 %771
  %v774 = vlaneseq
  %v775 = vshrl.u32 %v774, 7
  %v776 = vsub.s32 1, %v775
  %v777 = vrot.slane %v13, %v776
  %v778 = vlaneseq
  %v779 = vshrl.u32 %v778, 7
  %v780 = vsub.s32 5, %v779
  %v781 = vrot.slane %v13, %v780
  %v784 = vlaneseq
  %v785 = vshrl.u32 %v784, 7
  %v786 = vsub.s32 1, %v785
  %v787 = vrot.slane %v777, %v786
  %v788 = vlaneseq
  %v789 = vshrl.u32 %v788, 7
  %v790 = vsub.s32 1, %v789
  %v791 = vrot.slane %v781, %v790
  %v792 = vmul.f32 %v752, %v787
  %v793 = vmul.f32 %v752, %v791
  %v794 = vmul.f32 %v756, %v787
  %v795 = vmul.f32 %v756, %v791
  %v796 = vmul.f32 %v760, %v787
  %v797 = vmul.f32 %v760, %v791
  %v798 = vmul.f32 %v764, %v787
  %v799 = vmul.f32 %v764, %v791
  %v800 = vmul.f32 %v768, %v787
  %v801 = vmul.f32 %v768, %v791
  %v802 = vmul.f32 %v772, %v787
  %v803 = vmul.f32 %v772, %v791
  %v804 = vadd.f32 %v738, %v792
  %v805 = vadd.f32 %v739, %v793
  %v806 = vadd.f32 %v740, %v794
  %v807 = vadd.f32 %v741, %v795
  %v808 = vadd.f32 %v742, %v796
  %v809 = vadd.f32 %v743, %v797
  %v810 = vadd.f32 %v744, %v798
  %v811 = vadd.f32 %v745, %v799
  %v812 = vadd.f32 %v746, %v800
  %v813 = vadd.f32 %v747, %v801
  %v814 = vadd.f32 %v748, %v802
  %v815 = vadd.f32 %v749, %v803
  %816 = vset.pattern.permute.xlu0 12
  %817 = vperm.xlu0 %816, %v50
  %v818 = vpop.permute.xlu0 %817
  %820 = vset.pattern.permute.xlu0 12
  %821 = vperm.xlu0 %820, %v51
  %v822 = vpop.permute.xlu0 %821
  %824 = vset.pattern.permute.xlu0 12
  %825 = vperm.xlu0 %824, %v52
  %v826 = vpop.permute.xlu0 %825
  %828 = vset.pattern.permute.xlu0 12
  %829 = vperm.xlu0 %828, %v53
  %v830 = vpop.permute.xlu0 %829
  %832 = vset.pattern.permute.xlu0 12
  %833 = vperm.xlu0 %832, %v54
  %v834 = vpop.permute.xlu0 %833
  %836 = vset.pattern.permute.xlu0 12
  %837 = vperm.xlu0 %836, %v55
  %v838 = vpop.permute.xlu0 %837
  %v840 = vlaneseq
  %v841 = vshrl.u32 %v840, 7
  %v842 = vsub.s32 2, %v841
  %v843 = vrot.slane %v13, %v842
  %v844 = vlaneseq
  %v845 = vshrl.u32 %v844, 7
  %v846 = vsub.s32 6, %v845
  %v847 = vrot.slane %v13, %v846
  %v850 = vlaneseq
  %v851 = vshrl.u32 %v850, 7
  %v852 = vsub.s32 2, %v851
  %v853 = vrot.slane %v843, %v852
  %v854 = vlaneseq
  %v855 = vshrl.u32 %v854, 7
  %v856 = vsub.s32 2, %v855
  %v857 = vrot.slane %v847, %v856
  %v858 = vmul.f32 %v818, %v853
  %v859 = vmul.f32 %v818, %v857
  %v860 = vmul.f32 %v822, %v853
  %v861 = vmul.f32 %v822, %v857
  %v862 = vmul.f32 %v826, %v853
  %v863 = vmul.f32 %v826, %v857
  %v864 = vmul.f32 %v830, %v853
  %v865 = vmul.f32 %v830, %v857
  %v866 = vmul.f32 %v834, %v853
  %v867 = vmul.f32 %v834, %v857
  %v868 = vmul.f32 %v838, %v853
  %v869 = vmul.f32 %v838, %v857
  %v870 = vadd.f32 %v804, %v858
  %v871 = vadd.f32 %v805, %v859
  %v872 = vadd.f32 %v806, %v860
  %v873 = vadd.f32 %v807, %v861
  %v874 = vadd.f32 %v808, %v862
  %v875 = vadd.f32 %v809, %v863
  %v876 = vadd.f32 %v810, %v864
  %v877 = vadd.f32 %v811, %v865
  %v878 = vadd.f32 %v812, %v866
  %v879 = vadd.f32 %v813, %v867
  %v880 = vadd.f32 %v814, %v868
  %v881 = vadd.f32 %v815, %v869
  %v882 = vadd.f32 %v683, %v870
  %v883 = vadd.f32 %v684, %v871
  %v884 = vadd.f32 %v685, %v872
  %v885 = vadd.f32 %v686, %v873
  %v886 = vadd.f32 %v687, %v874
  %v887 = vadd.f32 %v688, %v875
  %v888 = vadd.f32 %v689, %v876
  %v889 = vadd.f32 %v690, %v877
  %v890 = vadd.f32 %v691, %v878
  %v891 = vadd.f32 %v692, %v879
  %v892 = vadd.f32 %v693, %v880
  %v893 = vadd.f32 %v694, %v881
  %894 = vset.pattern.permute.xlu0 13
  %895 = vperm.xlu0 %894, %v50
  %v896 = vpop.permute.xlu0 %895
  %898 = vset.pattern.permute.xlu0 13
  %899 = vperm.xlu0 %898, %v51
  %v900 = vpop.permute.xlu0 %899
  %902 = vset.pattern.permute.xlu0 13
  %903 = vperm.xlu0 %902, %v52
  %v904 = vpop.permute.xlu0 %903
  %906 = vset.pattern.permute.xlu0 13
  %907 = vperm.xlu0 %906, %v53
  %v908 = vpop.permute.xlu0 %907
  %910 = vset.pattern.permute.xlu0 13
  %911 = vperm.xlu0 %910, %v54
  %v912 = vpop.permute.xlu0 %911
  %914 = vset.pattern.permute.xlu0 13
  %915 = vperm.xlu0 %914, %v55
  %v916 = vpop.permute.xlu0 %915
  %v918 = vadd.f32 %v882, %v896
  %v919 = vadd.f32 %v883, %v896
  %v920 = vadd.f32 %v884, %v900
  %v921 = vadd.f32 %v885, %v900
  %v922 = vadd.f32 %v886, %v904
  %v923 = vadd.f32 %v887, %v904
  %v924 = vadd.f32 %v888, %v908
  %v925 = vadd.f32 %v889, %v908
  %v926 = vadd.f32 %v890, %v912
  %v927 = vadd.f32 %v891, %v912
  %v928 = vadd.f32 %v892, %v916
  %v929 = vadd.f32 %v893, %v916
  %v930 = vmax.f32 %v918, 0.0
  %v931 = vmax.f32 %v919, 0.0
  %v932 = vmax.f32 %v920, 0.0
  %v933 = vmax.f32 %v921, 0.0
  %v934 = vmax.f32 %v922, 0.0
  %v935 = vmax.f32 %v923, 0.0
  %v936 = vmax.f32 %v924, 0.0
  %v937 = vmax.f32 %v925, 0.0
  %v938 = vmax.f32 %v926, 0.0
  %v939 = vmax.f32 %v927, 0.0
  %v940 = vmax.f32 %v928, 0.0
  %v941 = vmax.f32 %v929, 0.0
  %v942 = vld [vmem:[%s1 + $0x30] sm:$0xff]
  %v943 = vld [vmem:[%s1 + $0x38] sm:$0xff]
  %v944 = vld [vmem:[%s1 + $0x40] sm:$0xff]
  %v945 = vld [vmem:[%s1 + $0x48] sm:$0xf]
  %947 = vset.pattern.permute.xlu0 16
  %948 = vperm.xlu0 %947, %v942
  %v949 = vpop.permute.xlu0 %948
  %952 = vset.pattern.permute.xlu0 16
  %953 = vperm.xlu0 %952, %v943
  %v954 = vpop.permute.xlu0 %953
  %957 = vset.pattern.permute.xlu0 16
  %958 = vperm.xlu0 %957, %v944
  %v959 = vpop.permute.xlu0 %958
  %962 = vset.pattern.permute.xlu0 16
  %963 = vperm.xlu0 %962, %v945
  %v964 = vpop.permute.xlu0 %963
  %vm966 = vcmask 130048
  %v967 = vsel %vm966, %v942, 0
  %v969 = vsel %vm966, %v943, 0
  %v971 = vsel %vm966, %v944, 0
  %v973 = vsel %vm966, %v945, 0
  %975 = vmatprep.subr.mxu0 %v931
  %976 = vmatpush1.msra.mxu0 %v930
  %977 = vmatprep.subr.mxu0 %v933
  %978 = vmatpush1.msra.mxu0 %v932
  %979 = vmatprep.subr.mxu0 0.0
  %980 = vmatpush1.msra.mxu0 0.0
  %981 = vmatprep.subr.mxu0 0.0
  %982 = vmatpush1.msra.mxu0 0.0
  %983 = vmatprep.subr.mxu0 0.0
  %984 = vmatpush1.msra.mxu0 0.0
  %985 = vmatprep.subr.mxu0 0.0
  %986 = vmatpush1.msra.mxu0 0.0
  %987 = vmatprep.subr.mxu0 0.0
  %988 = vmatpush1.msra.mxu0 0.0
  %989 = vmatprep.subr.mxu0 0.0
  %990 = vmatpush1.msra.mxu0 0.0
  %991 = vmatprep.subr.mxu0 0.0
  %992 = vmatpush1.msra.mxu0 0.0
  %993 = vmatprep.subr.mxu0 0.0
  %994 = vmatpush1.msra.mxu0 0.0
  %995 = vmatprep.subr.mxu0 0.0
  %996 = vmatpush1.msra.mxu0 0.0
  %997 = vmatprep.subr.mxu0 0.0
  %998 = vmatpush1.msra.mxu0 0.0
  %999 = vmatprep.subr.mxu0 0.0
  %1000 = vmatpush1.msra.mxu0 0.0
  %1001 = vmatprep.subr.mxu0 0.0
  %1002 = vmatpush1.msra.mxu0 0.0
  %1003 = vmatprep.subr.mxu0 0.0
  %1004 = vmatpush1.msra.mxu0 0.0
  %1005 = vmatprep.subr.mxu0 0.0
  %1006 = vmatpush1.msra.mxu0 0.0
  %1007 = vmatprep.subr.mxu0 0.0
  %1008 = vmatpush1.msra.mxu0 0.0
  %1009 = vmatprep.subr.mxu0 0.0
  %1010 = vmatpush1.msra.mxu0 0.0
  %1011 = vmatprep.subr.mxu0 0.0
  %1012 = vmatpush1.msra.mxu0 0.0
  %1013 = vmatprep.subr.mxu0 0.0
  %1014 = vmatpush1.msra.mxu0 0.0
  %1015 = vmatprep.subr.mxu0 0.0
  %1016 = vmatpush1.msra.mxu0 0.0
  %1017 = vmatprep.subr.mxu0 0.0
  %1018 = vmatpush1.msra.mxu0 0.0
  %1019 = vmatprep.subr.mxu0 0.0
  %1020 = vmatpush1.msra.mxu0 0.0
  %1021 = vmatprep.subr.mxu0 0.0
  %1022 = vmatpush1.msra.mxu0 0.0
  %1023 = vmatprep.subr.mxu0 0.0
  %1024 = vmatpush1.msra.mxu0 0.0
  %1025 = vmatprep.subr.mxu0 0.0
  %1026 = vmatpush1.msra.mxu0 0.0
  %1027 = vmatprep.subr.mxu0 0.0
  %1028 = vmatpush1.msra.mxu0 0.0
  %1029 = vmatprep.subr.mxu0 0.0
  %1030 = vmatpush1.msra.mxu0 0.0
  %1031 = vmatprep.subr.mxu0 0.0
  %1032 = vmatpush1.msra.mxu0 0.0
  %1033 = vmatprep.subr.mxu0 0.0
  %1034 = vmatpush1.msra.mxu0 0.0
  %1035 = vmatprep.subr.mxu0 0.0
  %1036 = vmatpush1.msra.mxu0 0.0
  %1037 = vmatprep.subr.mxu0 0.0
  %1038 = vmatpush1.msra.mxu0 0.0
  %1039 = vmatprep.mubr.f32.mxu0 0.0
  %1040 = vmatmul.mubr.f32.gmra.mrb[0].mxu0 %v967
  %v1041 = vpop.f32.mrb[0].mxu0
  %v1042 = vadd.f32 %v949, %v1041
  %v1043 = vpop.f32.mrb[0].mxu0
  %v1044 = vadd.f32 %v949, %v1043
  %1045 = vmatprep.mubr.f32.mxu0 0.0
  %1046 = vmatmul.mubr.f32.gmra.mrb[0].mxu0 %v969
  %v1047 = vpop.f32.mrb[0].mxu0
  %v1048 = vadd.f32 %v954, %v1047
  %v1049 = vpop.f32.mrb[0].mxu0
  %v1050 = vadd.f32 %v954, %v1049
  %1051 = vmatprep.mubr.f32.mxu0 0.0
  %1052 = vmatmul.mubr.f32.gmra.mrb[0].mxu0 %v971
  %v1053 = vpop.f32.mrb[0].mxu0
  %v1054 = vadd.f32 %v959, %v1053
  %v1055 = vpop.f32.mrb[0].mxu0
  %v1056 = vadd.f32 %v959, %v1055
  %1057 = vmatprep.mubr.f32.mxu0 0.0
  %1058 = vmatmul.mubr.f32.gmra.mrb[0].mxu0 %v973
  %v1059 = vpop.f32.mrb[0].mxu0
  %v1060 = vadd.f32 %v964, %v1059
  %v1061 = vpop.f32.mrb[0].mxu0
  %v1062 = vadd.f32 %v964, %v1061
  %1063 = vdwg.mxu0
  %v1064 = vmax.f32 %v1042, 0.0
  %v1065 = vmax.f32 %v1044, 0.0
  %v1066 = vmax.f32 %v1048, 0.0
  %v1067 = vmax.f32 %v1050, 0.0
  %v1068 = vmax.f32 %v1054, 0.0
  %v1069 = vmax.f32 %v1056, 0.0
  %v1070 = vmax.f32 %v1060, 0.0
  %v1071 = vmax.f32 %v1062, 0.0
  %v1072 = vld [vmem:[%s1 + $0x50] sm:$0xff]
  %v1073 = vld [vmem:[%s1 + $0x58] sm:$0x1]
  %v1074 = vcombine.high %v11, %v11
  %v1076 = vcombine.high %v13, %v13
  %1079 = vset.pattern.permute.xlu0 0
  %1080 = vperm.xlu0 %1079, %v1072
  %v1081 = vpop.permute.xlu0 %1080
  %1084 = vset.pattern.permute.xlu0 0
  %1085 = vperm.xlu0 %1084, %v1073
  %v1086 = vpop.permute.xlu0 %1085
  %v1088 = vlaneseq
  %v1089 = vshrl.u32 %v1088, 7
  %v1090 = vsub.s32 0, %v1089
  %v1091 = vrot.slane %v11, %v1090
  %v1092 = vlaneseq
  %v1093 = vshrl.u32 %v1092, 7
  %v1094 = vsub.s32 0, %v1093
  %v1095 = vrot.slane %v1074, %v1094
  %v1096 = vlaneseq
  %v1097 = vshrl.u32 %v1096, 7
  %v1098 = vsub.s32 0, %v1097
  %v1099 = vrot.slane %v13, %v1098
  %v1100 = vlaneseq
  %v1101 = vshrl.u32 %v1100, 7
  %v1102 = vsub.s32 0, %v1101
  %v1103 = vrot.slane %v1076, %v1102
  %v1104 = vmul.f32 %v1081, %v1091
  %v1105 = vmul.f32 %v1081, %v1095
  %v1106 = vmul.f32 %v1081, %v1099
  %v1107 = vmul.f32 %v1081, %v1103
  %v1108 = vmul.f32 %v1086, %v1091
  %v1109 = vmul.f32 %v1086, %v1095
  %v1110 = vmul.f32 %v1086, %v1099
  %v1111 = vmul.f32 %v1086, %v1103
  %1112 = vset.pattern.permute.xlu0 1
  %1113 = vperm.xlu0 %1112, %v1072
  %v1114 = vpop.permute.xlu0 %1113
  %1116 = vset.pattern.permute.xlu0 1
  %1117 = vperm.xlu0 %1116, %v1073
  %v1118 = vpop.permute.xlu0 %1117
  %v1120 = vlaneseq
  %v1121 = vshrl.u32 %v1120, 7
  %v1122 = vsub.s32 1, %v1121
  %v1123 = vrot.slane %v11, %v1122
  %v1124 = vlaneseq
  %v1125 = vshrl.u32 %v1124, 7
  %v1126 = vsub.s32 1, %v1125
  %v1127 = vrot.slane %v1074, %v1126
  %v1128 = vlaneseq
  %v1129 = vshrl.u32 %v1128, 7
  %v1130 = vsub.s32 1, %v1129
  %v1131 = vrot.slane %v13, %v1130
  %v1132 = vlaneseq
  %v1133 = vshrl.u32 %v1132, 7
  %v1134 = vsub.s32 1, %v1133
  %v1135 = vrot.slane %v1076, %v1134
  %v1136 = vmul.f32 %v1114, %v1123
  %v1137 = vmul.f32 %v1114, %v1127
  %v1138 = vmul.f32 %v1114, %v1131
  %v1139 = vmul.f32 %v1114, %v1135
  %v1140 = vmul.f32 %v1118, %v1123
  %v1141 = vmul.f32 %v1118, %v1127
  %v1142 = vmul.f32 %v1118, %v1131
  %v1143 = vmul.f32 %v1118, %v1135
  %v1144 = vadd.f32 %v1104, %v1136
  %v1145 = vadd.f32 %v1105, %v1137
  %v1146 = vadd.f32 %v1106, %v1138
  %v1147 = vadd.f32 %v1107, %v1139
  %v1148 = vadd.f32 %v1108, %v1140
  %v1149 = vadd.f32 %v1109, %v1141
  %v1150 = vadd.f32 %v1110, %v1142
  %v1151 = vadd.f32 %v1111, %v1143
  %1152 = vset.pattern.permute.xlu0 2
  %1153 = vperm.xlu0 %1152, %v1072
  %v1154 = vpop.permute.xlu0 %1153
  %1156 = vset.pattern.permute.xlu0 2
  %1157 = vperm.xlu0 %1156, %v1073
  %v1158 = vpop.permute.xlu0 %1157
  %v1160 = vlaneseq
  %v1161 = vshrl.u32 %v1160, 7
  %v1162 = vsub.s32 2, %v1161
  %v1163 = vrot.slane %v11, %v1162
  %v1164 = vlaneseq
  %v1165 = vshrl.u32 %v1164, 7
  %v1166 = vsub.s32 2, %v1165
  %v1167 = vrot.slane %v1074, %v1166
  %v1168 = vlaneseq
  %v1169 = vshrl.u32 %v1168, 7
  %v1170 = vsub.s32 2, %v1169
  %v1171 = vrot.slane %v13, %v1170
  %v1172 = vlaneseq
  %v1173 = vshrl.u32 %v1172, 7
  %v1174 = vsub.s32 2, %v1173
  %v1175 = vrot.slane %v1076, %v1174
  %v1176 = vmul.f32 %v1154, %v1163
  %v1177 = vmul.f32 %v1154, %v1167
  %v1178 = vmul.f32 %v1154, %v1171
  %v1179 = vmul.f32 %v1154, %v1175
  %v1180 = vmul.f32 %v1158, %v1163
  %v1181 = vmul.f32 %v1158, %v1167
  %v1182 = vmul.f32 %v1158, %v1171
  %v1183 = vmul.f32 %v1158, %v1175
  %v1184 = vadd.f32 %v1144, %v1176
  %v1185 = vadd.f32 %v1145, %v1177
  %v1186 = vadd.f32 %v1146, %v1178
  %v1187 = vadd.f32 %v1147, %v1179
  %v1188 = vadd.f32 %v1148, %v1180
  %v1189 = vadd.f32 %v1149, %v1181
  %v1190 = vadd.f32 %v1150, %v1182
  %v1191 = vadd.f32 %v1151, %v1183
  %1192 = vset.pattern.permute.xlu0 3
  %1193 = vperm.xlu0 %1192, %v1072
  %v1194 = vpop.permute.xlu0 %1193
  %1196 = vset.pattern.permute.xlu0 3
  %1197 = vperm.xlu0 %1196, %v1073
  %v1198 = vpop.permute.xlu0 %1197
  %v1200 = vadd.f32 %v1184, %v1194
  %v1201 = vadd.f32 %v1185, %v1194
  %v1202 = vadd.f32 %v1186, %v1194
  %v1203 = vadd.f32 %v1187, %v1194
  %v1204 = vadd.f32 %v1188, %v1198
  %v1205 = vadd.f32 %v1189, %v1198
  %v1206 = vadd.f32 %v1190, %v1198
  %v1207 = vadd.f32 %v1191, %v1198
  %v1208 = vmax.f32 %v1200, 0.0
  %v1209 = vmax.f32 %v1201, 0.0
  %v1210 = vmax.f32 %v1202, 0.0
  %v1211 = vmax.f32 %v1203, 0.0
  %v1212 = vmax.f32 %v1204, 0.0
  %v1213 = vmax.f32 %v1205, 0.0
  %v1214 = vmax.f32 %v1206, 0.0
  %v1215 = vmax.f32 %v1207, 0.0
  %v1216 = vld [vmem:[%s1 + $0x60] sm:$0xff]
  %v1217 = vld [vmem:[%s1 + $0x68] sm:$0xff]
  %v1218 = vld [vmem:[%s1 + $0x70] sm:$0x3]
  %1220 = vset.pattern.permute.xlu0 9
  %1221 = vperm.xlu0 %1220, %v1216
  %v1222 = vpop.permute.xlu0 %1221
  %1225 = vset.pattern.permute.xlu0 9
  %1226 = vperm.xlu0 %1225, %v1217
  %v1227 = vpop.permute.xlu0 %1226
  %1230 = vset.pattern.permute.xlu0 9
  %1231 = vperm.xlu0 %1230, %v1218
  %v1232 = vpop.permute.xlu0 %1231
  %vm1234 = vcmask 72704
  %v1235 = vsel %vm1234, %v1216, 0
  %v1237 = vsel %vm1234, %v1217, 0
  %v1239 = vsel %vm1234, %v1218, 0
  %vm1241 = vcmask 1040384
  %v1243 = vsel %vm1241, %v1212, 0
  %v1246 = vsel %vm1241, %v1213, 0
  %v1249 = vsel %vm1241, %v1214, 0
  %v1252 = vsel %vm1241, %v1215, 0
  %1254 = vmatprep.subr.mxu0 %v1209
  %1255 = vmatpush1.msra.mxu0 %v1208
  %1256 = vmatprep.subr.mxu0 %v1246
  %1257 = vmatpush1.msra.mxu0 %v1243
  %1258 = vmatprep.subr.mxu0 0.0
  %1259 = vmatpush1.msra.mxu0 0.0
  %1260 = vmatprep.subr.mxu0 0.0
  %1261 = vmatpush1.msra.mxu0 0.0
  %1262 = vmatprep.subr.mxu0 0.0
  %1263 = vmatpush1.msra.mxu0 0.0
  %1264 = vmatprep.subr.mxu0 0.0
  %1265 = vmatpush1.msra.mxu0 0.0
  %1266 = vmatprep.subr.mxu0 0.0
  %1267 = vmatpush1.msra.mxu0 0.0
  %1268 = vmatprep.subr.mxu0 0.0
  %1269 = vmatpush1.msra.mxu0 0.0
  %1270 = vmatprep.subr.mxu0 0.0
  %1271 = vmatpush1.msra.mxu0 0.0
  %1272 = vmatprep.subr.mxu0 0.0
  %1273 = vmatpush1.msra.mxu0 0.0
  %1274 = vmatprep.subr.mxu0 0.0
  %1275 = vmatpush1.msra.mxu0 0.0
  %1276 = vmatprep.subr.mxu0 0.0
  %1277 = vmatpush1.msra.mxu0 0.0
  %1278 = vmatprep.subr.mxu0 0.0
  %1279 = vmatpush1.msra.mxu0 0.0
  %1280 = vmatprep.subr.mxu0 0.0
  %1281 = vmatpush1.msra.mxu0 0.0
  %1282 = vmatprep.subr.mxu0 0.0
  %1283 = vmatpush1.msra.mxu0 0.0
  %1284 = vmatprep.subr.mxu0 0.0
  %1285 = vmatpush1.msra.mxu0 0.0
  %1286 = vmatprep.subr.mxu0 0.0
  %1287 = vmatpush1.msra.mxu0 0.0
  %1288 = vmatprep.subr.mxu0 0.0
  %1289 = vmatpush1.msra.mxu0 0.0
  %1290 = vmatprep.subr.mxu0 0.0
  %1291 = vmatpush1.msra.mxu0 0.0
  %1292 = vmatprep.subr.mxu0 0.0
  %1293 = vmatpush1.msra.mxu0 0.0
  %1294 = vmatprep.subr.mxu0 0.0
  %1295 = vmatpush1.msra.mxu0 0.0
  %1296 = vmatprep.subr.mxu0 0.0
  %1297 = vmatpush1.msra.mxu0 0.0
  %1298 = vmatprep.subr.mxu0 0.0
  %1299 = vmatpush1.msra.mxu0 0.0
  %1300 = vmatprep.subr.mxu0 0.0
  %1301 = vmatpush1.msra.mxu0 0.0
  %1302 = vmatprep.subr.mxu0 0.0
  %1303 = vmatpush1.msra.mxu0 0.0
  %1304 = vmatprep.subr.mxu0 0.0
  %1305 = vmatpush1.msra.mxu0 0.0
  %1306 = vmatprep.subr.mxu0 0.0
  %1307 = vmatpush1.msra.mxu0 0.0
  %1308 = vmatprep.subr.mxu0 0.0
  %1309 = vmatpush1.msra.mxu0 0.0
  %1310 = vmatprep.subr.mxu0 0.0
  %1311 = vmatpush1.msra.mxu0 0.0
  %1312 = vmatprep.subr.mxu0 0.0
  %1313 = vmatpush1.msra.mxu0 0.0
  %1314 = vmatprep.subr.mxu0 0.0
  %1315 = vmatpush1.msra.mxu0 0.0
  %1316 = vmatprep.subr.mxu0 0.0
  %1317 = vmatpush1.msra.mxu0 0.0
  %1318 = vmatprep.mubr.f32.mxu0 0.0
  %1319 = vmatmul.mubr.f32.gmra.mrb[0].mxu0 %v1235
  %v1320 = vpop.f32.mrb[0].mxu0
  %v1321 = vadd.f32 %v1222, %v1320
  %v1322 = vpop.f32.mrb[0].mxu0
  %v1323 = vadd.f32 %v1222, %v1322
  %1324 = vmatprep.mubr.f32.mxu0 0.0
  %1325 = vmatmul.mubr.f32.gmra.mrb[0].mxu0 %v1237
  %v1326 = vpop.f32.mrb[0].mxu0
  %v1327 = vadd.f32 %v1227, %v1326
  %v1328 = vpop.f32.mrb[0].mxu0
  %v1329 = vadd.f32 %v1227, %v1328
  %1330 = vmatprep.mubr.f32.mxu0 0.0
  %1331 = vmatmul.mubr.f32.gmra.mrb[0].mxu0 %v1239
  %v1332 = vpop.f32.mrb[0].mxu0
  %v1333 = vadd.f32 %v1232, %v1332
  %v1334 = vpop.f32.mrb[0].mxu0
  %v1335 = vadd.f32 %v1232, %v1334
  %1336 = vdwg.mxu0
  %1337 = vmatprep.subr.mxu0 %v1211
  %1338 = vmatpush1.msra.mxu0 %v1210
  %1339 = vmatprep.subr.mxu0 %v1252
  %1340 = vmatpush1.msra.mxu0 %v1249
  %1341 = vmatprep.subr.mxu0 0.0
  %1342 = vmatpush1.msra.mxu0 0.0
  %1343 = vmatprep.subr.mxu0 0.0
  %1344 = vmatpush1.msra.mxu0 0.0
  %1345 = vmatprep.subr.mxu0 0.0
  %1346 = vmatpush1.msra.mxu0 0.0
  %1347 = vmatprep.subr.mxu0 0.0
  %1348 = vmatpush1.msra.mxu0 0.0
  %1349 = vmatprep.subr.mxu0 0.0
  %1350 = vmatpush1.msra.mxu0 0.0
  %1351 = vmatprep.subr.mxu0 0.0
  %1352 = vmatpush1.msra.mxu0 0.0
  %1353 = vmatprep.subr.mxu0 0.0
  %1354 = vmatpush1.msra.mxu0 0.0
  %1355 = vmatprep.subr.mxu0 0.0
  %1356 = vmatpush1.msra.mxu0 0.0
  %1357 = vmatprep.subr.mxu0 0.0
  %1358 = vmatpush1.msra.mxu0 0.0
  %1359 = vmatprep.subr.mxu0 0.0
  %1360 = vmatpush1.msra.mxu0 0.0
  %1361 = vmatprep.subr.mxu0 0.0
  %1362 = vmatpush1.msra.mxu0 0.0
  %1363 = vmatprep.subr.mxu0 0.0
  %1364 = vmatpush1.msra.mxu0 0.0
  %1365 = vmatprep.subr.mxu0 0.0
  %1366 = vmatpush1.msra.mxu0 0.0
  %1367 = vmatprep.subr.mxu0 0.0
  %1368 = vmatpush1.msra.mxu0 0.0
  %1369 = vmatprep.subr.mxu0 0.0
  %1370 = vmatpush1.msra.mxu0 0.0
  %1371 = vmatprep.subr.mxu0 0.0
  %1372 = vmatpush1.msra.mxu0 0.0
  %1373 = vmatprep.subr.mxu0 0.0
  %1374 = vmatpush1.msra.mxu0 0.0
  %1375 = vmatprep.subr.mxu0 0.0
  %1376 = vmatpush1.msra.mxu0 0.0
  %1377 = vmatprep.subr.mxu0 0.0
  %1378 = vmatpush1.msra.mxu0 0.0
  %1379 = vmatprep.subr.mxu0 0.0
  %1380 = vmatpush1.msra.mxu0 0.0
  %1381 = vmatprep.subr.mxu0 0.0
  %1382 = vmatpush1.msra.mxu0 0.0
  %1383 = vmatprep.subr.mxu0 0.0
  %1384 = vmatpush1.msra.mxu0 0.0
  %1385 = vmatprep.subr.mxu0 0.0
  %1386 = vmatpush1.msra.mxu0 0.0
  %1387 = vmatprep.subr.mxu0 0.0
  %1388 = vmatpush1.msra.mxu0 0.0
  %1389 = vmatprep.subr.mxu0 0.0
  %1390 = vmatpush1.msra.mxu0 0.0
  %1391 = vmatprep.subr.mxu0 0.0
  %1392 = vmatpush1.msra.mxu0 0.0
  %1393 = vmatprep.subr.mxu0 0.0
  %1394 = vmatpush1.msra.mxu0 0.0
  %1395 = vmatprep.subr.mxu0 0.0
  %1396 = vmatpush1.msra.mxu0 0.0
  %1397 = vmatprep.subr.mxu0 0.0
  %1398 = vmatpush1.msra.mxu0 0.0
  %1399 = vmatprep.subr.mxu0 0.0
  %1400 = vmatpush1.msra.mxu0 0.0
  %1401 = vmatprep.mubr.f32.mxu0 0.0
  %1402 = vmatmul.mubr.f32.gmra.mrb[0].mxu0 %v1235
  %v1403 = vpop.f32.mrb[0].mxu0
  %v1404 = vadd.f32 %v1222, %v1403
  %v1405 = vpop.f32.mrb[0].mxu0
  %v1406 = vadd.f32 %v1222, %v1405
  %1407 = vmatprep.mubr.f32.mxu0 0.0
  %1408 = vmatmul.mubr.f32.gmra.mrb[0].mxu0 %v1237
  %v1409 = vpop.f32.mrb[0].mxu0
  %v1410 = vadd.f32 %v1227, %v1409
  %v1411 = vpop.f32.mrb[0].mxu0
  %v1412 = vadd.f32 %v1227, %v1411
  %1413 = vmatprep.mubr.f32.mxu0 0.0
  %1414 = vmatmul.mubr.f32.gmra.mrb[0].mxu0 %v1239
  %v1415 = vpop.f32.mrb[0].mxu0
  %v1416 = vadd.f32 %v1232, %v1415
  %v1417 = vpop.f32.mrb[0].mxu0
  %v1418 = vadd.f32 %v1232, %v1417
  %1419 = vdwg.mxu0
  %v1420 = vmax.f32 %v1321, 0.0
  %v1421 = vmax.f32 %v1323, 0.0
  %v1422 = vmax.f32 %v1404, 0.0
  %v1423 = vmax.f32 %v1406, 0.0
  %v1424 = vmax.f32 %v1327, 0.0
  %v1425 = vmax.f32 %v1329, 0.0
  %v1426 = vmax.f32 %v1410, 0.0
  %v1427 = vmax.f32 %v1412, 0.0
  %v1428 = vmax.f32 %v1333, 0.0
  %v1429 = vmax.f32 %v1335, 0.0
  %v1430 = vmax.f32 %v1416, 0.0
  %v1431 = vmax.f32 %v1418, 0.0
  %vm1438 = vcmask 1043456
  %v1439 = vrot.slane %v1420, 4
  %v1440 = vrot.slane %v1421, 4
  %v1441 = vrot.slane %v1424, 4
  %v1442 = vsel %vm1438, %v1439, %v1441
  %v1443 = vrot.slane %v1425, 4
  %v1444 = vsel %vm1438, %v1440, %v1443
  %v1445 = vrot.slane %v1428, 4
  %v1446 = vsel %vm1438, %v1441, %v1445
  %v1447 = vrot.slane %v1429, 4
  %v1448 = vsel %vm1438, %v1443, %v1447
  %vm1461 = vcmask 1045504
  %v1462 = vrot.slane %v1422, 2
  %v1463 = vrot.slane %v1423, 2
  %v1464 = vrot.slane %v1426, 2
  %v1465 = vsel %vm1461, %v1462, %v1464
  %v1466 = vrot.slane %v1427, 2
  %v1467 = vsel %vm1461, %v1463, %v1466
  %v1468 = vrot.slane %v1430, 2
  %v1469 = vsel %vm1461, %v1464, %v1468
  %v1470 = vrot.slane %v1431, 2
  %v1471 = vsel %vm1461, %v1466, %v1470
  %v1478 = vsel %vm1438, %v1070, %v1439
  %v1479 = vsel %vm1438, %v1071, %v1440
  %v1480 = vsel %vm1461, %v1446, %v1462
  %v1481 = vsel %vm1461, %v1448, %v1463
  %v1482 = vld [vmem:[%s1 + $0x78] sm:$0xff]
  %v1483 = vld [vmem:[%s1 + $0x80] sm:$0xff]
  %v1484 = vld [vmem:[%s1 + $0x88] sm:$0xff]
  %v1485 = vld [vmem:[%s1 + $0x90] sm:$0xff]
  %v1486 = vld [vmem:[%s1 + $0x98] sm:$0xff]
  %v1487 = vld [vmem:[%s1 + $0xa0] sm:$0xff]
  %v1488 = vld [vmem:[%s1 + $0xa8] sm:$0xff]
  %v1489 = vld [vmem:[%s1 + $0xb0] sm:$0xff]
  %1491 = vset.pattern.permute.xlu0 32
  %1492 = vperm.xlu0 %1491, %v1482
  %v1493 = vpop.permute.xlu0 %1492
  %1496 = vset.pattern.permute.xlu0 32
  %1497 = vperm.xlu0 %1496, %v1483
  %v1498 = vpop.permute.xlu0 %1497
  %1501 = vset.pattern.permute.xlu0 32
  %1502 = vperm.xlu0 %1501, %v1484
  %v1503 = vpop.permute.xlu0 %1502
  %1506 = vset.pattern.permute.xlu0 32
  %1507 = vperm.xlu0 %1506, %v1485
  %v1508 = vpop.permute.xlu0 %1507
  %1511 = vset.pattern.permute.xlu0 32
  %1512 = vperm.xlu0 %1511, %v1486
  %v1513 = vpop.permute.xlu0 %1512
  %1516 = vset.pattern.permute.xlu0 32
  %1517 = vperm.xlu0 %1516, %v1487
  %v1518 = vpop.permute.xlu0 %1517
  %1521 = vset.pattern.permute.xlu0 32
  %1522 = vperm.xlu0 %1521, %v1488
  %v1523 = vpop.permute.xlu0 %1522
  %1526 = vset.pattern.permute.xlu0 32
  %1527 = vperm.xlu0 %1526, %v1489
  %v1528 = vpop.permute.xlu0 %1527
  %vm1530 = vcmask 261120
  %v1531 = vsel %vm1530, %v1482, 0
  %v1533 = vsel %vm1530, %v1483, 0
  %v1535 = vsel %vm1530, %v1484, 0
  %v1537 = vsel %vm1530, %v1485, 0
  %v1539 = vsel %vm1530, %v1486, 0
  %v1541 = vsel %vm1530, %v1487, 0
  %v1543 = vsel %vm1530, %v1488, 0
  %v1545 = vsel %vm1530, %v1489, 0
  %1547 = vmatprep.subr.mxu0 %v935
  %1548 = vmatpush1.msra.mxu0 %v934
  %1549 = vmatprep.subr.mxu0 %v937
  %1550 = vmatpush1.msra.mxu0 %v936
  %1551 = vmatprep.subr.mxu0 %v939
  %1552 = vmatpush1.msra.mxu0 %v938
  %1553 = vmatprep.subr.mxu0 %v941
  %1554 = vmatpush1.msra.mxu0 %v940
  %1555 = vmatprep.subr.mxu0 0.0
  %1556 = vmatpush1.msra.mxu0 0.0
  %1557 = vmatprep.subr.mxu0 0.0
  %1558 = vmatpush1.msra.mxu0 0.0
  %1559 = vmatprep.subr.mxu0 0.0
  %1560 = vmatpush1.msra.mxu0 0.0
  %1561 = vmatprep.subr.mxu0 0.0
  %1562 = vmatpush1.msra.mxu0 0.0
  %1563 = vmatprep.subr.mxu0 0.0
  %1564 = vmatpush1.msra.mxu0 0.0
  %1565 = vmatprep.subr.mxu0 0.0
  %1566 = vmatpush1.msra.mxu0 0.0
  %1567 = vmatprep.subr.mxu0 0.0
  %1568 = vmatpush1.msra.mxu0 0.0
  %1569 = vmatprep.subr.mxu0 0.0
  %1570 = vmatpush1.msra.mxu0 0.0
  %1571 = vmatprep.subr.mxu0 0.0
  %1572 = vmatpush1.msra.mxu0 0.0
  %1573 = vmatprep.subr.mxu0 0.0
  %1574 = vmatpush1.msra.mxu0 0.0
  %1575 = vmatprep.subr.mxu0 0.0
  %1576 = vmatpush1.msra.mxu0 0.0
  %1577 = vmatprep.subr.mxu0 0.0
  %1578 = vmatpush1.msra.mxu0 0.0
  %1579 = vmatprep.subr.mxu0 0.0
  %1580 = vmatpush1.msra.mxu0 0.0
  %1581 = vmatprep.subr.mxu0 0.0
  %1582 = vmatpush1.msra.mxu0 0.0
  %1583 = vmatprep.subr.mxu0 0.0
  %1584 = vmatpush1.msra.mxu0 0.0
  %1585 = vmatprep.subr.mxu0 0.0
  %1586 = vmatpush1.msra.mxu0 0.0
  %1587 = vmatprep.subr.mxu0 0.0
  %1588 = vmatpush1.msra.mxu0 0.0
  %1589 = vmatprep.subr.mxu0 0.0
  %1590 = vmatpush1.msra.mxu0 0.0
  %1591 = vmatprep.subr.mxu0 0.0
  %1592 = vmatpush1.msra.mxu0 0.0
  %1593 = vmatprep.subr.mxu0 0.0
  %1594 = vmatpush1.msra.mxu0 0.0
  %1595 = vmatprep.subr.mxu0 0.0
  %1596 = vmatpush1.msra.mxu0 0.0
  %1597 = vmatprep.subr.mxu0 0.0
  %1598 = vmatpush1.msra.mxu0 0.0
  %1599 = vmatprep.subr.mxu0 0.0
  %1600 = vmatpush1.msra.mxu0 0.0
  %1601 = vmatprep.subr.mxu0 0.0
  %1602 = vmatpush1.msra.mxu0 0.0
  %1603 = vmatprep.subr.mxu0 0.0
  %1604 = vmatpush1.msra.mxu0 0.0
  %1605 = vmatprep.subr.mxu0 0.0
  %1606 = vmatpush1.msra.mxu0 0.0
  %1607 = vmatprep.subr.mxu0 0.0
  %1608 = vmatpush1.msra.mxu0 0.0
  %1609 = vmatprep.subr.mxu0 0.0
  %1610 = vmatpush1.msra.mxu0 0.0
  %1611 = vmatprep.mubr.f32.mxu0 0.0
  %1612 = vmatmul.mubr.f32.gmra.mrb[0].mxu0 %v1531
  %v1613 = vpop.f32.mrb[0].mxu0
  %v1614 = vadd.f32 %v1493, %v1613
  %v1615 = vpop.f32.mrb[0].mxu0
  %v1616 = vadd.f32 %v1493, %v1615
  %1617 = vmatprep.mubr.f32.mxu0 0.0
  %1618 = vmatmul.mubr.f32.gmra.mrb[0].mxu0 %v1533
  %v1619 = vpop.f32.mrb[0].mxu0
  %v1620 = vadd.f32 %v1498, %v1619
  %v1621 = vpop.f32.mrb[0].mxu0
  %v1622 = vadd.f32 %v1498, %v1621
  %1623 = vmatprep.mubr.f32.mxu0 0.0
  %1624 = vmatmul.mubr.f32.gmra.mrb[0].mxu0 %v1535
  %v1625 = vpop.f32.mrb[0].mxu0
  %v1626 = vadd.f32 %v1503, %v1625
  %v1627 = vpop.f32.mrb[0].mxu0
  %v1628 = vadd.f32 %v1503, %v1627
  %1629 = vmatprep.mubr.f32.mxu0 0.0
  %1630 = vmatmul.mubr.f32.gmra.mrb[0].mxu0 %v1537
  %v1631 = vpop.f32.mrb[0].mxu0
  %v1632 = vadd.f32 %v1508, %v1631
  %v1633 = vpop.f32.mrb[0].mxu0
  %v1634 = vadd.f32 %v1508, %v1633
  %1635 = vmatprep.mubr.f32.mxu0 0.0
  %1636 = vmatmul.mubr.f32.gmra.mrb[0].mxu0 %v1539
  %v1637 = vpop.f32.mrb[0].mxu0
  %v1638 = vadd.f32 %v1513, %v1637
  %v1639 = vpop.f32.mrb[0].mxu0
  %v1640 = vadd.f32 %v1513, %v1639
  %1641 = vmatprep.mubr.f32.mxu0 0.0
  %1642 = vmatmul.mubr.f32.gmra.mrb[0].mxu0 %v1541
  %v1643 = vpop.f32.mrb[0].mxu0
  %v1644 = vadd.f32 %v1518, %v1643
  %v1645 = vpop.f32.mrb[0].mxu0
  %v1646 = vadd.f32 %v1518, %v1645
  %1647 = vmatprep.mubr.f32.mxu0 0.0
  %1648 = vmatmul.mubr.f32.gmra.mrb[0].mxu0 %v1543
  %v1649 = vpop.f32.mrb[0].mxu0
  %v1650 = vadd.f32 %v1523, %v1649
  %v1651 = vpop.f32.mrb[0].mxu0
  %v1652 = vadd.f32 %v1523, %v1651
  %1653 = vmatprep.mubr.f32.mxu0 0.0
  %1654 = vmatmul.mubr.f32.gmra.mrb[0].mxu0 %v1545
  %v1655 = vpop.f32.mrb[0].mxu0
  %v1656 = vadd.f32 %v1528, %v1655
  %v1657 = vpop.f32.mrb[0].mxu0
  %v1658 = vadd.f32 %v1528, %v1657
  %1659 = vdwg.mxu0
  %v1660 = vmax.f32 %v1614, 0.0
  %v1661 = vmax.f32 %v1616, 0.0
  %v1662 = vmax.f32 %v1620, 0.0
  %v1663 = vmax.f32 %v1622, 0.0
  %v1664 = vmax.f32 %v1626, 0.0
  %v1665 = vmax.f32 %v1628, 0.0
  %v1666 = vmax.f32 %v1632, 0.0
  %v1667 = vmax.f32 %v1634, 0.0
  %v1668 = vmax.f32 %v1638, 0.0
  %v1669 = vmax.f32 %v1640, 0.0
  %v1670 = vmax.f32 %v1644, 0.0
  %v1671 = vmax.f32 %v1646, 0.0
  %v1672 = vmax.f32 %v1650, 0.0
  %v1673 = vmax.f32 %v1652, 0.0
  %v1674 = vmax.f32 %v1656, 0.0
  %v1675 = vmax.f32 %v1658, 0.0
  %v1676 = vld [vmem:[%s1 + $0xb8] sm:$0xf]
  %v1677 = vld [vmem:[%s1 + $0xc0] sm:$0xff]
  %v1678 = vld [vmem:[%s1 + $0xc8] sm:$0xff]
  %v1679 = vld [vmem:[%s1 + $0xd0] sm:$0xff]
  %v1680 = vld [vmem:[%s1 + $0xd8] sm:$0xff]
  %v1681 = vld [vmem:[%s1 + $0xe0] sm:$0xff]
  %v1682 = vld [vmem:[%s1 + $0xe8] sm:$0xff]
  %v1683 = vld [vmem:[%s1 + $0xf0] sm:$0xff]
  %v1684 = vld [vmem:[%s1 + $0xf8] sm:$0xff]
  %v1685 = vld [vmem:[%s1 + $0x180] sm:$0x1]
  %v1686 = vlaneseq
  %v1687 = vand.u32 %v1686, 127
  %v1688 = vadd.s32 %v1687, 128
  %v1689 = vand.u32 %v1687, 127
  %v1690 = vand.u32 %v1688, 127
  %1691 = vadd.xlane.f32.xlu0 %v1064
  %v1692 = vpop.xlane.xlu0 %1691
  %1693 = vadd.xlane.f32.xlu0 %v1066
  %v1694 = vpop.xlane.xlu0 %1693
  %1695 = vadd.xlane.f32.xlu0 %v1068
  %v1696 = vpop.xlane.xlu0 %1695
  %1697 = vadd.xlane.f32.xlu0 %v1478
  %v1698 = vpop.xlane.xlu0 %1697
  %1699 = vadd.xlane.f32.xlu0 %v1442
  %v1700 = vpop.xlane.xlu0 %1699
  %1701 = vadd.xlane.f32.xlu0 %v1480
  %v1702 = vpop.xlane.xlu0 %1701
  %1703 = vadd.xlane.f32.xlu0 %v1465
  %v1704 = vpop.xlane.xlu0 %1703
  %1705 = vadd.xlane.f32.xlu0 %v1469
  %v1706 = vpop.xlane.xlu0 %1705
  %v1707 = vrcp.pop 128.0
  %v1708 = vmul.f32 %v1692, %v1707
  %v1709 = vmul.f32 %v1694, %v1707
  %v1710 = vmul.f32 %v1696, %v1707
  %v1711 = vmul.f32 %v1698, %v1707
  %v1712 = vmul.f32 %v1700, %v1707
  %v1713 = vmul.f32 %v1702, %v1707
  %v1714 = vmul.f32 %v1704, %v1707
  %v1715 = vmul.f32 %v1706, %v1707
  %1716 = vmax.xlane.f32.xlu0 %v1064
  %v1717 = vpop.xlane.xlu0 %1716
  %1718 = vmax.xlane.f32.xlu0 %v1066
  %v1719 = vpop.xlane.xlu0 %1718
  %1720 = vmax.xlane.f32.xlu0 %v1068
  %v1721 = vpop.xlane.xlu0 %1720
  %1722 = vmax.xlane.f32.xlu0 %v1478
  %v1723 = vpop.xlane.xlu0 %1722
  %1724 = vmax.xlane.f32.xlu0 %v1442
  %v1725 = vpop.xlane.xlu0 %1724
  %1726 = vmax.xlane.f32.xlu0 %v1480
  %v1727 = vpop.xlane.xlu0 %1726
  %1728 = vmax.xlane.f32.xlu0 %v1465
  %v1729 = vpop.xlane.xlu0 %1728
  %1730 = vmax.xlane.f32.xlu0 %v1469
  %v1731 = vpop.xlane.xlu0 %1730
  %1732 = vadd.xlane.f32.xlu0 %v1065
  %v1733 = vpop.xlane.xlu0 %1732
  %1734 = vadd.xlane.f32.xlu0 %v1067
  %v1735 = vpop.xlane.xlu0 %1734
  %1736 = vadd.xlane.f32.xlu0 %v1069
  %v1737 = vpop.xlane.xlu0 %1736
  %1738 = vadd.xlane.f32.xlu0 %v1479
  %v1739 = vpop.xlane.xlu0 %1738
  %1740 = vadd.xlane.f32.xlu0 %v1444
  %v1741 = vpop.xlane.xlu0 %1740
  %1742 = vadd.xlane.f32.xlu0 %v1481
  %v1743 = vpop.xlane.xlu0 %1742
  %1744 = vadd.xlane.f32.xlu0 %v1467
  %v1745 = vpop.xlane.xlu0 %1744
  %1746 = vadd.xlane.f32.xlu0 %v1471
  %v1747 = vpop.xlane.xlu0 %1746
  %v1748 = vmul.f32 %v1733, %v1707
  %v1749 = vmul.f32 %v1735, %v1707
  %v1750 = vmul.f32 %v1737, %v1707
  %v1751 = vmul.f32 %v1739, %v1707
  %v1752 = vmul.f32 %v1741, %v1707
  %v1753 = vmul.f32 %v1743, %v1707
  %v1754 = vmul.f32 %v1745, %v1707
  %v1755 = vmul.f32 %v1747, %v1707
  %1756 = vmax.xlane.f32.xlu0 %v1065
  %v1757 = vpop.xlane.xlu0 %1756
  %1758 = vmax.xlane.f32.xlu0 %v1067
  %v1759 = vpop.xlane.xlu0 %1758
  %1760 = vmax.xlane.f32.xlu0 %v1069
  %v1761 = vpop.xlane.xlu0 %1760
  %1762 = vmax.xlane.f32.xlu0 %v1479
  %v1763 = vpop.xlane.xlu0 %1762
  %1764 = vmax.xlane.f32.xlu0 %v1444
  %v1765 = vpop.xlane.xlu0 %1764
  %1766 = vmax.xlane.f32.xlu0 %v1481
  %v1767 = vpop.xlane.xlu0 %1766
  %1768 = vmax.xlane.f32.xlu0 %v1467
  %v1769 = vpop.xlane.xlu0 %1768
  %1770 = vmax.xlane.f32.xlu0 %v1471
  %v1771 = vpop.xlane.xlu0 %1770
  %vm1772 = vcmask 7168
  %v1773 = vsel %vm1772, %v1708, %v1717
  %v1774 = vsel %vm1772, %v1709, %v1719
  %v1775 = vsel %vm1772, %v1710, %v1721
  %v1776 = vsel %vm1772, %v1711, %v1723
  %v1777 = vsel %vm1772, %v1712, %v1725
  %v1778 = vsel %vm1772, %v1713, %v1727
  %v1779 = vsel %vm1772, %v1714, %v1729
  %v1780 = vsel %vm1772, %v1715, %v1731
  %vm1781 = vcmask 15360
  %v1782 = vsel %vm1781, %v1773, %v1748
  %v1783 = vsel %vm1781, %v1774, %v1749
  %v1784 = vsel %vm1781, %v1775, %v1750
  %v1785 = vsel %vm1781, %v1776, %v1751
  %v1786 = vsel %vm1781, %v1777, %v1752
  %v1787 = vsel %vm1781, %v1778, %v1753
  %v1788 = vsel %vm1781, %v1779, %v1754
  %v1789 = vsel %vm1781, %v1780, %v1755
  %vm1790 = vcmask 23552
  %v1791 = vsel %vm1790, %v1782, %v1757
  %v1792 = vsel %vm1790, %v1783, %v1759
  %v1793 = vsel %vm1790, %v1784, %v1761
  %v1794 = vsel %vm1790, %v1785, %v1763
  %v1795 = vsel %vm1790, %v1786, %v1765
  %v1796 = vsel %vm1790, %v1787, %v1767
  %v1797 = vsel %vm1790, %v1788, %v1769
  %v1798 = vsel %vm1790, %v1789, %v1771
  %1800 = vset.pattern.permute.xlu0 64
  %1801 = vperm.xlu0 %1800, %v1676
  %v1802 = vpop.permute.xlu0 %1801
  %vm1804 = vcmask 523264
  %v1805 = vsel %vm1804, %v1676, 0
  %1807 = vmatprep.subr.mxu0 0.0
  %1808 = vmatpush1.msra.mxu0 %v1791
  %1809 = vmatprep.subr.mxu0 0.0
  %1810 = vmatpush1.msra.mxu0 %v1792
  %1811 = vmatprep.subr.mxu0 0.0
  %1812 = vmatpush1.msra.mxu0 %v1793
  %1813 = vmatprep.subr.mxu0 0.0
  %1814 = vmatpush1.msra.mxu0 %v1794
  %1815 = vmatprep.subr.mxu0 0.0
  %1816 = vmatpush1.msra.mxu0 %v1795
  %1817 = vmatprep.subr.mxu0 0.0
  %1818 = vmatpush1.msra.mxu0 %v1796
  %1819 = vmatprep.subr.mxu0 0.0
  %1820 = vmatpush1.msra.mxu0 %v1797
  %1821 = vmatprep.subr.mxu0 0.0
  %1822 = vmatpush1.msra.mxu0 %v1798
  %1823 = vmatprep.subr.mxu0 0.0
  %1824 = vmatpush1.msra.mxu0 0.0
  %1825 = vmatprep.subr.mxu0 0.0
  %1826 = vmatpush1.msra.mxu0 0.0
  %1827 = vmatprep.subr.mxu0 0.0
  %1828 = vmatpush1.msra.mxu0 0.0
  %1829 = vmatprep.subr.mxu0 0.0
  %1830 = vmatpush1.msra.mxu0 0.0
  %1831 = vmatprep.subr.mxu0 0.0
  %1832 = vmatpush1.msra.mxu0 0.0
  %1833 = vmatprep.subr.mxu0 0.0
  %1834 = vmatpush1.msra.mxu0 0.0
  %1835 = vmatprep.subr.mxu0 0.0
  %1836 = vmatpush1.msra.mxu0 0.0
  %1837 = vmatprep.subr.mxu0 0.0
  %1838 = vmatpush1.msra.mxu0 0.0
  %1839 = vmatprep.subr.mxu0 0.0
  %1840 = vmatpush1.msra.mxu0 0.0
  %1841 = vmatprep.subr.mxu0 0.0
  %1842 = vmatpush1.msra.mxu0 0.0
  %1843 = vmatprep.subr.mxu0 0.0
  %1844 = vmatpush1.msra.mxu0 0.0
  %1845 = vmatprep.subr.mxu0 0.0
  %1846 = vmatpush1.msra.mxu0 0.0
  %1847 = vmatprep.subr.mxu0 0.0
  %1848 = vmatpush1.msra.mxu0 0.0
  %1849 = vmatprep.subr.mxu0 0.0
  %1850 = vmatpush1.msra.mxu0 0.0
  %1851 = vmatprep.subr.mxu0 0.0
  %1852 = vmatpush1.msra.mxu0 0.0
  %1853 = vmatprep.subr.mxu0 0.0
  %1854 = vmatpush1.msra.mxu0 0.0
  %1855 = vmatprep.subr.mxu0 0.0
  %1856 = vmatpush1.msra.mxu0 0.0
  %1857 = vmatprep.subr.mxu0 0.0
  %1858 = vmatpush1.msra.mxu0 0.0
  %1859 = vmatprep.subr.mxu0 0.0
  %1860 = vmatpush1.msra.mxu0 0.0
  %1861 = vmatprep.subr.mxu0 0.0
  %1862 = vmatpush1.msra.mxu0 0.0
  %1863 = vmatprep.subr.mxu0 0.0
  %1864 = vmatpush1.msra.mxu0 0.0
  %1865 = vmatprep.subr.mxu0 0.0
  %1866 = vmatpush1.msra.mxu0 0.0
  %1867 = vmatprep.subr.mxu0 0.0
  %1868 = vmatpush1.msra.mxu0 0.0
  %1869 = vmatprep.subr.mxu0 0.0
  %1870 = vmatpush1.msra.mxu0 0.0
  %1871 = vmatprep.mubr.f32.mxu0 0.0
  %1872 = vmatmul.mubr.f32.gmra.mrb[0].mxu0 %v1805
  %v1873 = vpop.f32.mrb[0].mxu0
  %v1874 = vadd.f32 %v1802, %v1873
  %v1875 = vpop.f32.mrb[0].mxu0
  %1876 = vdwg.mxu0
  %v1877 = vmax.f32 %v1874, 0.0
  %1879 = vset.pattern.permute.xlu0 4
  %1880 = vperm.xlu0 %1879, %v1677
  %v1881 = vpop.permute.xlu0 %1880
  %1884 = vset.pattern.permute.xlu0 4
  %1885 = vperm.xlu0 %1884, %v1678
  %v1886 = vpop.permute.xlu0 %1885
  %1889 = vset.pattern.permute.xlu0 4
  %1890 = vperm.xlu0 %1889, %v1679
  %v1891 = vpop.permute.xlu0 %1890
  %1894 = vset.pattern.permute.xlu0 4
  %1895 = vperm.xlu0 %1894, %v1680
  %v1896 = vpop.permute.xlu0 %1895
  %1899 = vset.pattern.permute.xlu0 4
  %1900 = vperm.xlu0 %1899, %v1681
  %v1901 = vpop.permute.xlu0 %1900
  %1904 = vset.pattern.permute.xlu0 4
  %1905 = vperm.xlu0 %1904, %v1682
  %v1906 = vpop.permute.xlu0 %1905
  %1909 = vset.pattern.permute.xlu0 4
  %1910 = vperm.xlu0 %1909, %v1683
  %v1911 = vpop.permute.xlu0 %1910
  %1914 = vset.pattern.permute.xlu0 4
  %1915 = vperm.xlu0 %1914, %v1684
  %v1916 = vpop.permute.xlu0 %1915
  %vm1918 = vcmask 31744
  %v1919 = vsel %vm1918, %v1677, 0
  %v1921 = vsel %vm1918, %v1678, 0
  %v1923 = vsel %vm1918, %v1679, 0
  %v1925 = vsel %vm1918, %v1680, 0
  %v1927 = vsel %vm1918, %v1681, 0
  %v1929 = vsel %vm1918, %v1682, 0
  %v1931 = vsel %vm1918, %v1683, 0
  %v1933 = vsel %vm1918, %v1684, 0
  %v1936 = vsel %vm1438, %v1877, 0
  %1938 = vmatprep.subr.mxu0 0.0
  %1939 = vmatpush1.msra.mxu0 %v1936
  %1940 = vmatprep.subr.mxu0 0.0
  %1941 = vmatpush1.msra.mxu0 0.0
  %1942 = vmatprep.subr.mxu0 0.0
  %1943 = vmatpush1.msra.mxu0 0.0
  %1944 = vmatprep.subr.mxu0 0.0
  %1945 = vmatpush1.msra.mxu0 0.0
  %1946 = vmatprep.subr.mxu0 0.0
  %1947 = vmatpush1.msra.mxu0 0.0
  %1948 = vmatprep.subr.mxu0 0.0
  %1949 = vmatpush1.msra.mxu0 0.0
  %1950 = vmatprep.subr.mxu0 0.0
  %1951 = vmatpush1.msra.mxu0 0.0
  %1952 = vmatprep.subr.mxu0 0.0
  %1953 = vmatpush1.msra.mxu0 0.0
  %1954 = vmatprep.subr.mxu0 0.0
  %1955 = vmatpush1.msra.mxu0 0.0
  %1956 = vmatprep.subr.mxu0 0.0
  %1957 = vmatpush1.msra.mxu0 0.0
  %1958 = vmatprep.subr.mxu0 0.0
  %1959 = vmatpush1.msra.mxu0 0.0
  %1960 = vmatprep.subr.mxu0 0.0
  %1961 = vmatpush1.msra.mxu0 0.0
  %1962 = vmatprep.subr.mxu0 0.0
  %1963 = vmatpush1.msra.mxu0 0.0
  %1964 = vmatprep.subr.mxu0 0.0
  %1965 = vmatpush1.msra.mxu0 0.0
  %1966 = vmatprep.subr.mxu0 0.0
  %1967 = vmatpush1.msra.mxu0 0.0
  %1968 = vmatprep.subr.mxu0 0.0
  %1969 = vmatpush1.msra.mxu0 0.0
  %1970 = vmatprep.subr.mxu0 0.0
  %1971 = vmatpush1.msra.mxu0 0.0
  %1972 = vmatprep.subr.mxu0 0.0
  %1973 = vmatpush1.msra.mxu0 0.0
  %1974 = vmatprep.subr.mxu0 0.0
  %1975 = vmatpush1.msra.mxu0 0.0
  %1976 = vmatprep.subr.mxu0 0.0
  %1977 = vmatpush1.msra.mxu0 0.0
  %1978 = vmatprep.subr.mxu0 0.0
  %1979 = vmatpush1.msra.mxu0 0.0
  %1980 = vmatprep.subr.mxu0 0.0
  %1981 = vmatpush1.msra.mxu0 0.0
  %1982 = vmatprep.subr.mxu0 0.0
  %1983 = vmatpush1.msra.mxu0 0.0
  %1984 = vmatprep.subr.mxu0 0.0
  %1985 = vmatpush1.msra.mxu0 0.0
  %1986 = vmatprep.subr.mxu0 0.0
  %1987 = vmatpush1.msra.mxu0 0.0
  %1988 = vmatprep.subr.mxu0 0.0
  %1989 = vmatpush1.msra.mxu0 0.0
  %1990 = vmatprep.subr.mxu0 0.0
  %1991 = vmatpush1.msra.mxu0 0.0
  %1992 = vmatprep.subr.mxu0 0.0
  %1993 = vmatpush1.msra.mxu0 0.0
  %1994 = vmatprep.subr.mxu0 0.0
  %1995 = vmatpush1.msra.mxu0 0.0
  %1996 = vmatprep.subr.mxu0 0.0
  %1997 = vmatpush1.msra.mxu0 0.0
  %1998 = vmatprep.subr.mxu0 0.0
  %1999 = vmatpush1.msra.mxu0 0.0
  %2000 = vmatprep.subr.mxu0 0.0
  %2001 = vmatpush1.msra.mxu0 0.0
  %2002 = vmatprep.mubr.f32.mxu0 0.0
  %2003 = vmatmul.mubr.f32.gmra.mrb[0].mxu0 %v1919
  %v2004 = vpop.f32.mrb[0].mxu0
  %v2005 = vadd.f32 %v1881, %v2004
  %v2006 = vpop.f32.mrb[0].mxu0
  %2007 = vmatprep.mubr.f32.mxu0 0.0
  %2008 = vmatmul.mubr.f32.gmra.mrb[0].mxu0 %v1921
  %v2009 = vpop.f32.mrb[0].mxu0
  %v2010 = vadd.f32 %v1886, %v2009
  %v2011 = vpop.f32.mrb[0].mxu0
  %2012 = vmatprep.mubr.f32.mxu0 0.0
  %2013 = vmatmul.mubr.f32.gmra.mrb[0].mxu0 %v1923
  %v2014 = vpop.f32.mrb[0].mxu0
  %v2015 = vadd.f32 %v1891, %v2014
  %v2016 = vpop.f32.mrb[0].mxu0
  %2017 = vmatprep.mubr.f32.mxu0 0.0
  %2018 = vmatmul.mubr.f32.gmra.mrb[0].mxu0 %v1925
  %v2019 = vpop.f32.mrb[0].mxu0
  %v2020 = vadd.f32 %v1896, %v2019
  %v2021 = vpop.f32.mrb[0].mxu0
  %2022 = vmatprep.mubr.f32.mxu0 0.0
  %2023 = vmatmul.mubr.f32.gmra.mrb[0].mxu0 %v1927
  %v2024 = vpop.f32.mrb[0].mxu0
  %v2025 = vadd.f32 %v1901, %v2024
  %v2026 = vpop.f32.mrb[0].mxu0
  %2027 = vmatprep.mubr.f32.mxu0 0.0
  %2028 = vmatmul.mubr.f32.gmra.mrb[0].mxu0 %v1929
  %v2029 = vpop.f32.mrb[0].mxu0
  %v2030 = vadd.f32 %v1906, %v2029
  %v2031 = vpop.f32.mrb[0].mxu0
  %2032 = vmatprep.mubr.f32.mxu0 0.0
  %2033 = vmatmul.mubr.f32.gmra.mrb[0].mxu0 %v1931
  %v2034 = vpop.f32.mrb[0].mxu0
  %v2035 = vadd.f32 %v1911, %v2034
  %v2036 = vpop.f32.mrb[0].mxu0
  %2037 = vmatprep.mubr.f32.mxu0 0.0
  %2038 = vmatmul.mubr.f32.gmra.mrb[0].mxu0 %v1933
  %v2039 = vpop.f32.mrb[0].mxu0
  %v2040 = vadd.f32 %v1916, %v2039
  %v2041 = vpop.f32.mrb[0].mxu0
  %2042 = vdwg.mxu0
  %2051 = vrot.lane.b32.xlu0 %v2005, 127
  %v2052 = vpop.permute.xlu0 %2051
  %2053 = vrot.lane.b32.xlu0 %v2010, 127
  %v2054 = vpop.permute.xlu0 %2053
  %2055 = vrot.lane.b32.xlu0 %v2015, 127
  %v2056 = vpop.permute.xlu0 %2055
  %2057 = vrot.lane.b32.xlu0 %v2020, 127
  %v2058 = vpop.permute.xlu0 %2057
  %2059 = vrot.lane.b32.xlu0 %v2025, 127
  %v2060 = vpop.permute.xlu0 %2059
  %2061 = vrot.lane.b32.xlu0 %v2030, 127
  %v2062 = vpop.permute.xlu0 %2061
  %2063 = vrot.lane.b32.xlu0 %v2035, 127
  %v2064 = vpop.permute.xlu0 %2063
  %2065 = vrot.lane.b32.xlu0 %v2040, 127
  %v2066 = vpop.permute.xlu0 %2065
  %v2075 = vadd.f32 %v2005, %v2052
  %v2076 = vadd.f32 %v2010, %v2054
  %v2077 = vadd.f32 %v2015, %v2056
  %v2078 = vadd.f32 %v2020, %v2058
  %v2079 = vadd.f32 %v2025, %v2060
  %v2080 = vadd.f32 %v2030, %v2062
  %v2081 = vadd.f32 %v2035, %v2064
  %v2082 = vadd.f32 %v2040, %v2066
  %v2083 = vxor.u32 %v2075, 2147483648
  %v2084 = vxor.u32 %v2076, 2147483648
  %v2085 = vxor.u32 %v2077, 2147483648
  %v2086 = vxor.u32 %v2078, 2147483648
  %v2087 = vxor.u32 %v2079, 2147483648
  %v2088 = vxor.u32 %v2080, 2147483648
  %v2089 = vxor.u32 %v2081, 2147483648
  %v2090 = vxor.u32 %v2082, 2147483648
  %v2091 = vmul.f32 %v2083, 1.442695
  %v2092 = vpow.pop %v2091
  %v2093 = vmul.f32 %v2084, 1.442695
  %v2094 = vpow.pop %v2093
  %v2095 = vmul.f32 %v2085, 1.442695
  %v2096 = vpow.pop %v2095
  %v2097 = vmul.f32 %v2086, 1.442695
  %v2098 = vpow.pop %v2097
  %v2099 = vmul.f32 %v2087, 1.442695
  %v2100 = vpow.pop %v2099
  %v2101 = vmul.f32 %v2088, 1.442695
  %v2102 = vpow.pop %v2101
  %v2103 = vmul.f32 %v2089, 1.442695
  %v2104 = vpow.pop %v2103
  %v2105 = vmul.f32 %v2090, 1.442695
  %v2106 = vpow.pop %v2105
  %v2107 = vadd.f32 %v2092, 1.0
  %v2108 = vadd.f32 %v2094, 1.0
  %v2109 = vadd.f32 %v2096, 1.0
  %v2110 = vadd.f32 %v2098, 1.0
  %v2111 = vadd.f32 %v2100, 1.0
  %v2112 = vadd.f32 %v2102, 1.0
  %v2113 = vadd.f32 %v2104, 1.0
  %v2114 = vadd.f32 %v2106, 1.0
  %v2115 = vrcp.pop %v2107
  %v2116 = vmul.f32 1.0, %v2115
  %v2117 = vrcp.pop %v2108
  %v2118 = vmul.f32 1.0, %v2117
  %v2119 = vrcp.pop %v2109
  %v2120 = vmul.f32 1.0, %v2119
  %v2121 = vrcp.pop %v2110
  %v2122 = vmul.f32 1.0, %v2121
  %v2123 = vrcp.pop %v2111
  %v2124 = vmul.f32 1.0, %v2123
  %v2125 = vrcp.pop %v2112
  %v2126 = vmul.f32 1.0, %v2125
  %v2127 = vrcp.pop %v2113
  %v2128 = vmul.f32 1.0, %v2127
  %v2129 = vrcp.pop %v2114
  %v2130 = vmul.f32 1.0, %v2129
  %2132 = vset.pattern.permute.xlu0 0
  %2133 = vperm.xlu0 %2132, %v2116
  %v2134 = vpop.permute.xlu0 %2133
  %2137 = vset.pattern.permute.xlu0 0
  %2138 = vperm.xlu0 %2137, %v2118
  %v2139 = vpop.permute.xlu0 %2138
  %2142 = vset.pattern.permute.xlu0 0
  %2143 = vperm.xlu0 %2142, %v2120
  %v2144 = vpop.permute.xlu0 %2143
  %2147 = vset.pattern.permute.xlu0 0
  %2148 = vperm.xlu0 %2147, %v2122
  %v2149 = vpop.permute.xlu0 %2148
  %2152 = vset.pattern.permute.xlu0 0
  %2153 = vperm.xlu0 %2152, %v2124
  %v2154 = vpop.permute.xlu0 %2153
  %2157 = vset.pattern.permute.xlu0 0
  %2158 = vperm.xlu0 %2157, %v2126
  %v2159 = vpop.permute.xlu0 %2158
  %2162 = vset.pattern.permute.xlu0 0
  %2163 = vperm.xlu0 %2162, %v2128
  %v2164 = vpop.permute.xlu0 %2163
  %2167 = vset.pattern.permute.xlu0 0
  %2168 = vperm.xlu0 %2167, %v2130
  %v2169 = vpop.permute.xlu0 %2168
  %2171 = vset.pattern.permute.xlu0 2
  %2172 = vperm.xlu0 %2171, %v2116
  %v2173 = vpop.permute.xlu0 %2172
  %2175 = vset.pattern.permute.xlu0 2
  %2176 = vperm.xlu0 %2175, %v2118
  %v2177 = vpop.permute.xlu0 %2176
  %2179 = vset.pattern.permute.xlu0 2
  %2180 = vperm.xlu0 %2179, %v2120
  %v2181 = vpop.permute.xlu0 %2180
  %2183 = vset.pattern.permute.xlu0 2
  %2184 = vperm.xlu0 %2183, %v2122
  %v2185 = vpop.permute.xlu0 %2184
  %2187 = vset.pattern.permute.xlu0 2
  %2188 = vperm.xlu0 %2187, %v2124
  %v2189 = vpop.permute.xlu0 %2188
  %2191 = vset.pattern.permute.xlu0 2
  %2192 = vperm.xlu0 %2191, %v2126
  %v2193 = vpop.permute.xlu0 %2192
  %2195 = vset.pattern.permute.xlu0 2
  %2196 = vperm.xlu0 %2195, %v2128
  %v2197 = vpop.permute.xlu0 %2196
  %2199 = vset.pattern.permute.xlu0 2
  %2200 = vperm.xlu0 %2199, %v2130
  %v2201 = vpop.permute.xlu0 %2200
  %v2203 = vmul.f32 %v1064, %v2134
  %v2204 = vmul.f32 %v1065, %v2173
  %v2205 = vmul.f32 %v1066, %v2139
  %v2206 = vmul.f32 %v1067, %v2177
  %v2207 = vmul.f32 %v1068, %v2144
  %v2208 = vmul.f32 %v1069, %v2181
  %v2209 = vmul.f32 %v1478, %v2149
  %v2210 = vmul.f32 %v1479, %v2185
  %v2211 = vmul.f32 %v1442, %v2154
  %v2212 = vmul.f32 %v1444, %v2189
  %v2213 = vmul.f32 %v1480, %v2159
  %v2214 = vmul.f32 %v1481, %v2193
  %v2215 = vmul.f32 %v1465, %v2164
  %v2216 = vmul.f32 %v1467, %v2197
  %v2217 = vmul.f32 %v1469, %v2169
  %v2218 = vmul.f32 %v1471, %v2201
  %v2219 = vadd.f32 %v2203, %v2205
  %v2220 = vadd.f32 %v2219, %v2207
  %v2221 = vadd.f32 %v2220, %v2209
  %v2222 = vadd.f32 %v2221, %v2211
  %v2223 = vadd.f32 %v2222, %v2213
  %v2224 = vadd.f32 %v2223, %v2215
  %v2225 = vadd.f32 %v2224, %v2217
  %v2226 = vrot.slane %v2225, 4
  %v2227 = vadd.f32 %v2225, %v2226
  %v2228 = vrot.slane %v2227, 2
  %v2229 = vadd.f32 %v2227, %v2228
  %v2230 = vrot.slane %v2229, 1
  %v2231 = vadd.f32 %v2229, %v2230
  %v2232 = vadd.f32 %v2204, %v2206
  %v2233 = vadd.f32 %v2232, %v2208
  %v2234 = vadd.f32 %v2233, %v2210
  %v2235 = vadd.f32 %v2234, %v2212
  %v2236 = vadd.f32 %v2235, %v2214
  %v2237 = vadd.f32 %v2236, %v2216
  %v2238 = vadd.f32 %v2237, %v2218
  %v2239 = vrot.slane %v2238, 4
  %v2240 = vadd.f32 %v2238, %v2239
  %v2241 = vrot.slane %v2240, 2
  %v2242 = vadd.f32 %v2240, %v2241
  %v2243 = vrot.slane %v2242, 1
  %v2244 = vadd.f32 %v2242, %v2243
  %v2245 = vrcp.pop 64.0
  %v2246 = vmul.f32 %v2231, %v2245
  %v2247 = vmul.f32 %v2244, %v2245
  %v2248 = vmax.f32 %v2203, %v2207
  %v2249 = vmax.f32 %v2205, %v2209
  %v2250 = vmax.f32 %v2248, %v2211
  %v2251 = vmax.f32 %v2249, %v2213
  %v2252 = vmax.f32 %v2250, %v2215
  %v2253 = vmax.f32 %v2251, %v2217
  %v2254 = vmax.f32 %v2252, %v2253
  %v2255 = vrot.slane %v2254, 4
  %v2256 = vmax.f32 %v2254, %v2255
  %v2257 = vrot.slane %v2256, 2
  %v2258 = vmax.f32 %v2256, %v2257
  %v2259 = vrot.slane %v2258, 1
  %v2260 = vmax.f32 %v2258, %v2259
  %v2261 = vmax.f32 %v2204, %v2208
  %v2262 = vmax.f32 %v2206, %v2210
  %v2263 = vmax.f32 %v2261, %v2212
  %v2264 = vmax.f32 %v2262, %v2214
  %v2265 = vmax.f32 %v2263, %v2216
  %v2266 = vmax.f32 %v2264, %v2218
  %v2267 = vmax.f32 %v2265, %v2266
  %v2268 = vrot.slane %v2267, 4
  %v2269 = vmax.f32 %v2267, %v2268
  %v2270 = vrot.slane %v2269, 2
  %v2271 = vmax.f32 %v2269, %v2270
  %v2272 = vrot.slane %v2271, 1
  %v2273 = vmax.f32 %v2271, %v2272
  %2275 = vset.pattern.permute.xlu0 14
  %2276 = vperm.xlu0 %2275, %v1685
  %v2277 = vpop.permute.xlu0 %2276
  %v2279 = vadd.f32 %v2277, 0.0
  %2280 = vrot.lane.b32.xlu0 %v2246, 3
  %v2281 = vpop.permute.xlu0 %2280
  %2282 = vrot.lane.b32.xlu0 %v2247, 3
  %v2283 = vpop.permute.xlu0 %2282
  %vm2284 = vcmp.lt.s32.totalorder %v1687, 3
  %v2285 = vsel %vm2284, %v2281, %v2283
  %v2286 = vsel %vm2284, %v2283, %v2281
  %2287 = vrot.lane.b32.xlu0 %v2260, 3
  %v2288 = vpop.permute.xlu0 %2287
  %2289 = vrot.lane.b32.xlu0 %v2273, 3
  %v2290 = vpop.permute.xlu0 %2289
  %v2291 = vsel %vm2284, %v2288, %v2290
  %v2292 = vsel %vm2284, %v2290, %v2288
  %v2293 = vadd.s32 %v1689, 4294967293
  %v2294 = vadd.s32 %v1690, 4294967293
  %vm2295 = vcmp.ge.s32.totalorder %v2293, 0
  %vm2296 = vcmp.ge.s32.totalorder %v2294, 0
  %vm2297 = vcmp.lt.s32.totalorder %v2293, 128
  %vm2298 = vcmp.lt.s32.totalorder %v2294, 128
  %vm2299 = vmand %vm2295, %vm2297
  %vm2300 = vmand %vm2296, %vm2298
  %2301 = vset.pattern.permute.xlu0 0
  %2302 = vperm.xlu0 %2301, %v1685
  %v2303 = vpop.permute.xlu0 %2302
  %v2305 = vmul.f32 %v2303, %v2286
  %v2306 = vmul.f32 %v2303, %v2285
  %2307 = vset.pattern.permute.xlu0 7
  %2308 = vperm.xlu0 %2307, %v1685
  %v2309 = vpop.permute.xlu0 %2308
  %v2311 = vmul.f32 %v2309, %v2292
  %v2312 = vmul.f32 %v2309, %v2291
  %v2313 = vadd.f32 %v2305, %v2311
  %v2314 = vadd.f32 %v2306, %v2312
  %v2315 = vsel %vm2299, %v2313, 0.0
  %v2316 = vsel %vm2300, %v2314, 0.0
  %v2317 = vadd.f32 %v2279, %v2315
  %v2318 = vadd.f32 %v2279, %v2316
  %2319 = vrot.lane.b32.xlu0 %v2246, 2
  %v2320 = vpop.permute.xlu0 %2319
  %2321 = vrot.lane.b32.xlu0 %v2247, 2
  %v2322 = vpop.permute.xlu0 %2321
  %vm2323 = vcmp.lt.s32.totalorder %v1687, 2
  %v2324 = vsel %vm2323, %v2320, %v2322
  %v2325 = vsel %vm2323, %v2322, %v2320
  %2326 = vrot.lane.b32.xlu0 %v2260, 2
  %v2327 = vpop.permute.xlu0 %2326
  %2328 = vrot.lane.b32.xlu0 %v2273, 2
  %v2329 = vpop.permute.xlu0 %2328
  %v2330 = vsel %vm2323, %v2327, %v2329
  %v2331 = vsel %vm2323, %v2329, %v2327
  %v2332 = vadd.s32 %v1689, 4294967294
  %v2333 = vadd.s32 %v1690, 4294967294
  %vm2334 = vcmp.ge.s32.totalorder %v2332, 0
  %vm2335 = vcmp.ge.s32.totalorder %v2333, 0
  %vm2336 = vcmp.lt.s32.totalorder %v2332, 128
  %vm2337 = vcmp.lt.s32.totalorder %v2333, 128
  %vm2338 = vmand %vm2334, %vm2336
  %vm2339 = vmand %vm2335, %vm2337
  %2340 = vset.pattern.permute.xlu0 1
  %2341 = vperm.xlu0 %2340, %v1685
  %v2342 = vpop.permute.xlu0 %2341
  %v2344 = vmul.f32 %v2342, %v2325
  %v2345 = vmul.f32 %v2342, %v2324
  %2346 = vset.pattern.permute.xlu0 8
  %2347 = vperm.xlu0 %2346, %v1685
  %v2348 = vpop.permute.xlu0 %2347
  %v2350 = vmul.f32 %v2348, %v2331
  %v2351 = vmul.f32 %v2348, %v2330
  %v2352 = vadd.f32 %v2344, %v2350
  %v2353 = vadd.f32 %v2345, %v2351
  %v2354 = vsel %vm2338, %v2352, 0.0
  %v2355 = vsel %vm2339, %v2353, 0.0
  %v2356 = vadd.f32 %v2317, %v2354
  %v2357 = vadd.f32 %v2318, %v2355
  %2358 = vrot.lane.b32.xlu0 %v2246, 1
  %v2359 = vpop.permute.xlu0 %2358
  %2360 = vrot.lane.b32.xlu0 %v2247, 1
  %v2361 = vpop.permute.xlu0 %2360
  %vm2362 = vcmp.lt.s32.totalorder %v1687, 1
  %v2363 = vsel %vm2362, %v2359, %v2361
  %v2364 = vsel %vm2362, %v2361, %v2359
  %2365 = vrot.lane.b32.xlu0 %v2260, 1
  %v2366 = vpop.permute.xlu0 %2365
  %2367 = vrot.lane.b32.xlu0 %v2273, 1
  %v2368 = vpop.permute.xlu0 %2367
  %v2369 = vsel %vm2362, %v2366, %v2368
  %v2370 = vsel %vm2362, %v2368, %v2366
  %v2371 = vadd.s32 %v1689, 4294967295
  %v2372 = vadd.s32 %v1690, 4294967295
  %vm2373 = vcmp.ge.s32.totalorder %v2371, 0
  %vm2374 = vcmp.ge.s32.totalorder %v2372, 0
  %vm2375 = vcmp.lt.s32.totalorder %v2371, 128
  %vm2376 = vcmp.lt.s32.totalorder %v2372, 128
  %vm2377 = vmand %vm2373, %vm2375
  %vm2378 = vmand %vm2374, %vm2376
  %2379 = vset.pattern.permute.xlu0 2
  %2380 = vperm.xlu0 %2379, %v1685
  %v2381 = vpop.permute.xlu0 %2380
  %v2383 = vmul.f32 %v2381, %v2364
  %v2384 = vmul.f32 %v2381, %v2363
  %2385 = vset.pattern.permute.xlu0 9
  %2386 = vperm.xlu0 %2385, %v1685
  %v2387 = vpop.permute.xlu0 %2386
  %v2389 = vmul.f32 %v2387, %v2370
  %v2390 = vmul.f32 %v2387, %v2369
  %v2391 = vadd.f32 %v2383, %v2389
  %v2392 = vadd.f32 %v2384, %v2390
  %v2393 = vsel %vm2377, %v2391, 0.0
  %v2394 = vsel %vm2378, %v2392, 0.0
  %v2395 = vadd.f32 %v2356, %v2393
  %v2396 = vadd.f32 %v2357, %v2394
  %2397 = vset.pattern.permute.xlu0 3
  %2398 = vperm.xlu0 %2397, %v1685
  %v2399 = vpop.permute.xlu0 %2398
  %v2401 = vmul.f32 %v2399, %v2246
  %v2402 = vmul.f32 %v2399, %v2247
  %v2403 = vadd.f32 %v2395, %v2401
  %v2404 = vadd.f32 %v2396, %v2402
  %2405 = vset.pattern.permute.xlu0 10
  %2406 = vperm.xlu0 %2405, %v1685
  %v2407 = vpop.permute.xlu0 %2406
  %v2409 = vmul.f32 %v2407, %v2260
  %v2410 = vmul.f32 %v2407, %v2273
  %v2411 = vadd.f32 %v2403, %v2409
  %v2412 = vadd.f32 %v2404, %v2410
  %2413 = vrot.lane.b32.xlu0 %v2246, 127
  %v2414 = vpop.permute.xlu0 %2413
  %2415 = vrot.lane.b32.xlu0 %v2247, 127
  %v2416 = vpop.permute.xlu0 %2415
  %vm2417 = vcmp.lt.s32.totalorder %v1687, 127
  %v2418 = vsel %vm2417, %v2414, %v2416
  %v2419 = vsel %vm2417, %v2416, %v2414
  %2420 = vrot.lane.b32.xlu0 %v2260, 127
  %v2421 = vpop.permute.xlu0 %2420
  %2422 = vrot.lane.b32.xlu0 %v2273, 127
  %v2423 = vpop.permute.xlu0 %2422
  %v2424 = vsel %vm2417, %v2421, %v2423
  %v2425 = vsel %vm2417, %v2423, %v2421
  %v2426 = vadd.s32 %v1689, 1
  %v2427 = vadd.s32 %v1690, 1
  %vm2428 = vcmp.ge.s32.totalorder %v2426, 0
  %vm2429 = vcmp.ge.s32.totalorder %v2427, 0
  %vm2430 = vcmp.lt.s32.totalorder %v2426, 128
  %vm2431 = vcmp.lt.s32.totalorder %v2427, 128
  %vm2432 = vmand %vm2428, %vm2430
  %vm2433 = vmand %vm2429, %vm2431
  %2434 = vset.pattern.permute.xlu0 4
  %2435 = vperm.xlu0 %2434, %v1685
  %v2436 = vpop.permute.xlu0 %2435
  %v2438 = vmul.f32 %v2436, %v2418
  %v2439 = vmul.f32 %v2436, %v2419
  %2440 = vset.pattern.permute.xlu0 11
  %2441 = vperm.xlu0 %2440, %v1685
  %v2442 = vpop.permute.xlu0 %2441
  %v2444 = vmul.f32 %v2442, %v2424
  %v2445 = vmul.f32 %v2442, %v2425
  %v2446 = vadd.f32 %v2438, %v2444
  %v2447 = vadd.f32 %v2439, %v2445
  %v2448 = vsel %vm2432, %v2446, 0.0
  %v2449 = vsel %vm2433, %v2447, 0.0
  %v2450 = vadd.f32 %v2411, %v2448
  %v2451 = vadd.f32 %v2412, %v2449
  %2452 = vrot.lane.b32.xlu0 %v2246, 126
  %v2453 = vpop.permute.xlu0 %2452
  %2454 = vrot.lane.b32.xlu0 %v2247, 126
  %v2455 = vpop.permute.xlu0 %2454
  %vm2456 = vcmp.lt.s32.totalorder %v1687, 126
  %v2457 = vsel %vm2456, %v2453, %v2455
  %v2458 = vsel %vm2456, %v2455, %v2453
  %2459 = vrot.lane.b32.xlu0 %v2260, 126
  %v2460 = vpop.permute.xlu0 %2459
  %2461 = vrot.lane.b32.xlu0 %v2273, 126
  %v2462 = vpop.permute.xlu0 %2461
  %v2463 = vsel %vm2456, %v2460, %v2462
  %v2464 = vsel %vm2456, %v2462, %v2460
  %v2465 = vadd.s32 %v1689, 2
  %v2466 = vadd.s32 %v1690, 2
  %vm2467 = vcmp.ge.s32.totalorder %v2465, 0
  %vm2468 = vcmp.ge.s32.totalorder %v2466, 0
  %vm2469 = vcmp.lt.s32.totalorder %v2465, 128
  %vm2470 = vcmp.lt.s32.totalorder %v2466, 128
  %vm2471 = vmand %vm2467, %vm2469
  %vm2472 = vmand %vm2468, %vm2470
  %2473 = vset.pattern.permute.xlu0 5
  %2474 = vperm.xlu0 %2473, %v1685
  %v2475 = vpop.permute.xlu0 %2474
  %v2477 = vmul.f32 %v2475, %v2457
  %v2478 = vmul.f32 %v2475, %v2458
  %2479 = vset.pattern.permute.xlu0 12
  %2480 = vperm.xlu0 %2479, %v1685
  %v2481 = vpop.permute.xlu0 %2480
  %v2483 = vmul.f32 %v2481, %v2463
  %v2484 = vmul.f32 %v2481, %v2464
  %v2485 = vadd.f32 %v2477, %v2483
  %v2486 = vadd.f32 %v2478, %v2484
  %v2487 = vsel %vm2471, %v2485, 0.0
  %v2488 = vsel %vm2472, %v2486, 0.0
  %v2489 = vadd.f32 %v2450, %v2487
  %v2490 = vadd.f32 %v2451, %v2488
  %2491 = vrot.lane.b32.xlu0 %v2246, 125
  %v2492 = vpop.permute.xlu0 %2491
  %2493 = vrot.lane.b32.xlu0 %v2247, 125
  %v2494 = vpop.permute.xlu0 %2493
  %vm2495 = vcmp.lt.s32.totalorder %v1687, 125
  %v2496 = vsel %vm2495, %v2492, %v2494
  %v2497 = vsel %vm2495, %v2494, %v2492
  %2498 = vrot.lane.b32.xlu0 %v2260, 125
  %v2499 = vpop.permute.xlu0 %2498
  %2500 = vrot.lane.b32.xlu0 %v2273, 125
  %v2501 = vpop.permute.xlu0 %2500
  %v2502 = vsel %vm2495, %v2499, %v2501
  %v2503 = vsel %vm2495, %v2501, %v2499
  %v2504 = vadd.s32 %v1689, 3
  %v2505 = vadd.s32 %v1690, 3
  %vm2506 = vcmp.ge.s32.totalorder %v2504, 0
  %vm2507 = vcmp.ge.s32.totalorder %v2505, 0
  %vm2508 = vcmp.lt.s32.totalorder %v2504, 128
  %vm2509 = vcmp.lt.s32.totalorder %v2505, 128
  %vm2510 = vmand %vm2506, %vm2508
  %vm2511 = vmand %vm2507, %vm2509
  %2512 = vset.pattern.permute.xlu0 6
  %2513 = vperm.xlu0 %2512, %v1685
  %v2514 = vpop.permute.xlu0 %2513
  %v2516 = vmul.f32 %v2514, %v2496
  %v2517 = vmul.f32 %v2514, %v2497
  %2518 = vset.pattern.permute.xlu0 13
  %2519 = vperm.xlu0 %2518, %v1685
  %v2520 = vpop.permute.xlu0 %2519
  %v2522 = vmul.f32 %v2520, %v2502
  %v2523 = vmul.f32 %v2520, %v2503
  %v2524 = vadd.f32 %v2516, %v2522
  %v2525 = vadd.f32 %v2517, %v2523
  %v2526 = vsel %vm2510, %v2524, 0.0
  %v2527 = vsel %vm2511, %v2525, 0.0
  %v2528 = vadd.f32 %v2489, %v2526
  %v2529 = vadd.f32 %v2490, %v2527
  %v2530 = vxor.u32 %v2528, 2147483648
  %v2531 = vxor.u32 %v2529, 2147483648
  %v2532 = vmul.f32 %v2530, 1.442695
  %v2533 = vpow.pop %v2532
  %v2534 = vmul.f32 %v2531, 1.442695
  %v2535 = vpow.pop %v2534
  %v2536 = vadd.f32 %v2533, 1.0
  %v2537 = vadd.f32 %v2535, 1.0
  %v2538 = vrcp.pop %v2536
  %v2539 = vmul.f32 1.0, %v2538
  %v2540 = vrcp.pop %v2537
  %v2541 = vmul.f32 1.0, %v2540
  %v2542 = vlaneseq
  %v2543 = vshrl.u32 %v2542, 7
  %v2544 = vsub.s32 0, %v2543
  %v2545 = vrot.slane %v2539, %v2544
  %v2546 = vlaneseq
  %v2547 = vshrl.u32 %v2546, 7
  %v2548 = vsub.s32 0, %v2547
  %v2549 = vrot.slane %v2541, %v2548
  %v2550 = vmul.f32 %v2203, %v2545
  %v2551 = vmul.f32 %v2204, %v2549
  %v2552 = vmul.f32 %v2205, %v2545
  %v2553 = vmul.f32 %v2206, %v2549
  %v2554 = vmul.f32 %v2207, %v2545
  %v2555 = vmul.f32 %v2208, %v2549
  %v2556 = vmul.f32 %v2209, %v2545
  %v2557 = vmul.f32 %v2210, %v2549
  %v2558 = vmul.f32 %v2211, %v2545
  %v2559 = vmul.f32 %v2212, %v2549
  %v2560 = vmul.f32 %v2213, %v2545
  %v2561 = vmul.f32 %v2214, %v2549
  %v2562 = vmul.f32 %v2215, %v2545
  %v2563 = vmul.f32 %v2216, %v2549
  %v2564 = vmul.f32 %v2217, %v2545
  %v2565 = vmul.f32 %v2218, %v2549
  %2566 = vrot.lane.b32.xlu0 %v2550, 64
  %v2567 = vpop.permute.xlu0 %2566
  %2568 = vrot.lane.b32.xlu0 %v2552, 64
  %v2569 = vpop.permute.xlu0 %2568
  %2570 = vrot.lane.b32.xlu0 %v2554, 64
  %v2571 = vpop.permute.xlu0 %2570
  %2572 = vrot.lane.b32.xlu0 %v2556, 64
  %v2573 = vpop.permute.xlu0 %2572
  %2574 = vrot.lane.b32.xlu0 %v2558, 64
  %v2575 = vpop.permute.xlu0 %2574
  %2576 = vrot.lane.b32.xlu0 %v2560, 64
  %v2577 = vpop.permute.xlu0 %2576
  %2578 = vrot.lane.b32.xlu0 %v2562, 64
  %v2579 = vpop.permute.xlu0 %2578
  %2580 = vrot.lane.b32.xlu0 %v2564, 64
  %v2581 = vpop.permute.xlu0 %2580
  %2582 = vrot.lane.b32.xlu0 %v2551, 64
  %v2583 = vpop.permute.xlu0 %2582
  %2584 = vrot.lane.b32.xlu0 %v2553, 64
  %v2585 = vpop.permute.xlu0 %2584
  %2586 = vrot.lane.b32.xlu0 %v2555, 64
  %v2587 = vpop.permute.xlu0 %2586
  %2588 = vrot.lane.b32.xlu0 %v2557, 64
  %v2589 = vpop.permute.xlu0 %2588
  %2590 = vrot.lane.b32.xlu0 %v2559, 64
  %v2591 = vpop.permute.xlu0 %2590
  %2592 = vrot.lane.b32.xlu0 %v2561, 64
  %v2593 = vpop.permute.xlu0 %2592
  %2594 = vrot.lane.b32.xlu0 %v2563, 64
  %v2595 = vpop.permute.xlu0 %2594
  %2596 = vrot.lane.b32.xlu0 %v2565, 64
  %v2597 = vpop.permute.xlu0 %2596
  %vm2598 = vcmp.lt.s32.totalorder %v1687, 64
  %v2599 = vsel %vm2598, %v2567, %v2583
  %v2600 = vsel %vm2598, %v2569, %v2585
  %v2601 = vsel %vm2598, %v2571, %v2587
  %v2602 = vsel %vm2598, %v2573, %v2589
  %v2603 = vsel %vm2598, %v2575, %v2591
  %v2604 = vsel %vm2598, %v2577, %v2593
  %v2605 = vsel %vm2598, %v2579, %v2595
  %v2606 = vsel %vm2598, %v2581, %v2597
  %v2607 = vsel %vm2598, %v2583, %v2567
  %v2608 = vsel %vm2598, %v2585, %v2569
  %v2609 = vsel %vm2598, %v2587, %v2571
  %v2610 = vsel %vm2598, %v2589, %v2573
  %v2611 = vsel %vm2598, %v2591, %v2575
  %v2612 = vsel %vm2598, %v2593, %v2577
  %v2613 = vsel %vm2598, %v2595, %v2579
  %v2614 = vsel %vm2598, %v2597, %v2581
  %v2615 = vmax.f32 %v2550, %v2599
  %v2616 = vmax.f32 %v2551, %v2607
  %v2617 = vmax.f32 %v2552, %v2600
  %v2618 = vmax.f32 %v2553, %v2608
  %v2619 = vmax.f32 %v2554, %v2601
  %v2620 = vmax.f32 %v2555, %v2609
  %v2621 = vmax.f32 %v2556, %v2602
  %v2622 = vmax.f32 %v2557, %v2610
  %v2623 = vmax.f32 %v2558, %v2603
  %v2624 = vmax.f32 %v2559, %v2611
  %v2625 = vmax.f32 %v2560, %v2604
  %v2626 = vmax.f32 %v2561, %v2612
  %v2627 = vmax.f32 %v2562, %v2605
  %v2628 = vmax.f32 %v2563, %v2613
  %v2629 = vmax.f32 %v2564, %v2606
  %v2630 = vmax.f32 %v2565, %v2614
  %2631 = vrot.lane.b32.xlu0 %v2615, 96
  %v2632 = vpop.permute.xlu0 %2631
  %2633 = vrot.lane.b32.xlu0 %v2617, 96
  %v2634 = vpop.permute.xlu0 %2633
  %2635 = vrot.lane.b32.xlu0 %v2619, 96
  %v2636 = vpop.permute.xlu0 %2635
  %2637 = vrot.lane.b32.xlu0 %v2621, 96
  %v2638 = vpop.permute.xlu0 %2637
  %2639 = vrot.lane.b32.xlu0 %v2623, 96
  %v2640 = vpop.permute.xlu0 %2639
  %2641 = vrot.lane.b32.xlu0 %v2625, 96
  %v2642 = vpop.permute.xlu0 %2641
  %2643 = vrot.lane.b32.xlu0 %v2627, 96
  %v2644 = vpop.permute.xlu0 %2643
  %2645 = vrot.lane.b32.xlu0 %v2629, 96
  %v2646 = vpop.permute.xlu0 %2645
  %2647 = vrot.lane.b32.xlu0 %v2616, 96
  %v2648 = vpop.permute.xlu0 %2647
  %2649 = vrot.lane.b32.xlu0 %v2618, 96
  %v2650 = vpop.permute.xlu0 %2649
  %2651 = vrot.lane.b32.xlu0 %v2620, 96
  %v2652 = vpop.permute.xlu0 %2651
  %2653 = vrot.lane.b32.xlu0 %v2622, 96
  %v2654 = vpop.permute.xlu0 %2653
  %2655 = vrot.lane.b32.xlu0 %v2624, 96
  %v2656 = vpop.permute.xlu0 %2655
  %2657 = vrot.lane.b32.xlu0 %v2626, 96
  %v2658 = vpop.permute.xlu0 %2657
  %2659 = vrot.lane.b32.xlu0 %v2628, 96
  %v2660 = vpop.permute.xlu0 %2659
  %2661 = vrot.lane.b32.xlu0 %v2630, 96
  %v2662 = vpop.permute.xlu0 %2661
  %vm2663 = vcmp.lt.s32.totalorder %v1687, 96
  %v2664 = vsel %vm2663, %v2632, %v2648
  %v2665 = vsel %vm2663, %v2634, %v2650
  %v2666 = vsel %vm2663, %v2636, %v2652
  %v2667 = vsel %vm2663, %v2638, %v2654
  %v2668 = vsel %vm2663, %v2640, %v2656
  %v2669 = vsel %vm2663, %v2642, %v2658
  %v2670 = vsel %vm2663, %v2644, %v2660
  %v2671 = vsel %vm2663, %v2646, %v2662
  %v2672 = vsel %vm2663, %v2648, %v2632
  %v2673 = vsel %vm2663, %v2650, %v2634
  %v2674 = vsel %vm2663, %v2652, %v2636
  %v2675 = vsel %vm2663, %v2654, %v2638
  %v2676 = vsel %vm2663, %v2656, %v2640
  %v2677 = vsel %vm2663, %v2658, %v2642
  %v2678 = vsel %vm2663, %v2660, %v2644
  %v2679 = vsel %vm2663, %v2662, %v2646
  %v2680 = vmax.f32 %v2615, %v2664
  %v2681 = vmax.f32 %v2616, %v2672
  %v2682 = vmax.f32 %v2617, %v2665
  %v2683 = vmax.f32 %v2618, %v2673
  %v2684 = vmax.f32 %v2619, %v2666
  %v2685 = vmax.f32 %v2620, %v2674
  %v2686 = vmax.f32 %v2621, %v2667
  %v2687 = vmax.f32 %v2622, %v2675
  %v2688 = vmax.f32 %v2623, %v2668
  %v2689 = vmax.f32 %v2624, %v2676
  %v2690 = vmax.f32 %v2625, %v2669
  %v2691 = vmax.f32 %v2626, %v2677
  %v2692 = vmax.f32 %v2627, %v2670
  %v2693 = vmax.f32 %v2628, %v2678
  %v2694 = vmax.f32 %v2629, %v2671
  %v2695 = vmax.f32 %v2630, %v2679
  %2696 = vrot.lane.b32.xlu0 %v2680, 112
  %v2697 = vpop.permute.xlu0 %2696
  %2698 = vrot.lane.b32.xlu0 %v2682, 112
  %v2699 = vpop.permute.xlu0 %2698
  %2700 = vrot.lane.b32.xlu0 %v2684, 112
  %v2701 = vpop.permute.xlu0 %2700
  %2702 = vrot.lane.b32.xlu0 %v2686, 112
  %v2703 = vpop.permute.xlu0 %2702
  %2704 = vrot.lane.b32.xlu0 %v2688, 112
  %v2705 = vpop.permute.xlu0 %2704
  %2706 = vrot.lane.b32.xlu0 %v2690, 112
  %v2707 = vpop.permute.xlu0 %2706
  %2708 = vrot.lane.b32.xlu0 %v2692, 112
  %v2709 = vpop.permute.xlu0 %2708
  %2710 = vrot.lane.b32.xlu0 %v2694, 112
  %v2711 = vpop.permute.xlu0 %2710
  %2712 = vrot.lane.b32.xlu0 %v2681, 112
  %v2713 = vpop.permute.xlu0 %2712
  %2714 = vrot.lane.b32.xlu0 %v2683, 112
  %v2715 = vpop.permute.xlu0 %2714
  %2716 = vrot.lane.b32.xlu0 %v2685, 112
  %v2717 = vpop.permute.xlu0 %2716
  %2718 = vrot.lane.b32.xlu0 %v2687, 112
  %v2719 = vpop.permute.xlu0 %2718
  %2720 = vrot.lane.b32.xlu0 %v2689, 112
  %v2721 = vpop.permute.xlu0 %2720
  %2722 = vrot.lane.b32.xlu0 %v2691, 112
  %v2723 = vpop.permute.xlu0 %2722
  %2724 = vrot.lane.b32.xlu0 %v2693, 112
  %v2725 = vpop.permute.xlu0 %2724
  %2726 = vrot.lane.b32.xlu0 %v2695, 112
  %v2727 = vpop.permute.xlu0 %2726
  %vm2728 = vcmp.lt.s32.totalorder %v1687, 112
  %v2729 = vsel %vm2728, %v2697, %v2713
  %v2730 = vsel %vm2728, %v2699, %v2715
  %v2731 = vsel %vm2728, %v2701, %v2717
  %v2732 = vsel %vm2728, %v2703, %v2719
  %v2733 = vsel %vm2728, %v2705, %v2721
  %v2734 = vsel %vm2728, %v2707, %v2723
  %v2735 = vsel %vm2728, %v2709, %v2725
  %v2736 = vsel %vm2728, %v2711, %v2727
  %v2737 = vsel %vm2728, %v2713, %v2697
  %v2738 = vsel %vm2728, %v2715, %v2699
  %v2739 = vsel %vm2728, %v2717, %v2701
  %v2740 = vsel %vm2728, %v2719, %v2703
  %v2741 = vsel %vm2728, %v2721, %v2705
  %v2742 = vsel %vm2728, %v2723, %v2707
  %v2743 = vsel %vm2728, %v2725, %v2709
  %v2744 = vsel %vm2728, %v2727, %v2711
  %v2745 = vmax.f32 %v2680, %v2729
  %v2746 = vmax.f32 %v2681, %v2737
  %v2747 = vmax.f32 %v2682, %v2730
  %v2748 = vmax.f32 %v2683, %v2738
  %v2749 = vmax.f32 %v2684, %v2731
  %v2750 = vmax.f32 %v2685, %v2739
  %v2751 = vmax.f32 %v2686, %v2732
  %v2752 = vmax.f32 %v2687, %v2740
  %v2753 = vmax.f32 %v2688, %v2733
  %v2754 = vmax.f32 %v2689, %v2741
  %v2755 = vmax.f32 %v2690, %v2734
  %v2756 = vmax.f32 %v2691, %v2742
  %v2757 = vmax.f32 %v2692, %v2735
  %v2758 = vmax.f32 %v2693, %v2743
  %v2759 = vmax.f32 %v2694, %v2736
  %v2760 = vmax.f32 %v2695, %v2744
  %2761 = vrot.lane.b32.xlu0 %v2745, 120
  %v2762 = vpop.permute.xlu0 %2761
  %2763 = vrot.lane.b32.xlu0 %v2747, 120
  %v2764 = vpop.permute.xlu0 %2763
  %2765 = vrot.lane.b32.xlu0 %v2749, 120
  %v2766 = vpop.permute.xlu0 %2765
  %2767 = vrot.lane.b32.xlu0 %v2751, 120
  %v2768 = vpop.permute.xlu0 %2767
  %2769 = vrot.lane.b32.xlu0 %v2753, 120
  %v2770 = vpop.permute.xlu0 %2769
  %2771 = vrot.lane.b32.xlu0 %v2755, 120
  %v2772 = vpop.permute.xlu0 %2771
  %2773 = vrot.lane.b32.xlu0 %v2757, 120
  %v2774 = vpop.permute.xlu0 %2773
  %2775 = vrot.lane.b32.xlu0 %v2759, 120
  %v2776 = vpop.permute.xlu0 %2775
  %2777 = vrot.lane.b32.xlu0 %v2746, 120
  %v2778 = vpop.permute.xlu0 %2777
  %2779 = vrot.lane.b32.xlu0 %v2748, 120
  %v2780 = vpop.permute.xlu0 %2779
  %2781 = vrot.lane.b32.xlu0 %v2750, 120
  %v2782 = vpop.permute.xlu0 %2781
  %2783 = vrot.lane.b32.xlu0 %v2752, 120
  %v2784 = vpop.permute.xlu0 %2783
  %2785 = vrot.lane.b32.xlu0 %v2754, 120
  %v2786 = vpop.permute.xlu0 %2785
  %2787 = vrot.lane.b32.xlu0 %v2756, 120
  %v2788 = vpop.permute.xlu0 %2787
  %2789 = vrot.lane.b32.xlu0 %v2758, 120
  %v2790 = vpop.permute.xlu0 %2789
  %2791 = vrot.lane.b32.xlu0 %v2760, 120
  %v2792 = vpop.permute.xlu0 %2791
  %vm2793 = vcmp.lt.s32.totalorder %v1687, 120
  %v2794 = vsel %vm2793, %v2762, %v2778
  %v2795 = vsel %vm2793, %v2764, %v2780
  %v2796 = vsel %vm2793, %v2766, %v2782
  %v2797 = vsel %vm2793, %v2768, %v2784
  %v2798 = vsel %vm2793, %v2770, %v2786
  %v2799 = vsel %vm2793, %v2772, %v2788
  %v2800 = vsel %vm2793, %v2774, %v2790
  %v2801 = vsel %vm2793, %v2776, %v2792
  %v2802 = vsel %vm2793, %v2778, %v2762
  %v2803 = vsel %vm2793, %v2780, %v2764
  %v2804 = vsel %vm2793, %v2782, %v2766
  %v2805 = vsel %vm2793, %v2784, %v2768
  %v2806 = vsel %vm2793, %v2786, %v2770
  %v2807 = vsel %vm2793, %v2788, %v2772
  %v2808 = vsel %vm2793, %v2790, %v2774
  %v2809 = vsel %vm2793, %v2792, %v2776
  %v2810 = vmax.f32 %v2745, %v2794
  %v2811 = vmax.f32 %v2746, %v2802
  %v2812 = vmax.f32 %v2747, %v2795
  %v2813 = vmax.f32 %v2748, %v2803
  %v2814 = vmax.f32 %v2749, %v2796
  %v2815 = vmax.f32 %v2750, %v2804
  %v2816 = vmax.f32 %v2751, %v2797
  %v2817 = vmax.f32 %v2752, %v2805
  %v2818 = vmax.f32 %v2753, %v2798
  %v2819 = vmax.f32 %v2754, %v2806
  %v2820 = vmax.f32 %v2755, %v2799
  %v2821 = vmax.f32 %v2756, %v2807
  %v2822 = vmax.f32 %v2757, %v2800
  %v2823 = vmax.f32 %v2758, %v2808
  %v2824 = vmax.f32 %v2759, %v2801
  %v2825 = vmax.f32 %v2760, %v2809
  %2826 = vadd.xlane.f32.xlu0 %v1660
  %v2827 = vpop.xlane.xlu0 %2826
  %2828 = vadd.xlane.f32.xlu0 %v1662
  %v2829 = vpop.xlane.xlu0 %2828
  %2830 = vadd.xlane.f32.xlu0 %v1664
  %v2831 = vpop.xlane.xlu0 %2830
  %2832 = vadd.xlane.f32.xlu0 %v1666
  %v2833 = vpop.xlane.xlu0 %2832
  %2834 = vadd.xlane.f32.xlu0 %v1668
  %v2835 = vpop.xlane.xlu0 %2834
  %2836 = vadd.xlane.f32.xlu0 %v1670
  %v2837 = vpop.xlane.xlu0 %2836
  %2838 = vadd.xlane.f32.xlu0 %v1672
  %v2839 = vpop.xlane.xlu0 %2838
  %2840 = vadd.xlane.f32.xlu0 %v1674
  %v2841 = vpop.xlane.xlu0 %2840
  %v2842 = vmul.f32 %v2827, %v1707
  %v2843 = vmul.f32 %v2829, %v1707
  %v2844 = vmul.f32 %v2831, %v1707
  %v2845 = vmul.f32 %v2833, %v1707
  %v2846 = vmul.f32 %v2835, %v1707
  %v2847 = vmul.f32 %v2837, %v1707
  %v2848 = vmul.f32 %v2839, %v1707
  %v2849 = vmul.f32 %v2841, %v1707
  %2850 = vmax.xlane.f32.xlu0 %v1660
  %v2851 = vpop.xlane.xlu0 %2850
  %2852 = vmax.xlane.f32.xlu0 %v1662
  %v2853 = vpop.xlane.xlu0 %2852
  %2854 = vmax.xlane.f32.xlu0 %v1664
  %v2855 = vpop.xlane.xlu0 %2854
  %2856 = vmax.xlane.f32.xlu0 %v1666
  %v2857 = vpop.xlane.xlu0 %2856
  %2858 = vmax.xlane.f32.xlu0 %v1668
  %v2859 = vpop.xlane.xlu0 %2858
  %2860 = vmax.xlane.f32.xlu0 %v1670
  %v2861 = vpop.xlane.xlu0 %2860
  %2862 = vmax.xlane.f32.xlu0 %v1672
  %v2863 = vpop.xlane.xlu0 %2862
  %2864 = vmax.xlane.f32.xlu0 %v1674
  %v2865 = vpop.xlane.xlu0 %2864
  %2866 = vadd.xlane.f32.xlu0 %v1661
  %v2867 = vpop.xlane.xlu0 %2866
  %2868 = vadd.xlane.f32.xlu0 %v1663
  %v2869 = vpop.xlane.xlu0 %2868
  %2870 = vadd.xlane.f32.xlu0 %v1665
  %v2871 = vpop.xlane.xlu0 %2870
  %2872 = vadd.xlane.f32.xlu0 %v1667
  %v2873 = vpop.xlane.xlu0 %2872
  %2874 = vadd.xlane.f32.xlu0 %v1669
  %v2875 = vpop.xlane.xlu0 %2874
  %2876 = vadd.xlane.f32.xlu0 %v1671
  %v2877 = vpop.xlane.xlu0 %2876
  %2878 = vadd.xlane.f32.xlu0 %v1673
  %v2879 = vpop.xlane.xlu0 %2878
  %2880 = vadd.xlane.f32.xlu0 %v1675
  %v2881 = vpop.xlane.xlu0 %2880
  %v2882 = vmul.f32 %v2867, %v1707
  %v2883 = vmul.f32 %v2869, %v1707
  %v2884 = vmul.f32 %v2871, %v1707
  %v2885 = vmul.f32 %v2873, %v1707
  %v2886 = vmul.f32 %v2875, %v1707
  %v2887 = vmul.f32 %v2877, %v1707
  %v2888 = vmul.f32 %v2879, %v1707
  %v2889 = vmul.f32 %v2881, %v1707
  %2890 = vmax.xlane.f32.xlu0 %v1661
  %v2891 = vpop.xlane.xlu0 %2890
  %2892 = vmax.xlane.f32.xlu0 %v1663
  %v2893 = vpop.xlane.xlu0 %2892
  %2894 = vmax.xlane.f32.xlu0 %v1665
  %v2895 = vpop.xlane.xlu0 %2894
  %2896 = vmax.xlane.f32.xlu0 %v1667
  %v2897 = vpop.xlane.xlu0 %2896
  %2898 = vmax.xlane.f32.xlu0 %v1669
  %v2899 = vpop.xlane.xlu0 %2898
  %2900 = vmax.xlane.f32.xlu0 %v1671
  %v2901 = vpop.xlane.xlu0 %2900
  %2902 = vmax.xlane.f32.xlu0 %v1673
  %v2903 = vpop.xlane.xlu0 %2902
  %2904 = vmax.xlane.f32.xlu0 %v1675
  %v2905 = vpop.xlane.xlu0 %2904
  %v2906 = vsel %vm1772, %v2842, %v2851
  %v2907 = vsel %vm1772, %v2843, %v2853
  %v2908 = vsel %vm1772, %v2844, %v2855
  %v2909 = vsel %vm1772, %v2845, %v2857
  %v2910 = vsel %vm1772, %v2846, %v2859
  %v2911 = vsel %vm1772, %v2847, %v2861
  %v2912 = vsel %vm1772, %v2848, %v2863
  %v2913 = vsel %vm1772, %v2849, %v2865
  %v2914 = vsel %vm1781, %v2906, %v2882
  %v2915 = vsel %vm1781, %v2907, %v2883
  %v2916 = vsel %vm1781, %v2908, %v2884
  %v2917 = vsel %vm1781, %v2909, %v2885
  %v2918 = vsel %vm1781, %v2910, %v2886
  %v2919 = vsel %vm1781, %v2911, %v2887
  %v2920 = vsel %vm1781, %v2912, %v2888
  %v2921 = vsel %vm1781, %v2913, %v2889
  %v2922 = vsel %vm1790, %v2914, %v2891
  %v2923 = vsel %vm1790, %v2915, %v2893
  %v2924 = vsel %vm1790, %v2916, %v2895
  %v2925 = vsel %vm1790, %v2917, %v2897
  %v2926 = vsel %vm1790, %v2918, %v2899
  %v2927 = vsel %vm1790, %v2919, %v2901
  %v2928 = vsel %vm1790, %v2920, %v2903
  %v2929 = vsel %vm1790, %v2921, %v2905
  %2930 = vmatprep.subr.mxu0 0.0
  %2931 = vmatpush1.msra.mxu0 %v2922
  %2932 = vmatprep.subr.mxu0 0.0
  %2933 = vmatpush1.msra.mxu0 %v2923
  %2934 = vmatprep.subr.mxu0 0.0
  %2935 = vmatpush1.msra.mxu0 %v2924
  %2936 = vmatprep.subr.mxu0 0.0
  %2937 = vmatpush1.msra.mxu0 %v2925
  %2938 = vmatprep.subr.mxu0 0.0
  %2939 = vmatpush1.msra.mxu0 %v2926
  %2940 = vmatprep.subr.mxu0 0.0
  %2941 = vmatpush1.msra.mxu0 %v2927
  %2942 = vmatprep.subr.mxu0 0.0
  %2943 = vmatpush1.msra.mxu0 %v2928
  %2944 = vmatprep.subr.mxu0 0.0
  %2945 = vmatpush1.msra.mxu0 %v2929
  %2946 = vmatprep.subr.mxu0 0.0
  %2947 = vmatpush1.msra.mxu0 0.0
  %2948 = vmatprep.subr.mxu0 0.0
  %2949 = vmatpush1.msra.mxu0 0.0
  %2950 = vmatprep.subr.mxu0 0.0
  %2951 = vmatpush1.msra.mxu0 0.0
  %2952 = vmatprep.subr.mxu0 0.0
  %2953 = vmatpush1.msra.mxu0 0.0
  %2954 = vmatprep.subr.mxu0 0.0
  %2955 = vmatpush1.msra.mxu0 0.0
  %2956 = vmatprep.subr.mxu0 0.0
  %2957 = vmatpush1.msra.mxu0 0.0
  %2958 = vmatprep.subr.mxu0 0.0
  %2959 = vmatpush1.msra.mxu0 0.0
  %2960 = vmatprep.subr.mxu0 0.0
  %2961 = vmatpush1.msra.mxu0 0.0
  %2962 = vmatprep.subr.mxu0 0.0
  %2963 = vmatpush1.msra.mxu0 0.0
  %2964 = vmatprep.subr.mxu0 0.0
  %2965 = vmatpush1.msra.mxu0 0.0
  %2966 = vmatprep.subr.mxu0 0.0
  %2967 = vmatpush1.msra.mxu0 0.0
  %2968 = vmatprep.subr.mxu0 0.0
  %2969 = vmatpush1.msra.mxu0 0.0
  %2970 = vmatprep.subr.mxu0 0.0
  %2971 = vmatpush1.msra.mxu0 0.0
  %2972 = vmatprep.subr.mxu0 0.0
  %2973 = vmatpush1.msra.mxu0 0.0
  %2974 = vmatprep.subr.mxu0 0.0
  %2975 = vmatpush1.msra.mxu0 0.0
  %2976 = vmatprep.subr.mxu0 0.0
  %2977 = vmatpush1.msra.mxu0 0.0
  %2978 = vmatprep.subr.mxu0 0.0
  %2979 = vmatpush1.msra.mxu0 0.0
  %2980 = vmatprep.subr.mxu0 0.0
  %2981 = vmatpush1.msra.mxu0 0.0
  %2982 = vmatprep.subr.mxu0 0.0
  %2983 = vmatpush1.msra.mxu0 0.0
  %2984 = vmatprep.subr.mxu0 0.0
  %2985 = vmatpush1.msra.mxu0 0.0
  %2986 = vmatprep.subr.mxu0 0.0
  %2987 = vmatpush1.msra.mxu0 0.0
  %2988 = vmatprep.subr.mxu0 0.0
  %2989 = vmatpush1.msra.mxu0 0.0
  %2990 = vmatprep.subr.mxu0 0.0
  %2991 = vmatpush1.msra.mxu0 0.0
  %2992 = vmatprep.subr.mxu0 0.0
  %2993 = vmatpush1.msra.mxu0 0.0
  %2994 = vmatprep.mubr.f32.mxu0 0.0
  %2995 = vmatmul.mubr.f32.gmra.mrb[0].mxu0 %v1805
  %v2996 = vpop.f32.mrb[0].mxu0
  %v2997 = vadd.f32 %v1802, %v2996
  %v2998 = vpop.f32.mrb[0].mxu0
  %2999 = vdwg.mxu0
  %v3000 = vmax.f32 %v2997, 0.0
  %v3002 = vsel %vm1438, %v3000, 0
  %3004 = vmatprep.subr.mxu0 0.0
  %3005 = vmatpush1.msra.mxu0 %v3002
  %3006 = vmatprep.subr.mxu0 0.0
  %3007 = vmatpush1.msra.mxu0 0.0
  %3008 = vmatprep.subr.mxu0 0.0
  %3009 = vmatpush1.msra.mxu0 0.0
  %3010 = vmatprep.subr.mxu0 0.0
  %3011 = vmatpush1.msra.mxu0 0.0
  %3012 = vmatprep.subr.mxu0 0.0
  %3013 = vmatpush1.msra.mxu0 0.0
  %3014 = vmatprep.subr.mxu0 0.0
  %3015 = vmatpush1.msra.mxu0 0.0
  %3016 = vmatprep.subr.mxu0 0.0
  %3017 = vmatpush1.msra.mxu0 0.0
  %3018 = vmatprep.subr.mxu0 0.0
  %3019 = vmatpush1.msra.mxu0 0.0
  %3020 = vmatprep.subr.mxu0 0.0
  %3021 = vmatpush1.msra.mxu0 0.0
  %3022 = vmatprep.subr.mxu0 0.0
  %3023 = vmatpush1.msra.mxu0 0.0
  %3024 = vmatprep.subr.mxu0 0.0
  %3025 = vmatpush1.msra.mxu0 0.0
  %3026 = vmatprep.subr.mxu0 0.0
  %3027 = vmatpush1.msra.mxu0 0.0
  %3028 = vmatprep.subr.mxu0 0.0
  %3029 = vmatpush1.msra.mxu0 0.0
  %3030 = vmatprep.subr.mxu0 0.0
  %3031 = vmatpush1.msra.mxu0 0.0
  %3032 = vmatprep.subr.mxu0 0.0
  %3033 = vmatpush1.msra.mxu0 0.0
  %3034 = vmatprep.subr.mxu0 0.0
  %3035 = vmatpush1.msra.mxu0 0.0
  %3036 = vmatprep.subr.mxu0 0.0
  %3037 = vmatpush1.msra.mxu0 0.0
  %3038 = vmatprep.subr.mxu0 0.0
  %3039 = vmatpush1.msra.mxu0 0.0
  %3040 = vmatprep.subr.mxu0 0.0
  %3041 = vmatpush1.msra.mxu0 0.0
  %3042 = vmatprep.subr.mxu0 0.0
  %3043 = vmatpush1.msra.mxu0 0.0
  %3044 = vmatprep.subr.mxu0 0.0
  %3045 = vmatpush1.msra.mxu0 0.0
  %3046 = vmatprep.subr.mxu0 0.0
  %3047 = vmatpush1.msra.mxu0 0.0
  %3048 = vmatprep.subr.mxu0 0.0
  %3049 = vmatpush1.msra.mxu0 0.0
  %3050 = vmatprep.subr.mxu0 0.0
  %3051 = vmatpush1.msra.mxu0 0.0
  %3052 = vmatprep.subr.mxu0 0.0
  %3053 = vmatpush1.msra.mxu0 0.0
  %3054 = vmatprep.subr.mxu0 0.0
  %3055 = vmatpush1.msra.mxu0 0.0
  %3056 = vmatprep.subr.mxu0 0.0
  %3057 = vmatpush1.msra.mxu0 0.0
  %3058 = vmatprep.subr.mxu0 0.0
  %3059 = vmatpush1.msra.mxu0 0.0
  %3060 = vmatprep.subr.mxu0 0.0
  %3061 = vmatpush1.msra.mxu0 0.0
  %3062 = vmatprep.subr.mxu0 0.0
  %3063 = vmatpush1.msra.mxu0 0.0
  %3064 = vmatprep.subr.mxu0 0.0
  %3065 = vmatpush1.msra.mxu0 0.0
  %3066 = vmatprep.subr.mxu0 0.0
  %3067 = vmatpush1.msra.mxu0 0.0
  %3068 = vmatprep.mubr.f32.mxu0 0.0
  %3069 = vmatmul.mubr.f32.gmra.mrb[0].mxu0 %v1919
  %v3070 = vpop.f32.mrb[0].mxu0
  %v3071 = vadd.f32 %v1881, %v3070
  %v3072 = vpop.f32.mrb[0].mxu0
  %3073 = vmatprep.mubr.f32.mxu0 0.0
  %3074 = vmatmul.mubr.f32.gmra.mrb[0].mxu0 %v1921
  %v3075 = vpop.f32.mrb[0].mxu0
  %v3076 = vadd.f32 %v1886, %v3075
  %v3077 = vpop.f32.mrb[0].mxu0
  %3078 = vmatprep.mubr.f32.mxu0 0.0
  %3079 = vmatmul.mubr.f32.gmra.mrb[0].mxu0 %v1923
  %v3080 = vpop.f32.mrb[0].mxu0
  %v3081 = vadd.f32 %v1891, %v3080
  %v3082 = vpop.f32.mrb[0].mxu0
  %3083 = vmatprep.mubr.f32.mxu0 0.0
  %3084 = vmatmul.mubr.f32.gmra.mrb[0].mxu0 %v1925
  %v3085 = vpop.f32.mrb[0].mxu0
  %v3086 = vadd.f32 %v1896, %v3085
  %v3087 = vpop.f32.mrb[0].mxu0
  %3088 = vmatprep.mubr.f32.mxu0 0.0
  %3089 = vmatmul.mubr.f32.gmra.mrb[0].mxu0 %v1927
  %v3090 = vpop.f32.mrb[0].mxu0
  %v3091 = vadd.f32 %v1901, %v3090
  %v3092 = vpop.f32.mrb[0].mxu0
  %3093 = vmatprep.mubr.f32.mxu0 0.0
  %3094 = vmatmul.mubr.f32.gmra.mrb[0].mxu0 %v1929
  %v3095 = vpop.f32.mrb[0].mxu0
  %v3096 = vadd.f32 %v1906, %v3095
  %v3097 = vpop.f32.mrb[0].mxu0
  %3098 = vmatprep.mubr.f32.mxu0 0.0
  %3099 = vmatmul.mubr.f32.gmra.mrb[0].mxu0 %v1931
  %v3100 = vpop.f32.mrb[0].mxu0
  %v3101 = vadd.f32 %v1911, %v3100
  %v3102 = vpop.f32.mrb[0].mxu0
  %3103 = vmatprep.mubr.f32.mxu0 0.0
  %3104 = vmatmul.mubr.f32.gmra.mrb[0].mxu0 %v1933
  %v3105 = vpop.f32.mrb[0].mxu0
  %v3106 = vadd.f32 %v1916, %v3105
  %v3107 = vpop.f32.mrb[0].mxu0
  %3108 = vdwg.mxu0
  %3117 = vrot.lane.b32.xlu0 %v3071, 127
  %v3118 = vpop.permute.xlu0 %3117
  %3119 = vrot.lane.b32.xlu0 %v3076, 127
  %v3120 = vpop.permute.xlu0 %3119
  %3121 = vrot.lane.b32.xlu0 %v3081, 127
  %v3122 = vpop.permute.xlu0 %3121
  %3123 = vrot.lane.b32.xlu0 %v3086, 127
  %v3124 = vpop.permute.xlu0 %3123
  %3125 = vrot.lane.b32.xlu0 %v3091, 127
  %v3126 = vpop.permute.xlu0 %3125
  %3127 = vrot.lane.b32.xlu0 %v3096, 127
  %v3128 = vpop.permute.xlu0 %3127
  %3129 = vrot.lane.b32.xlu0 %v3101, 127
  %v3130 = vpop.permute.xlu0 %3129
  %3131 = vrot.lane.b32.xlu0 %v3106, 127
  %v3132 = vpop.permute.xlu0 %3131
  %v3141 = vadd.f32 %v3071, %v3118
  %v3142 = vadd.f32 %v3076, %v3120
  %v3143 = vadd.f32 %v3081, %v3122
  %v3144 = vadd.f32 %v3086, %v3124
  %v3145 = vadd.f32 %v3091, %v3126
  %v3146 = vadd.f32 %v3096, %v3128
  %v3147 = vadd.f32 %v3101, %v3130
  %v3148 = vadd.f32 %v3106, %v3132
  %v3149 = vxor.u32 %v3141, 2147483648
  %v3150 = vxor.u32 %v3142, 2147483648
  %v3151 = vxor.u32 %v3143, 2147483648
  %v3152 = vxor.u32 %v3144, 2147483648
  %v3153 = vxor.u32 %v3145, 2147483648
  %v3154 = vxor.u32 %v3146, 2147483648
  %v3155 = vxor.u32 %v3147, 2147483648
  %v3156 = vxor.u32 %v3148, 2147483648
  %v3157 = vmul.f32 %v3149, 1.442695
  %v3158 = vpow.pop %v3157
  %v3159 = vmul.f32 %v3150, 1.442695
  %v3160 = vpow.pop %v3159
  %v3161 = vmul.f32 %v3151, 1.442695
  %v3162 = vpow.pop %v3161
  %v3163 = vmul.f32 %v3152, 1.442695
  %v3164 = vpow.pop %v3163
  %v3165 = vmul.f32 %v3153, 1.442695
  %v3166 = vpow.pop %v3165
  %v3167 = vmul.f32 %v3154, 1.442695
  %v3168 = vpow.pop %v3167
  %v3169 = vmul.f32 %v3155, 1.442695
  %v3170 = vpow.pop %v3169
  %v3171 = vmul.f32 %v3156, 1.442695
  %v3172 = vpow.pop %v3171
  %v3173 = vadd.f32 %v3158, 1.0
  %v3174 = vadd.f32 %v3160, 1.0
  %v3175 = vadd.f32 %v3162, 1.0
  %v3176 = vadd.f32 %v3164, 1.0
  %v3177 = vadd.f32 %v3166, 1.0
  %v3178 = vadd.f32 %v3168, 1.0
  %v3179 = vadd.f32 %v3170, 1.0
  %v3180 = vadd.f32 %v3172, 1.0
  %v3181 = vrcp.pop %v3173
  %v3182 = vmul.f32 1.0, %v3181
  %v3183 = vrcp.pop %v3174
  %v3184 = vmul.f32 1.0, %v3183
  %v3185 = vrcp.pop %v3175
  %v3186 = vmul.f32 1.0, %v3185
  %v3187 = vrcp.pop %v3176
  %v3188 = vmul.f32 1.0, %v3187
  %v3189 = vrcp.pop %v3177
  %v3190 = vmul.f32 1.0, %v3189
  %v3191 = vrcp.pop %v3178
  %v3192 = vmul.f32 1.0, %v3191
  %v3193 = vrcp.pop %v3179
  %v3194 = vmul.f32 1.0, %v3193
  %v3195 = vrcp.pop %v3180
  %v3196 = vmul.f32 1.0, %v3195
  %3198 = vset.pattern.permute.xlu0 0
  %3199 = vperm.xlu0 %3198, %v3182
  %v3200 = vpop.permute.xlu0 %3199
  %3203 = vset.pattern.permute.xlu0 0
  %3204 = vperm.xlu0 %3203, %v3184
  %v3205 = vpop.permute.xlu0 %3204
  %3208 = vset.pattern.permute.xlu0 0
  %3209 = vperm.xlu0 %3208, %v3186
  %v3210 = vpop.permute.xlu0 %3209
  %3213 = vset.pattern.permute.xlu0 0
  %3214 = vperm.xlu0 %3213, %v3188
  %v3215 = vpop.permute.xlu0 %3214
  %3218 = vset.pattern.permute.xlu0 0
  %3219 = vperm.xlu0 %3218, %v3190
  %v3220 = vpop.permute.xlu0 %3219
  %3223 = vset.pattern.permute.xlu0 0
  %3224 = vperm.xlu0 %3223, %v3192
  %v3225 = vpop.permute.xlu0 %3224
  %3228 = vset.pattern.permute.xlu0 0
  %3229 = vperm.xlu0 %3228, %v3194
  %v3230 = vpop.permute.xlu0 %3229
  %3233 = vset.pattern.permute.xlu0 0
  %3234 = vperm.xlu0 %3233, %v3196
  %v3235 = vpop.permute.xlu0 %3234
  %3237 = vset.pattern.permute.xlu0 2
  %3238 = vperm.xlu0 %3237, %v3182
  %v3239 = vpop.permute.xlu0 %3238
  %3241 = vset.pattern.permute.xlu0 2
  %3242 = vperm.xlu0 %3241, %v3184
  %v3243 = vpop.permute.xlu0 %3242
  %3245 = vset.pattern.permute.xlu0 2
  %3246 = vperm.xlu0 %3245, %v3186
  %v3247 = vpop.permute.xlu0 %3246
  %3249 = vset.pattern.permute.xlu0 2
  %3250 = vperm.xlu0 %3249, %v3188
  %v3251 = vpop.permute.xlu0 %3250
  %3253 = vset.pattern.permute.xlu0 2
  %3254 = vperm.xlu0 %3253, %v3190
  %v3255 = vpop.permute.xlu0 %3254
  %3257 = vset.pattern.permute.xlu0 2
  %3258 = vperm.xlu0 %3257, %v3192
  %v3259 = vpop.permute.xlu0 %3258
  %3261 = vset.pattern.permute.xlu0 2
  %3262 = vperm.xlu0 %3261, %v3194
  %v3263 = vpop.permute.xlu0 %3262
  %3265 = vset.pattern.permute.xlu0 2
  %3266 = vperm.xlu0 %3265, %v3196
  %v3267 = vpop.permute.xlu0 %3266
  %v3269 = vmul.f32 %v1660, %v3200
  %v3270 = vmul.f32 %v1661, %v3239
  %v3271 = vmul.f32 %v1662, %v3205
  %v3272 = vmul.f32 %v1663, %v3243
  %v3273 = vmul.f32 %v1664, %v3210
  %v3274 = vmul.f32 %v1665, %v3247
  %v3275 = vmul.f32 %v1666, %v3215
  %v3276 = vmul.f32 %v1667, %v3251
  %v3277 = vmul.f32 %v1668, %v3220
  %v3278 = vmul.f32 %v1669, %v3255
  %v3279 = vmul.f32 %v1670, %v3225
  %v3280 = vmul.f32 %v1671, %v3259
  %v3281 = vmul.f32 %v1672, %v3230
  %v3282 = vmul.f32 %v1673, %v3263
  %v3283 = vmul.f32 %v1674, %v3235
  %v3284 = vmul.f32 %v1675, %v3267
  %v3285 = vadd.f32 %v3269, %v3271
  %v3286 = vadd.f32 %v3285, %v3273
  %v3287 = vadd.f32 %v3286, %v3275
  %v3288 = vadd.f32 %v3287, %v3277
  %v3289 = vadd.f32 %v3288, %v3279
  %v3290 = vadd.f32 %v3289, %v3281
  %v3291 = vadd.f32 %v3290, %v3283
  %v3292 = vrot.slane %v3291, 4
  %v3293 = vadd.f32 %v3291, %v3292
  %v3294 = vrot.slane %v3293, 2
  %v3295 = vadd.f32 %v3293, %v3294
  %v3296 = vrot.slane %v3295, 1
  %v3297 = vadd.f32 %v3295, %v3296
  %v3298 = vadd.f32 %v3270, %v3272
  %v3299 = vadd.f32 %v3298, %v3274
  %v3300 = vadd.f32 %v3299, %v3276
  %v3301 = vadd.f32 %v3300, %v3278
  %v3302 = vadd.f32 %v3301, %v3280
  %v3303 = vadd.f32 %v3302, %v3282
  %v3304 = vadd.f32 %v3303, %v3284
  %v3305 = vrot.slane %v3304, 4
  %v3306 = vadd.f32 %v3304, %v3305
  %v3307 = vrot.slane %v3306, 2
  %v3308 = vadd.f32 %v3306, %v3307
  %v3309 = vrot.slane %v3308, 1
  %v3310 = vadd.f32 %v3308, %v3309
  %v3311 = vmul.f32 %v3297, %v2245
  %v3312 = vmul.f32 %v3310, %v2245
  %v3313 = vmax.f32 %v3269, %v3273
  %v3314 = vmax.f32 %v3271, %v3275
  %v3315 = vmax.f32 %v3313, %v3277
  %v3316 = vmax.f32 %v3314, %v3279
  %v3317 = vmax.f32 %v3315, %v3281
  %v3318 = vmax.f32 %v3316, %v3283
  %v3319 = vmax.f32 %v3317, %v3318
  %v3320 = vrot.slane %v3319, 4
  %v3321 = vmax.f32 %v3319, %v3320
  %v3322 = vrot.slane %v3321, 2
  %v3323 = vmax.f32 %v3321, %v3322
  %v3324 = vrot.slane %v3323, 1
  %v3325 = vmax.f32 %v3323, %v3324
  %v3326 = vmax.f32 %v3270, %v3274
  %v3327 = vmax.f32 %v3272, %v3276
  %v3328 = vmax.f32 %v3326, %v3278
  %v3329 = vmax.f32 %v3327, %v3280
  %v3330 = vmax.f32 %v3328, %v3282
  %v3331 = vmax.f32 %v3329, %v3284
  %v3332 = vmax.f32 %v3330, %v3331
  %v3333 = vrot.slane %v3332, 4
  %v3334 = vmax.f32 %v3332, %v3333
  %v3335 = vrot.slane %v3334, 2
  %v3336 = vmax.f32 %v3334, %v3335
  %v3337 = vrot.slane %v3336, 1
  %v3338 = vmax.f32 %v3336, %v3337
  %3339 = vrot.lane.b32.xlu0 %v3311, 3
  %v3340 = vpop.permute.xlu0 %3339
  %3341 = vrot.lane.b32.xlu0 %v3312, 3
  %v3342 = vpop.permute.xlu0 %3341
  %v3343 = vsel %vm2284, %v3340, %v3342
  %v3344 = vsel %vm2284, %v3342, %v3340
  %3345 = vrot.lane.b32.xlu0 %v3325, 3
  %v3346 = vpop.permute.xlu0 %3345
  %3347 = vrot.lane.b32.xlu0 %v3338, 3
  %v3348 = vpop.permute.xlu0 %3347
  %v3349 = vsel %vm2284, %v3346, %v3348
  %v3350 = vsel %vm2284, %v3348, %v3346
  %v3351 = vmul.f32 %v2303, %v3344
  %v3352 = vmul.f32 %v2303, %v3343
  %v3353 = vmul.f32 %v2309, %v3350
  %v3354 = vmul.f32 %v2309, %v3349
  %v3355 = vadd.f32 %v3351, %v3353
  %v3356 = vadd.f32 %v3352, %v3354
  %v3357 = vsel %vm2299, %v3355, 0.0
  %v3358 = vsel %vm2300, %v3356, 0.0
  %v3359 = vadd.f32 %v2279, %v3357
  %v3360 = vadd.f32 %v2279, %v3358
  %3361 = vrot.lane.b32.xlu0 %v3311, 2
  %v3362 = vpop.permute.xlu0 %3361
  %3363 = vrot.lane.b32.xlu0 %v3312, 2
  %v3364 = vpop.permute.xlu0 %3363
  %v3365 = vsel %vm2323, %v3362, %v3364
  %v3366 = vsel %vm2323, %v3364, %v3362
  %3367 = vrot.lane.b32.xlu0 %v3325, 2
  %v3368 = vpop.permute.xlu0 %3367
  %3369 = vrot.lane.b32.xlu0 %v3338, 2
  %v3370 = vpop.permute.xlu0 %3369
  %v3371 = vsel %vm2323, %v3368, %v3370
  %v3372 = vsel %vm2323, %v3370, %v3368
  %v3373 = vmul.f32 %v2342, %v3366
  %v3374 = vmul.f32 %v2342, %v3365
  %v3375 = vmul.f32 %v2348, %v3372
  %v3376 = vmul.f32 %v2348, %v3371
  %v3377 = vadd.f32 %v3373, %v3375
  %v3378 = vadd.f32 %v3374, %v3376
  %v3379 = vsel %vm2338, %v3377, 0.0
  %v3380 = vsel %vm2339, %v3378, 0.0
  %v3381 = vadd.f32 %v3359, %v3379
  %v3382 = vadd.f32 %v3360, %v3380
  %3383 = vrot.lane.b32.xlu0 %v3311, 1
  %v3384 = vpop.permute.xlu0 %3383
  %3385 = vrot.lane.b32.xlu0 %v3312, 1
  %v3386 = vpop.permute.xlu0 %3385
  %v3387 = vsel %vm2362, %v3384, %v3386
  %v3388 = vsel %vm2362, %v3386, %v3384
  %3389 = vrot.lane.b32.xlu0 %v3325, 1
  %v3390 = vpop.permute.xlu0 %3389
  %3391 = vrot.lane.b32.xlu0 %v3338, 1
  %v3392 = vpop.permute.xlu0 %3391
  %v3393 = vsel %vm2362, %v3390, %v3392
  %v3394 = vsel %vm2362, %v3392, %v3390
  %v3395 = vmul.f32 %v2381, %v3388
  %v3396 = vmul.f32 %v2381, %v3387
  %v3397 = vmul.f32 %v2387, %v3394
  %v3398 = vmul.f32 %v2387, %v3393
  %v3399 = vadd.f32 %v3395, %v3397
  %v3400 = vadd.f32 %v3396, %v3398
  %v3401 = vsel %vm2377, %v3399, 0.0
  %v3402 = vsel %vm2378, %v3400, 0.0
  %v3403 = vadd.f32 %v3381, %v3401
  %v3404 = vadd.f32 %v3382, %v3402
  %v3405 = vmul.f32 %v2399, %v3311
  %v3406 = vmul.f32 %v2399, %v3312
  %v3407 = vadd.f32 %v3403, %v3405
  %v3408 = vadd.f32 %v3404, %v3406
  %v3409 = vmul.f32 %v2407, %v3325
  %v3410 = vmul.f32 %v2407, %v3338
  %v3411 = vadd.f32 %v3407, %v3409
  %v3412 = vadd.f32 %v3408, %v3410
  %3413 = vrot.lane.b32.xlu0 %v3311, 127
  %v3414 = vpop.permute.xlu0 %3413
  %3415 = vrot.lane.b32.xlu0 %v3312, 127
  %v3416 = vpop.permute.xlu0 %3415
  %v3417 = vsel %vm2417, %v3414, %v3416
  %v3418 = vsel %vm2417, %v3416, %v3414
  %3419 = vrot.lane.b32.xlu0 %v3325, 127
  %v3420 = vpop.permute.xlu0 %3419
  %3421 = vrot.lane.b32.xlu0 %v3338, 127
  %v3422 = vpop.permute.xlu0 %3421
  %v3423 = vsel %vm2417, %v3420, %v3422
  %v3424 = vsel %vm2417, %v3422, %v3420
  %v3425 = vmul.f32 %v2436, %v3417
  %v3426 = vmul.f32 %v2436, %v3418
  %v3427 = vmul.f32 %v2442, %v3423
  %v3428 = vmul.f32 %v2442, %v3424
  %v3429 = vadd.f32 %v3425, %v3427
  %v3430 = vadd.f32 %v3426, %v3428
  %v3431 = vsel %vm2432, %v3429, 0.0
  %v3432 = vsel %vm2433, %v3430, 0.0
  %v3433 = vadd.f32 %v3411, %v3431
  %v3434 = vadd.f32 %v3412, %v3432
  %3435 = vrot.lane.b32.xlu0 %v3311, 126
  %v3436 = vpop.permute.xlu0 %3435
  %3437 = vrot.lane.b32.xlu0 %v3312, 126
  %v3438 = vpop.permute.xlu0 %3437
  %v3439 = vsel %vm2456, %v3436, %v3438
  %v3440 = vsel %vm2456, %v3438, %v3436
  %3441 = vrot.lane.b32.xlu0 %v3325, 126
  %v3442 = vpop.permute.xlu0 %3441
  %3443 = vrot.lane.b32.xlu0 %v3338, 126
  %v3444 = vpop.permute.xlu0 %3443
  %v3445 = vsel %vm2456, %v3442, %v3444
  %v3446 = vsel %vm2456, %v3444, %v3442
  %v3447 = vmul.f32 %v2475, %v3439
  %v3448 = vmul.f32 %v2475, %v3440
  %v3449 = vmul.f32 %v2481, %v3445
  %v3450 = vmul.f32 %v2481, %v3446
  %v3451 = vadd.f32 %v3447, %v3449
  %v3452 = vadd.f32 %v3448, %v3450
  %v3453 = vsel %vm2471, %v3451, 0.0
  %v3454 = vsel %vm2472, %v3452, 0.0
  %v3455 = vadd.f32 %v3433, %v3453
  %v3456 = vadd.f32 %v3434, %v3454
  %3457 = vrot.lane.b32.xlu0 %v3311, 125
  %v3458 = vpop.permute.xlu0 %3457
  %3459 = vrot.lane.b32.xlu0 %v3312, 125
  %v3460 = vpop.permute.xlu0 %3459
  %v3461 = vsel %vm2495, %v3458, %v3460
  %v3462 = vsel %vm2495, %v3460, %v3458
  %3463 = vrot.lane.b32.xlu0 %v3325, 125
  %v3464 = vpop.permute.xlu0 %3463
  %3465 = vrot.lane.b32.xlu0 %v3338, 125
  %v3466 = vpop.permute.xlu0 %3465
  %v3467 = vsel %vm2495, %v3464, %v3466
  %v3468 = vsel %vm2495, %v3466, %v3464
  %v3469 = vmul.f32 %v2514, %v3461
  %v3470 = vmul.f32 %v2514, %v3462
  %v3471 = vmul.f32 %v2520, %v3467
  %v3472 = vmul.f32 %v2520, %v3468
  %v3473 = vadd.f32 %v3469, %v3471
  %v3474 = vadd.f32 %v3470, %v3472
  %v3475 = vsel %vm2510, %v3473, 0.0
  %v3476 = vsel %vm2511, %v3474, 0.0
  %v3477 = vadd.f32 %v3455, %v3475
  %v3478 = vadd.f32 %v3456, %v3476
  %v3479 = vxor.u32 %v3477, 2147483648
  %v3480 = vxor.u32 %v3478, 2147483648
  %v3481 = vmul.f32 %v3479, 1.442695
  %v3482 = vpow.pop %v3481
  %v3483 = vmul.f32 %v3480, 1.442695
  %v3484 = vpow.pop %v3483
  %v3485 = vadd.f32 %v3482, 1.0
  %v3486 = vadd.f32 %v3484, 1.0
  %v3487 = vrcp.pop %v3485
  %v3488 = vmul.f32 1.0, %v3487
  %v3489 = vrcp.pop %v3486
  %v3490 = vmul.f32 1.0, %v3489
  %v3491 = vlaneseq
  %v3492 = vshrl.u32 %v3491, 7
  %v3493 = vsub.s32 0, %v3492
  %v3494 = vrot.slane %v3488, %v3493
  %v3495 = vlaneseq
  %v3496 = vshrl.u32 %v3495, 7
  %v3497 = vsub.s32 0, %v3496
  %v3498 = vrot.slane %v3490, %v3497
  %v3499 = vmul.f32 %v3269, %v3494
  %v3500 = vmul.f32 %v3270, %v3498
  %v3501 = vmul.f32 %v3271, %v3494
  %v3502 = vmul.f32 %v3272, %v3498
  %v3503 = vmul.f32 %v3273, %v3494
  %v3504 = vmul.f32 %v3274, %v3498
  %v3505 = vmul.f32 %v3275, %v3494
  %v3506 = vmul.f32 %v3276, %v3498
  %v3507 = vmul.f32 %v3277, %v3494
  %v3508 = vmul.f32 %v3278, %v3498
  %v3509 = vmul.f32 %v3279, %v3494
  %v3510 = vmul.f32 %v3280, %v3498
  %v3511 = vmul.f32 %v3281, %v3494
  %v3512 = vmul.f32 %v3282, %v3498
  %v3513 = vmul.f32 %v3283, %v3494
  %v3514 = vmul.f32 %v3284, %v3498
  %3515 = vrot.lane.b32.xlu0 %v3499, 64
  %v3516 = vpop.permute.xlu0 %3515
  %3517 = vrot.lane.b32.xlu0 %v3501, 64
  %v3518 = vpop.permute.xlu0 %3517
  %3519 = vrot.lane.b32.xlu0 %v3503, 64
  %v3520 = vpop.permute.xlu0 %3519
  %3521 = vrot.lane.b32.xlu0 %v3505, 64
  %v3522 = vpop.permute.xlu0 %3521
  %3523 = vrot.lane.b32.xlu0 %v3507, 64
  %v3524 = vpop.permute.xlu0 %3523
  %3525 = vrot.lane.b32.xlu0 %v3509, 64
  %v3526 = vpop.permute.xlu0 %3525
  %3527 = vrot.lane.b32.xlu0 %v3511, 64
  %v3528 = vpop.permute.xlu0 %3527
  %3529 = vrot.lane.b32.xlu0 %v3513, 64
  %v3530 = vpop.permute.xlu0 %3529
  %3531 = vrot.lane.b32.xlu0 %v3500, 64
  %v3532 = vpop.permute.xlu0 %3531
  %3533 = vrot.lane.b32.xlu0 %v3502, 64
  %v3534 = vpop.permute.xlu0 %3533
  %3535 = vrot.lane.b32.xlu0 %v3504, 64
  %v3536 = vpop.permute.xlu0 %3535
  %3537 = vrot.lane.b32.xlu0 %v3506, 64
  %v3538 = vpop.permute.xlu0 %3537
  %3539 = vrot.lane.b32.xlu0 %v3508, 64
  %v3540 = vpop.permute.xlu0 %3539
  %3541 = vrot.lane.b32.xlu0 %v3510, 64
  %v3542 = vpop.permute.xlu0 %3541
  %3543 = vrot.lane.b32.xlu0 %v3512, 64
  %v3544 = vpop.permute.xlu0 %3543
  %3545 = vrot.lane.b32.xlu0 %v3514, 64
  %v3546 = vpop.permute.xlu0 %3545
  %v3547 = vsel %vm2598, %v3516, %v3532
  %v3548 = vsel %vm2598, %v3518, %v3534
  %v3549 = vsel %vm2598, %v3520, %v3536
  %v3550 = vsel %vm2598, %v3522, %v3538
  %v3551 = vsel %vm2598, %v3524, %v3540
  %v3552 = vsel %vm2598, %v3526, %v3542
  %v3553 = vsel %vm2598, %v3528, %v3544
  %v3554 = vsel %vm2598, %v3530, %v3546
  %v3555 = vsel %vm2598, %v3532, %v3516
  %v3556 = vsel %vm2598, %v3534, %v3518
  %v3557 = vsel %vm2598, %v3536, %v3520
  %v3558 = vsel %vm2598, %v3538, %v3522
  %v3559 = vsel %vm2598, %v3540, %v3524
  %v3560 = vsel %vm2598, %v3542, %v3526
  %v3561 = vsel %vm2598, %v3544, %v3528
  %v3562 = vsel %vm2598, %v3546, %v3530
  %v3563 = vadd.f32 %v3499, %v3547
  %v3564 = vadd.f32 %v3500, %v3555
  %v3565 = vadd.f32 %v3501, %v3548
  %v3566 = vadd.f32 %v3502, %v3556
  %v3567 = vadd.f32 %v3503, %v3549
  %v3568 = vadd.f32 %v3504, %v3557
  %v3569 = vadd.f32 %v3505, %v3550
  %v3570 = vadd.f32 %v3506, %v3558
  %v3571 = vadd.f32 %v3507, %v3551
  %v3572 = vadd.f32 %v3508, %v3559
  %v3573 = vadd.f32 %v3509, %v3552
  %v3574 = vadd.f32 %v3510, %v3560
  %v3575 = vadd.f32 %v3511, %v3553
  %v3576 = vadd.f32 %v3512, %v3561
  %v3577 = vadd.f32 %v3513, %v3554
  %v3578 = vadd.f32 %v3514, %v3562
  %3579 = vrot.lane.b32.xlu0 %v3563, 96
  %v3580 = vpop.permute.xlu0 %3579
  %3581 = vrot.lane.b32.xlu0 %v3565, 96
  %v3582 = vpop.permute.xlu0 %3581
  %3583 = vrot.lane.b32.xlu0 %v3567, 96
  %v3584 = vpop.permute.xlu0 %3583
  %3585 = vrot.lane.b32.xlu0 %v3569, 96
  %v3586 = vpop.permute.xlu0 %3585
  %3587 = vrot.lane.b32.xlu0 %v3571, 96
  %v3588 = vpop.permute.xlu0 %3587
  %3589 = vrot.lane.b32.xlu0 %v3573, 96
  %v3590 = vpop.permute.xlu0 %3589
  %3591 = vrot.lane.b32.xlu0 %v3575, 96
  %v3592 = vpop.permute.xlu0 %3591
  %3593 = vrot.lane.b32.xlu0 %v3577, 96
  %v3594 = vpop.permute.xlu0 %3593
  %3595 = vrot.lane.b32.xlu0 %v3564, 96
  %v3596 = vpop.permute.xlu0 %3595
  %3597 = vrot.lane.b32.xlu0 %v3566, 96
  %v3598 = vpop.permute.xlu0 %3597
  %3599 = vrot.lane.b32.xlu0 %v3568, 96
  %v3600 = vpop.permute.xlu0 %3599
  %3601 = vrot.lane.b32.xlu0 %v3570, 96
  %v3602 = vpop.permute.xlu0 %3601
  %3603 = vrot.lane.b32.xlu0 %v3572, 96
  %v3604 = vpop.permute.xlu0 %3603
  %3605 = vrot.lane.b32.xlu0 %v3574, 96
  %v3606 = vpop.permute.xlu0 %3605
  %3607 = vrot.lane.b32.xlu0 %v3576, 96
  %v3608 = vpop.permute.xlu0 %3607
  %3609 = vrot.lane.b32.xlu0 %v3578, 96
  %v3610 = vpop.permute.xlu0 %3609
  %v3611 = vsel %vm2663, %v3580, %v3596
  %v3612 = vsel %vm2663, %v3582, %v3598
  %v3613 = vsel %vm2663, %v3584, %v3600
  %v3614 = vsel %vm2663, %v3586, %v3602
  %v3615 = vsel %vm2663, %v3588, %v3604
  %v3616 = vsel %vm2663, %v3590, %v3606
  %v3617 = vsel %vm2663, %v3592, %v3608
  %v3618 = vsel %vm2663, %v3594, %v3610
  %v3619 = vsel %vm2663, %v3596, %v3580
  %v3620 = vsel %vm2663, %v3598, %v3582
  %v3621 = vsel %vm2663, %v3600, %v3584
  %v3622 = vsel %vm2663, %v3602, %v3586
  %v3623 = vsel %vm2663, %v3604, %v3588
  %v3624 = vsel %vm2663, %v3606, %v3590
  %v3625 = vsel %vm2663, %v3608, %v3592
  %v3626 = vsel %vm2663, %v3610, %v3594
  %v3627 = vadd.f32 %v3563, %v3611
  %v3628 = vadd.f32 %v3564, %v3619
  %v3629 = vadd.f32 %v3565, %v3612
  %v3630 = vadd.f32 %v3566, %v3620
  %v3631 = vadd.f32 %v3567, %v3613
  %v3632 = vadd.f32 %v3568, %v3621
  %v3633 = vadd.f32 %v3569, %v3614
  %v3634 = vadd.f32 %v3570, %v3622
  %v3635 = vadd.f32 %v3571, %v3615
  %v3636 = vadd.f32 %v3572, %v3623
  %v3637 = vadd.f32 %v3573, %v3616
  %v3638 = vadd.f32 %v3574, %v3624
  %v3639 = vadd.f32 %v3575, %v3617
  %v3640 = vadd.f32 %v3576, %v3625
  %v3641 = vadd.f32 %v3577, %v3618
  %v3642 = vadd.f32 %v3578, %v3626
  %3643 = vrot.lane.b32.xlu0 %v3627, 112
  %v3644 = vpop.permute.xlu0 %3643
  %3645 = vrot.lane.b32.xlu0 %v3629, 112
  %v3646 = vpop.permute.xlu0 %3645
  %3647 = vrot.lane.b32.xlu0 %v3631, 112
  %v3648 = vpop.permute.xlu0 %3647
  %3649 = vrot.lane.b32.xlu0 %v3633, 112
  %v3650 = vpop.permute.xlu0 %3649
  %3651 = vrot.lane.b32.xlu0 %v3635, 112
  %v3652 = vpop.permute.xlu0 %3651
  %3653 = vrot.lane.b32.xlu0 %v3637, 112
  %v3654 = vpop.permute.xlu0 %3653
  %3655 = vrot.lane.b32.xlu0 %v3639, 112
  %v3656 = vpop.permute.xlu0 %3655
  %3657 = vrot.lane.b32.xlu0 %v3641, 112
  %v3658 = vpop.permute.xlu0 %3657
  %3659 = vrot.lane.b32.xlu0 %v3628, 112
  %v3660 = vpop.permute.xlu0 %3659
  %3661 = vrot.lane.b32.xlu0 %v3630, 112
  %v3662 = vpop.permute.xlu0 %3661
  %3663 = vrot.lane.b32.xlu0 %v3632, 112
  %v3664 = vpop.permute.xlu0 %3663
  %3665 = vrot.lane.b32.xlu0 %v3634, 112
  %v3666 = vpop.permute.xlu0 %3665
  %3667 = vrot.lane.b32.xlu0 %v3636, 112
  %v3668 = vpop.permute.xlu0 %3667
  %3669 = vrot.lane.b32.xlu0 %v3638, 112
  %v3670 = vpop.permute.xlu0 %3669
  %3671 = vrot.lane.b32.xlu0 %v3640, 112
  %v3672 = vpop.permute.xlu0 %3671
  %3673 = vrot.lane.b32.xlu0 %v3642, 112
  %v3674 = vpop.permute.xlu0 %3673
  %v3675 = vsel %vm2728, %v3644, %v3660
  %v3676 = vsel %vm2728, %v3646, %v3662
  %v3677 = vsel %vm2728, %v3648, %v3664
  %v3678 = vsel %vm2728, %v3650, %v3666
  %v3679 = vsel %vm2728, %v3652, %v3668
  %v3680 = vsel %vm2728, %v3654, %v3670
  %v3681 = vsel %vm2728, %v3656, %v3672
  %v3682 = vsel %vm2728, %v3658, %v3674
  %v3683 = vsel %vm2728, %v3660, %v3644
  %v3684 = vsel %vm2728, %v3662, %v3646
  %v3685 = vsel %vm2728, %v3664, %v3648
  %v3686 = vsel %vm2728, %v3666, %v3650
  %v3687 = vsel %vm2728, %v3668, %v3652
  %v3688 = vsel %vm2728, %v3670, %v3654
  %v3689 = vsel %vm2728, %v3672, %v3656
  %v3690 = vsel %vm2728, %v3674, %v3658
  %v3691 = vadd.f32 %v3627, %v3675
  %v3692 = vadd.f32 %v3628, %v3683
  %v3693 = vadd.f32 %v3629, %v3676
  %v3694 = vadd.f32 %v3630, %v3684
  %v3695 = vadd.f32 %v3631, %v3677
  %v3696 = vadd.f32 %v3632, %v3685
  %v3697 = vadd.f32 %v3633, %v3678
  %v3698 = vadd.f32 %v3634, %v3686
  %v3699 = vadd.f32 %v3635, %v3679
  %v3700 = vadd.f32 %v3636, %v3687
  %v3701 = vadd.f32 %v3637, %v3680
  %v3702 = vadd.f32 %v3638, %v3688
  %v3703 = vadd.f32 %v3639, %v3681
  %v3704 = vadd.f32 %v3640, %v3689
  %v3705 = vadd.f32 %v3641, %v3682
  %v3706 = vadd.f32 %v3642, %v3690
  %3707 = vrot.lane.b32.xlu0 %v3691, 120
  %v3708 = vpop.permute.xlu0 %3707
  %3709 = vrot.lane.b32.xlu0 %v3693, 120
  %v3710 = vpop.permute.xlu0 %3709
  %3711 = vrot.lane.b32.xlu0 %v3695, 120
  %v3712 = vpop.permute.xlu0 %3711
  %3713 = vrot.lane.b32.xlu0 %v3697, 120
  %v3714 = vpop.permute.xlu0 %3713
  %3715 = vrot.lane.b32.xlu0 %v3699, 120
  %v3716 = vpop.permute.xlu0 %3715
  %3717 = vrot.lane.b32.xlu0 %v3701, 120
  %v3718 = vpop.permute.xlu0 %3717
  %3719 = vrot.lane.b32.xlu0 %v3703, 120
  %v3720 = vpop.permute.xlu0 %3719
  %3721 = vrot.lane.b32.xlu0 %v3705, 120
  %v3722 = vpop.permute.xlu0 %3721
  %3723 = vrot.lane.b32.xlu0 %v3692, 120
  %v3724 = vpop.permute.xlu0 %3723
  %3725 = vrot.lane.b32.xlu0 %v3694, 120
  %v3726 = vpop.permute.xlu0 %3725
  %3727 = vrot.lane.b32.xlu0 %v3696, 120
  %v3728 = vpop.permute.xlu0 %3727
  %3729 = vrot.lane.b32.xlu0 %v3698, 120
  %v3730 = vpop.permute.xlu0 %3729
  %3731 = vrot.lane.b32.xlu0 %v3700, 120
  %v3732 = vpop.permute.xlu0 %3731
  %3733 = vrot.lane.b32.xlu0 %v3702, 120
  %v3734 = vpop.permute.xlu0 %3733
  %3735 = vrot.lane.b32.xlu0 %v3704, 120
  %v3736 = vpop.permute.xlu0 %3735
  %3737 = vrot.lane.b32.xlu0 %v3706, 120
  %v3738 = vpop.permute.xlu0 %3737
  %v3739 = vsel %vm2793, %v3708, %v3724
  %v3740 = vsel %vm2793, %v3710, %v3726
  %v3741 = vsel %vm2793, %v3712, %v3728
  %v3742 = vsel %vm2793, %v3714, %v3730
  %v3743 = vsel %vm2793, %v3716, %v3732
  %v3744 = vsel %vm2793, %v3718, %v3734
  %v3745 = vsel %vm2793, %v3720, %v3736
  %v3746 = vsel %vm2793, %v3722, %v3738
  %v3747 = vsel %vm2793, %v3724, %v3708
  %v3748 = vsel %vm2793, %v3726, %v3710
  %v3749 = vsel %vm2793, %v3728, %v3712
  %v3750 = vsel %vm2793, %v3730, %v3714
  %v3751 = vsel %vm2793, %v3732, %v3716
  %v3752 = vsel %vm2793, %v3734, %v3718
  %v3753 = vsel %vm2793, %v3736, %v3720
  %v3754 = vsel %vm2793, %v3738, %v3722
  %v3755 = vadd.f32 %v3691, %v3739
  %v3756 = vadd.f32 %v3692, %v3747
  %v3757 = vadd.f32 %v3693, %v3740
  %v3758 = vadd.f32 %v3694, %v3748
  %v3759 = vadd.f32 %v3695, %v3741
  %v3760 = vadd.f32 %v3696, %v3749
  %v3761 = vadd.f32 %v3697, %v3742
  %v3762 = vadd.f32 %v3698, %v3750
  %v3763 = vadd.f32 %v3699, %v3743
  %v3764 = vadd.f32 %v3700, %v3751
  %v3765 = vadd.f32 %v3701, %v3744
  %v3766 = vadd.f32 %v3702, %v3752
  %v3767 = vadd.f32 %v3703, %v3745
  %v3768 = vadd.f32 %v3704, %v3753
  %v3769 = vadd.f32 %v3705, %v3746
  %v3770 = vadd.f32 %v3706, %v3754
  %v3771 = vld [vmem:[%s1 + $0x100] sm:$0xff]
  %v3772 = vld [vmem:[%s1 + $0x108] sm:$0xff]
  %v3773 = vld [vmem:[%s1 + $0x110] sm:$0xff]
  %v3774 = vld [vmem:[%s1 + $0x118] sm:$0xff]
  %v3775 = vld [vmem:[%s1 + $0x120] sm:$0xff]
  %v3776 = vld [vmem:[%s1 + $0x128] sm:$0xff]
  %v3777 = vld [vmem:[%s1 + $0x130] sm:$0xff]
  %v3778 = vld [vmem:[%s1 + $0x138] sm:$0xff]
  %v3779 = vld [vmem:[%s1 + $0x140] sm:$0xff]
  %v3780 = vld [vmem:[%s1 + $0x148] sm:$0xff]
  %v3781 = vld [vmem:[%s1 + $0x150] sm:$0xff]
  %v3782 = vld [vmem:[%s1 + $0x158] sm:$0xff]
  %v3783 = vld [vmem:[%s1 + $0x160] sm:$0xff]
  %v3784 = vld [vmem:[%s1 + $0x168] sm:$0xff]
  %v3785 = vld [vmem:[%s1 + $0x170] sm:$0xff]
  %v3786 = vld [vmem:[%s1 + $0x178] sm:$0xff]
  %v3788 = vsel %vm1804, %v3779, 0
  %v3791 = vsel %vm1804, %v3780, 0
  %v3794 = vsel %vm1804, %v3781, 0
  %v3797 = vsel %vm1804, %v3782, 0
  %v3800 = vsel %vm1804, %v3783, 0
  %v3803 = vsel %vm1804, %v3784, 0
  %v3806 = vsel %vm1804, %v3785, 0
  %v3809 = vsel %vm1804, %v3786, 0
  %3811 = vmatprep.subr.mxu0 %v3756
  %3812 = vmatpush1.msra.mxu0 %v3755
  %3813 = vmatprep.subr.mxu0 %v3758
  %3814 = vmatpush1.msra.mxu0 %v3757
  %3815 = vmatprep.subr.mxu0 %v3760
  %3816 = vmatpush1.msra.mxu0 %v3759
  %3817 = vmatprep.subr.mxu0 %v3762
  %3818 = vmatpush1.msra.mxu0 %v3761
  %3819 = vmatprep.subr.mxu0 %v3764
  %3820 = vmatpush1.msra.mxu0 %v3763
  %3821 = vmatprep.subr.mxu0 %v3766
  %3822 = vmatpush1.msra.mxu0 %v3765
  %3823 = vmatprep.subr.mxu0 %v3768
  %3824 = vmatpush1.msra.mxu0 %v3767
  %3825 = vmatprep.subr.mxu0 %v3770
  %3826 = vmatpush1.msra.mxu0 %v3769
  %3827 = vmatprep.subr.mxu0 0.0
  %3828 = vmatpush1.msra.mxu0 0.0
  %3829 = vmatprep.subr.mxu0 0.0
  %3830 = vmatpush1.msra.mxu0 0.0
  %3831 = vmatprep.subr.mxu0 0.0
  %3832 = vmatpush1.msra.mxu0 0.0
  %3833 = vmatprep.subr.mxu0 0.0
  %3834 = vmatpush1.msra.mxu0 0.0
  %3835 = vmatprep.subr.mxu0 0.0
  %3836 = vmatpush1.msra.mxu0 0.0
  %3837 = vmatprep.subr.mxu0 0.0
  %3838 = vmatpush1.msra.mxu0 0.0
  %3839 = vmatprep.subr.mxu0 0.0
  %3840 = vmatpush1.msra.mxu0 0.0
  %3841 = vmatprep.subr.mxu0 0.0
  %3842 = vmatpush1.msra.mxu0 0.0
  %3843 = vmatprep.subr.mxu0 0.0
  %3844 = vmatpush1.msra.mxu0 0.0
  %3845 = vmatprep.subr.mxu0 0.0
  %3846 = vmatpush1.msra.mxu0 0.0
  %3847 = vmatprep.subr.mxu0 0.0
  %3848 = vmatpush1.msra.mxu0 0.0
  %3849 = vmatprep.subr.mxu0 0.0
  %3850 = vmatpush1.msra.mxu0 0.0
  %3851 = vmatprep.subr.mxu0 0.0
  %3852 = vmatpush1.msra.mxu0 0.0
  %3853 = vmatprep.subr.mxu0 0.0
  %3854 = vmatpush1.msra.mxu0 0.0
  %3855 = vmatprep.subr.mxu0 0.0
  %3856 = vmatpush1.msra.mxu0 0.0
  %3857 = vmatprep.subr.mxu0 0.0
  %3858 = vmatpush1.msra.mxu0 0.0
  %3859 = vmatprep.subr.mxu0 0.0
  %3860 = vmatpush1.msra.mxu0 0.0
  %3861 = vmatprep.subr.mxu0 0.0
  %3862 = vmatpush1.msra.mxu0 0.0
  %3863 = vmatprep.subr.mxu0 0.0
  %3864 = vmatpush1.msra.mxu0 0.0
  %3865 = vmatprep.subr.mxu0 0.0
  %3866 = vmatpush1.msra.mxu0 0.0
  %3867 = vmatprep.subr.mxu0 0.0
  %3868 = vmatpush1.msra.mxu0 0.0
  %3869 = vmatprep.subr.mxu0 0.0
  %3870 = vmatpush1.msra.mxu0 0.0
  %3871 = vmatprep.subr.mxu0 0.0
  %3872 = vmatpush1.msra.mxu0 0.0
  %3873 = vmatprep.subr.mxu0 0.0
  %3874 = vmatpush1.msra.mxu0 0.0
  %3875 = vmatprep.mubr.f32.mxu0 0.0
  %3876 = vmatmul.mubr.f32.gmra.mrb[0].mxu0 %v3788
  %v3877 = vpop.f32.mrb[0].mxu0
  %v3878 = vadd.f32 0.0, %v3877
  %v3879 = vpop.f32.mrb[0].mxu0
  %v3880 = vadd.f32 0.0, %v3879
  %3881 = vmatprep.mubr.f32.mxu0 0.0
  %3882 = vmatmul.mubr.f32.gmra.mrb[0].mxu0 %v3791
  %v3883 = vpop.f32.mrb[0].mxu0
  %v3884 = vadd.f32 0.0, %v3883
  %v3885 = vpop.f32.mrb[0].mxu0
  %v3886 = vadd.f32 0.0, %v3885
  %3887 = vmatprep.mubr.f32.mxu0 0.0
  %3888 = vmatmul.mubr.f32.gmra.mrb[0].mxu0 %v3794
  %v3889 = vpop.f32.mrb[0].mxu0
  %v3890 = vadd.f32 0.0, %v3889
  %v3891 = vpop.f32.mrb[0].mxu0
  %v3892 = vadd.f32 0.0, %v3891
  %3893 = vmatprep.mubr.f32.mxu0 0.0
  %3894 = vmatmul.mubr.f32.gmra.mrb[0].mxu0 %v3797
  %v3895 = vpop.f32.mrb[0].mxu0
  %v3896 = vadd.f32 0.0, %v3895
  %v3897 = vpop.f32.mrb[0].mxu0
  %v3898 = vadd.f32 0.0, %v3897
  %3899 = vmatprep.mubr.f32.mxu0 0.0
  %3900 = vmatmul.mubr.f32.gmra.mrb[0].mxu0 %v3800
  %v3901 = vpop.f32.mrb[0].mxu0
  %v3902 = vadd.f32 0.0, %v3901
  %v3903 = vpop.f32.mrb[0].mxu0
  %v3904 = vadd.f32 0.0, %v3903
  %3905 = vmatprep.mubr.f32.mxu0 0.0
  %3906 = vmatmul.mubr.f32.gmra.mrb[0].mxu0 %v3803
  %v3907 = vpop.f32.mrb[0].mxu0
  %v3908 = vadd.f32 0.0, %v3907
  %v3909 = vpop.f32.mrb[0].mxu0
  %v3910 = vadd.f32 0.0, %v3909
  %3911 = vmatprep.mubr.f32.mxu0 0.0
  %3912 = vmatmul.mubr.f32.gmra.mrb[0].mxu0 %v3806
  %v3913 = vpop.f32.mrb[0].mxu0
  %v3914 = vadd.f32 0.0, %v3913
  %v3915 = vpop.f32.mrb[0].mxu0
  %v3916 = vadd.f32 0.0, %v3915
  %3917 = vmatprep.mubr.f32.mxu0 0.0
  %3918 = vmatmul.mubr.f32.gmra.mrb[0].mxu0 %v3809
  %v3919 = vpop.f32.mrb[0].mxu0
  %v3920 = vadd.f32 0.0, %v3919
  %v3921 = vpop.f32.mrb[0].mxu0
  %v3922 = vadd.f32 0.0, %v3921
  %3923 = vdwg.mxu0
  %v3925 = vsel %vm1804, %v3771, 0
  %v3928 = vsel %vm1804, %v3772, 0
  %v3931 = vsel %vm1804, %v3773, 0
  %v3934 = vsel %vm1804, %v3774, 0
  %v3937 = vsel %vm1804, %v3775, 0
  %v3940 = vsel %vm1804, %v3776, 0
  %v3943 = vsel %vm1804, %v3777, 0
  %v3946 = vsel %vm1804, %v3778, 0
  %3948 = vmatprep.subr.mxu0 %v2811
  %3949 = vmatpush1.msra.mxu0 %v2810
  %3950 = vmatprep.subr.mxu0 %v2813
  %3951 = vmatpush1.msra.mxu0 %v2812
  %3952 = vmatprep.subr.mxu0 %v2815
  %3953 = vmatpush1.msra.mxu0 %v2814
  %3954 = vmatprep.subr.mxu0 %v2817
  %3955 = vmatpush1.msra.mxu0 %v2816
  %3956 = vmatprep.subr.mxu0 %v2819
  %3957 = vmatpush1.msra.mxu0 %v2818
  %3958 = vmatprep.subr.mxu0 %v2821
  %3959 = vmatpush1.msra.mxu0 %v2820
  %3960 = vmatprep.subr.mxu0 %v2823
  %3961 = vmatpush1.msra.mxu0 %v2822
  %3962 = vmatprep.subr.mxu0 %v2825
  %3963 = vmatpush1.msra.mxu0 %v2824
  %3964 = vmatprep.subr.mxu0 0.0
  %3965 = vmatpush1.msra.mxu0 0.0
  %3966 = vmatprep.subr.mxu0 0.0
  %3967 = vmatpush1.msra.mxu0 0.0
  %3968 = vmatprep.subr.mxu0 0.0
  %3969 = vmatpush1.msra.mxu0 0.0
  %3970 = vmatprep.subr.mxu0 0.0
  %3971 = vmatpush1.msra.mxu0 0.0
  %3972 = vmatprep.subr.mxu0 0.0
  %3973 = vmatpush1.msra.mxu0 0.0
  %3974 = vmatprep.subr.mxu0 0.0
  %3975 = vmatpush1.msra.mxu0 0.0
  %3976 = vmatprep.subr.mxu0 0.0
  %3977 = vmatpush1.msra.mxu0 0.0
  %3978 = vmatprep.subr.mxu0 0.0
  %3979 = vmatpush1.msra.mxu0 0.0
  %3980 = vmatprep.subr.mxu0 0.0
  %3981 = vmatpush1.msra.mxu0 0.0
  %3982 = vmatprep.subr.mxu0 0.0
  %3983 = vmatpush1.msra.mxu0 0.0
  %3984 = vmatprep.subr.mxu0 0.0
  %3985 = vmatpush1.msra.mxu0 0.0
  %3986 = vmatprep.subr.mxu0 0.0
  %3987 = vmatpush1.msra.mxu0 0.0
  %3988 = vmatprep.subr.mxu0 0.0
  %3989 = vmatpush1.msra.mxu0 0.0
  %3990 = vmatprep.subr.mxu0 0.0
  %3991 = vmatpush1.msra.mxu0 0.0
  %3992 = vmatprep.subr.mxu0 0.0
  %3993 = vmatpush1.msra.mxu0 0.0
  %3994 = vmatprep.subr.mxu0 0.0
  %3995 = vmatpush1.msra.mxu0 0.0
  %3996 = vmatprep.subr.mxu0 0.0
  %3997 = vmatpush1.msra.mxu0 0.0
  %3998 = vmatprep.subr.mxu0 0.0
  %3999 = vmatpush1.msra.mxu0 0.0
  %4000 = vmatprep.subr.mxu0 0.0
  %4001 = vmatpush1.msra.mxu0 0.0
  %4002 = vmatprep.subr.mxu0 0.0
  %4003 = vmatpush1.msra.mxu0 0.0
  %4004 = vmatprep.subr.mxu0 0.0
  %4005 = vmatpush1.msra.mxu0 0.0
  %4006 = vmatprep.subr.mxu0 0.0
  %4007 = vmatpush1.msra.mxu0 0.0
  %4008 = vmatprep.subr.mxu0 0.0
  %4009 = vmatpush1.msra.mxu0 0.0
  %4010 = vmatprep.subr.mxu0 0.0
  %4011 = vmatpush1.msra.mxu0 0.0
  %4012 = vmatprep.mubr.f32.mxu0 0.0
  %4013 = vmatmul.mubr.f32.gmra.mrb[0].mxu0 %v3925
  %v4014 = vpop.f32.mrb[0].mxu0
  %v4015 = vadd.f32 %v3878, %v4014
  %v4016 = vpop.f32.mrb[0].mxu0
  %v4017 = vadd.f32 %v3880, %v4016
  %4018 = vmatprep.mubr.f32.mxu0 0.0
  %4019 = vmatmul.mubr.f32.gmra.mrb[0].mxu0 %v3928
  %v4020 = vpop.f32.mrb[0].mxu0
  %v4021 = vadd.f32 %v3884, %v4020
  %v4022 = vpop.f32.mrb[0].mxu0
  %v4023 = vadd.f32 %v3886, %v4022
  %4024 = vmatprep.mubr.f32.mxu0 0.0
  %4025 = vmatmul.mubr.f32.gmra.mrb[0].mxu0 %v3931
  %v4026 = vpop.f32.mrb[0].mxu0
  %v4027 = vadd.f32 %v3890, %v4026
  %v4028 = vpop.f32.mrb[0].mxu0
  %v4029 = vadd.f32 %v3892, %v4028
  %4030 = vmatprep.mubr.f32.mxu0 0.0
  %4031 = vmatmul.mubr.f32.gmra.mrb[0].mxu0 %v3934
  %v4032 = vpop.f32.mrb[0].mxu0
  %v4033 = vadd.f32 %v3896, %v4032
  %v4034 = vpop.f32.mrb[0].mxu0
  %v4035 = vadd.f32 %v3898, %v4034
  %4036 = vmatprep.mubr.f32.mxu0 0.0
  %4037 = vmatmul.mubr.f32.gmra.mrb[0].mxu0 %v3937
  %v4038 = vpop.f32.mrb[0].mxu0
  %v4039 = vadd.f32 %v3902, %v4038
  %v4040 = vpop.f32.mrb[0].mxu0
  %v4041 = vadd.f32 %v3904, %v4040
  %4042 = vmatprep.mubr.f32.mxu0 0.0
  %4043 = vmatmul.mubr.f32.gmra.mrb[0].mxu0 %v3940
  %v4044 = vpop.f32.mrb[0].mxu0
  %v4045 = vadd.f32 %v3908, %v4044
  %v4046 = vpop.f32.mrb[0].mxu0
  %v4047 = vadd.f32 %v3910, %v4046
  %4048 = vmatprep.mubr.f32.mxu0 0.0
  %4049 = vmatmul.mubr.f32.gmra.mrb[0].mxu0 %v3943
  %v4050 = vpop.f32.mrb[0].mxu0
  %v4051 = vadd.f32 %v3914, %v4050
  %v4052 = vpop.f32.mrb[0].mxu0
  %v4053 = vadd.f32 %v3916, %v4052
  %4054 = vmatprep.mubr.f32.mxu0 0.0
  %4055 = vmatmul.mubr.f32.gmra.mrb[0].mxu0 %v3946
  %v4056 = vpop.f32.mrb[0].mxu0
  %v4057 = vadd.f32 %v3920, %v4056
  %v4058 = vpop.f32.mrb[0].mxu0
  %v4059 = vadd.f32 %v3922, %v4058
  %4060 = vdwg.mxu0
  %4061 = vset.pattern.permute.xlu0 64
  %4062 = vperm.xlu0 %4061, %v3771
  %v4063 = vpop.permute.xlu0 %4062
  %4065 = vset.pattern.permute.xlu0 64
  %4066 = vperm.xlu0 %4065, %v3772
  %v4067 = vpop.permute.xlu0 %4066
  %4069 = vset.pattern.permute.xlu0 64
  %4070 = vperm.xlu0 %4069, %v3773
  %v4071 = vpop.permute.xlu0 %4070
  %4073 = vset.pattern.permute.xlu0 64
  %4074 = vperm.xlu0 %4073, %v3774
  %v4075 = vpop.permute.xlu0 %4074
  %4077 = vset.pattern.permute.xlu0 64
  %4078 = vperm.xlu0 %4077, %v3775
  %v4079 = vpop.permute.xlu0 %4078
  %4081 = vset.pattern.permute.xlu0 64
  %4082 = vperm.xlu0 %4081, %v3776
  %v4083 = vpop.permute.xlu0 %4082
  %4085 = vset.pattern.permute.xlu0 64
  %4086 = vperm.xlu0 %4085, %v3777
  %v4087 = vpop.permute.xlu0 %4086
  %4089 = vset.pattern.permute.xlu0 64
  %4090 = vperm.xlu0 %4089, %v3778
  %v4091 = vpop.permute.xlu0 %4090
  %v4093 = vadd.f32 %v4015, %v4063
  %v4094 = vadd.f32 %v4017, %v4063
  %v4095 = vadd.f32 %v4021, %v4067
  %v4096 = vadd.f32 %v4023, %v4067
  %v4097 = vadd.f32 %v4027, %v4071
  %v4098 = vadd.f32 %v4029, %v4071
  %v4099 = vadd.f32 %v4033, %v4075
  %v4100 = vadd.f32 %v4035, %v4075
  %v4101 = vadd.f32 %v4039, %v4079
  %v4102 = vadd.f32 %v4041, %v4079
  %v4103 = vadd.f32 %v4045, %v4083
  %v4104 = vadd.f32 %v4047, %v4083
  %v4105 = vadd.f32 %v4051, %v4087
  %v4106 = vadd.f32 %v4053, %v4087
  %v4107 = vadd.f32 %v4057, %v4091
  %v4108 = vadd.f32 %v4059, %v4091
  %v4109 = vmax.f32 %v4093, 0.0
  %v4110 = vmax.f32 %v4094, 0.0
  %v4111 = vmax.f32 %v4095, 0.0
  %v4112 = vmax.f32 %v4096, 0.0
  %v4113 = vmax.f32 %v4097, 0.0
  %v4114 = vmax.f32 %v4098, 0.0
  %v4115 = vmax.f32 %v4099, 0.0
  %v4116 = vmax.f32 %v4100, 0.0
  %v4117 = vmax.f32 %v4101, 0.0
  %v4118 = vmax.f32 %v4102, 0.0
  %v4119 = vmax.f32 %v4103, 0.0
  %v4120 = vmax.f32 %v4104, 0.0
  %v4121 = vmax.f32 %v4105, 0.0
  %v4122 = vmax.f32 %v4106, 0.0
  %v4123 = vmax.f32 %v4107, 0.0
  %v4124 = vmax.f32 %v4108, 0.0
  %vm4125 = vcmask 64512
  %4126 = vst.msk [vmem:[%s2] sm:$0xff] %vm4125, %v4109
  %4127 = vst.msk [vmem:[%s2 + $0x8] sm:$0xff] %vm4125, %v4111
  %4128 = vst.msk [vmem:[%s2 + $0x10] sm:$0xff] %vm4125, %v4113
  %4129 = vst.msk [vmem:[%s2 + $0x18] sm:$0xff] %vm4125, %v4115
  %4130 = vst.msk [vmem:[%s2 + $0x20] sm:$0xff] %vm4125, %v4117
  %4131 = vst.msk [vmem:[%s2 + $0x28] sm:$0xff] %vm4125, %v4119
  %4132 = vst.msk [vmem:[%s2 + $0x30] sm:$0xff] %vm4125, %v4121
  %4133 = vst.msk [vmem:[%s2 + $0x38] sm:$0xff] %vm4125, %v4123
  %s4134 = scalar_lea.vmem %s2, 64
  %4135 = vst.msk [vmem:[%s4134] sm:$0xff] %vm4125, %v4110
  %4136 = vst.msk [vmem:[%s4134 + $0x8] sm:$0xff] %vm4125, %v4112
  %4137 = vst.msk [vmem:[%s4134 + $0x10] sm:$0xff] %vm4125, %v4114
  %4138 = vst.msk [vmem:[%s4134 + $0x18] sm:$0xff] %vm4125, %v4116
  %4139 = vst.msk [vmem:[%s4134 + $0x20] sm:$0xff] %vm4125, %v4118
  %4140 = vst.msk [vmem:[%s4134 + $0x28] sm:$0xff] %vm4125, %v4120
  %4141 = vst.msk [vmem:[%s4134 + $0x30] sm:$0xff] %vm4125, %v4122
  %4142 = vst.msk [vmem:[%s4134 + $0x38] sm:$0xff] %vm4125, %v4124
  // Predicated region
  $region10: #{_lambda_.1} parent=0 // pred_check
    _
  $region11: #{_lambda_.1} parent=0 // pred_check_branch
    %4144 = sbr.rel (0) target = $region13
  $region12: #{_lambda_.1} parent=0 // pred_region
    _
  $region13: #{_lambda_.1} parent=0 // pred_fallthru
    _
  // Predicated region
  $region14: #{_lambda_.1} parent=0 // pred_check
    _
  $region15: #{_lambda_.1} parent=0 // pred_check_branch
    %4146 = sbr.rel (0) target = $region17
  $region16: #{_lambda_.1} parent=0 // pred_region
    _
  $region17: #{_lambda_.1} parent=0 // pred_fallthru
    _

</llo_original>
